<compile_context>
chip_gen: v7x
topology: tpu7x:2x2x1
jax: 0.10.0
libtpu: 0.0.40
codegen_flags: <defaults>
</compile_context>

<pallas_src>
import functools

import jax
import jax.numpy as jnp
from jax.experimental import pallas as pl
from jax.experimental.pallas import tpu as pltpu

M_MODELS = 4                       # len(models_type_rank)
RANKS = (10, 15, 10, 15)           # cpd_10, cpd_15, costco_10, costco_15
RMAX = 16                          # per-model ranks zero-padded to a common width
MLP_HIDDEN1 = 100                  # mlp_hidden_dim1 default
CNN_HIDDEN1 = 32                   # cnn_hidden_channels1 default
CNN_HALO = 128                     # lane-aligned halo for the batch-tiled conv

HI = jax.lax.Precision.HIGHEST


def _round_up(x, m):
    return ((x + m - 1) // m) * m


# ----------------------------------------------------------------------------
# In-kernel helpers (shared by all fused kernels)
# ----------------------------------------------------------------------------
def _gather_prod(idx, u_ref, v_ref, w_ref):
    """Gather CPD factor rows for a batch window and multiply the three modes.

    idx   : (3, L) int32 value -- (i, j, k) index tuples, batch lane-dense.
            Indices are assumed in-range (out-of-range would silently select a
            zero-padded column; no runtime check).
    *_ref : (M*RMAX, dpad) f32 refs -- factor tables, (model, rank) flattened on
            sublanes, entity dim (padded to a COMMON dpad) on lanes.
    returns (M*RMAX, L) f32 -- u*v*w, ready for the per-model rank sum.
    """
    L = idx.shape[-1]
    dpad = u_ref.shape[-1]
    # One shared iota for all three tables (JAX does not CSE broadcast_in_dim,
    # so build it exactly once per kernel body).
    ent = jax.lax.broadcasted_iota(jnp.int32, (dpad, L), 0)

    def gathered(tab_ref, row):
        onehot = jnp.where(ent == idx[row:row + 1, :], 1.0, 0.0)      # (dpad, L)
        # Exact one-hot row gather on the MXU; HIGHEST keeps it bit-exact f32.
        return jnp.dot(tab_ref[...], onehot,
                       preferred_element_type=jnp.float32, precision=HI)

    return gathered(u_ref, 0) * gathered(v_ref, 1) * gathered(w_ref, 2)


def _preds_list(prod, num_models, rmax):
    """Per-model CPD predictions as a list of (1, L) lane-dense slabs."""
    return [prod[m * rmax:(m + 1) * rmax, :].sum(axis=0, keepdims=True)
            for m in range(num_models)]


def _shift_lanes(x, direction):
    """Shift x by one along the lane axis, zero fill (concat-of-slices, no MXU).

    direction=+1: out[:, c] = x[:, c-1] (0 at c=0)
    direction=-1: out[:, c] = x[:, c+1] (0 at c=L-1)
    """
    zero = jnp.zeros_like(x[:, :1])
    if direction > 0:
        return jnp.concatenate([zero, x[:, :-1]], axis=-1)
    return jnp.concatenate([x[:, 1:], zero], axis=-1)


# ----------------------------------------------------------------------------
# Kernel 1: CPD + reduction aggregation (mean / median / max / min), fused.
# ----------------------------------------------------------------------------
def _etc_reduce_kernel(idx_ref, u_ref, v_ref, w_ref, out_ref,
                       *, mode, num_models, rmax):
    preds = _preds_list(_gather_prod(idx_ref[...], u_ref, v_ref, w_ref),
                        num_models, rmax)
    if mode == "mean":
        acc = preds[0]
        for p in preds[1:]:
            acc = acc + p
        out_ref[...] = acc * (1.0 / num_models)
    elif mode == "max":
        acc = preds[0]
        for p in preds[1:]:
            acc = jnp.maximum(acc, p)
        out_ref[...] = acc
    elif mode == "min":
        acc = preds[0]
        for p in preds[1:]:
            acc = jnp.minimum(acc, p)
        out_ref[...] = acc
    elif mode == "median" and num_models == 4:
        # Lower median of 4 (torch.median semantics) via a 7-op min/max network.
        l1 = jnp.minimum(preds[0], preds[1])
        h1 = jnp.maximum(preds[0], preds[1])
        l2 = jnp.minimum(preds[2], preds[3])
        h2 = jnp.maximum(preds[2], preds[3])
        out_ref[...] = jnp.minimum(jnp.maximum(l1, l2), jnp.minimum(h1, h2))
    else:
        # General lower-median rank-selection network (num_models is tiny).
        k = (num_models - 1) // 2
        acc = jnp.zeros_like(preds[0])
        for i in range(num_models):
            rank = jnp.zeros(preds[0].shape, jnp.int32)
            for j in range(num_models):
                if j == i:
                    continue
                cond = (preds[j] <= preds[i]) if j < i else (preds[j] < preds[i])
                rank = rank + cond.astype(jnp.int32)
            acc = acc + jnp.where(rank == k, preds[i], 0.0)
        out_ref[...] = acc


# ----------------------------------------------------------------------------
# Kernel 2: CPD + MLP head, fused.  fc1 (M -> H1), ReLU, fc3 (H1 -> 1).
# Dropout p=0 == identity.  Output stays lane-dense (1, bt).
# ----------------------------------------------------------------------------
def _etc_mlp_kernel(idx_ref, u_ref, v_ref, w_ref,
                    w1t_ref, b1_ref, w3_ref, b3_ref, out_ref,
                    *, num_models, rmax):
    preds = _preds_list(_gather_prod(idx_ref[...], u_ref, v_ref, w_ref),
                        num_models, rmax)
    # fc1: K = M = 4 -> VPU broadcast-FMAs instead of a tiny-K MXU matmul.
    w1t = w1t_ref[...]                                   # (H1, M)
    acc = w1t[:, 0:1] * preds[0]
    for m in range(1, num_models):
        acc = acc + w1t[:, m:m + 1] * preds[m]
    h = jnp.maximum(acc + b1_ref[...], 0.0)              # (H1, bt)
    # fc3 (1 output row): VPU mul + sublane reduce -- no exposed MXU drain.
    out_ref[...] = jnp.sum(w3_ref[...] * h, axis=0, keepdims=True) + b3_ref[...]


# ----------------------------------------------------------------------------
# Kernel 3: CPD + CNN head, fused and batch-tiled with a halo.
# Conv1d(M->C1, k=3, pad=1), ReLU, Conv1d(C1->1, k=3, pad=1) along the batch.
# ----------------------------------------------------------------------------
def _etc_cnn_kernel(idx_ref, u_ref, v_ref, w_ref,
                    w1t0_ref, w1t1_ref, w1t2_ref, b1_ref,
                    w2t_ref, b2_ref, out_ref,
                    *, num_models, rmax, bt, halo, batch):
    # Tile i produces outputs for global samples [i*bt, i*bt+bt).  The conv runs
    # along the batch, so each tile re-gathers a `halo`-wide window on each side
    # from the zero-padded index array (halo = 128 keeps the window lane-aligned).
    i = pl.program_id(0)
    lext = bt + 2 * halo
    start = i * bt
    if bt % 128 == 0:
        start = pl.multiple_of(start, 128)
    idx = idx_ref[:, pl.ds(start, lext)]                       # (3, lext)

    preds = _preds_list(_gather_prod(idx, u_ref, v_ref, w_ref),
                        num_models, rmax)                      # M x (1, lext)

    # Positions outside the real batch behave as the conv's zero padding.
    pos = jax.lax.broadcasted_iota(jnp.int32, (1, lext), 1) + (i * bt - halo)
    mask = jnp.where((pos >= 0) & (pos < batch), 1.0, 0.0)     # (1, lext)
    preds = [p * mask for p in preds]

    def channel_mix(wt_ref):                                   # (C1, M) tap weights
        wt = wt_ref[...]
        z = wt[:, 0:1] * preds[0]
        for m in range(1, num_models):
            z = z + wt[:, m:m + 1] * preds[m]
        return z                                               # (C1, lext)

    # conv1 (M -> C1, k=3, 'same'): per-tap channel mix on the VPU, then
    # +/-1 lane shifts (shift commutes with the channel mix).
    z0 = channel_mix(w1t0_ref)
    z1 = channel_mix(w1t1_ref)
    z2 = channel_mix(w1t2_ref)
    h = jnp.maximum(_shift_lanes(z0, +1) + z1 + _shift_lanes(z2, -1)
                    + b1_ref[...], 0.0)                        # (C1, lext)
    h = h * mask                                               # conv2 zero padding

    # conv2 (C1 -> 1, k=3, 'same'): per-tap VPU mul + sublane reduce.
    w2 = w2t_ref[...]                                          # (C1, 3)
    y0 = jnp.sum(w2[:, 0:1] * h, axis=0, keepdims=True)
    y1 = jnp.sum(w2[:, 1:2] * h, axis=0, keepdims=True)
    y2 = jnp.sum(w2[:, 2:3] * h, axis=0, keepdims=True)
    out_full = _shift_lanes(y0, +1) + y1 + _shift_lanes(y2, -1) + b2_ref[...]
    out_ref[...] = out_full[:, halo:halo + bt]                 # lane-dense (1, bt)


# ----------------------------------------------------------------------------
# pallas_call wrappers
# ----------------------------------------------------------------------------
def _batch_tile(b, target=1024):
    # Largest lane-aligned tile <= target that divides B; fall back to the full
    # batch when B is not a multiple of 128 (block then equals the array dim).
    if b % 128 == 0:
        bt = min(b, target)
        while b % bt:
            bt -= 128
        return bt
    return b


# Untiled, whole-array-in-VMEM spec: single-buffered (no pointless double
# buffering of grid-invariant tables / weights).
_VMEM = pl.BlockSpec(memory_space=pltpu.MemorySpace.VMEM)


def _reduce_forward(idx_t, tables, mode, bt=None):
    b = idx_t.shape[1]
    bt = bt or _batch_tile(b)
    kernel = functools.partial(_etc_reduce_kernel, mode=mode,
                               num_models=M_MODELS, rmax=RMAX)
    out = pl.pallas_call(
        kernel,
        out_shape=jax.ShapeDtypeStruct((1, b), jnp.float32),
        grid=(b // bt,),
        in_specs=[pl.BlockSpec((3, bt), lambda i: (0, i))] + [_VMEM] * 3,
        out_specs=pl.BlockSpec((1, bt), lambda i: (0, i)),
        compiler_params=pltpu.CompilerParams(dimension_semantics=("parallel",)),
    )(idx_t, *tables)
    return out[0]                                          # (B,)


def _mlp_forward(idx_t, tables, params, bt=None):
    b = idx_t.shape[1]
    bt = bt or _batch_tile(b)
    kernel = functools.partial(_etc_mlp_kernel, num_models=M_MODELS, rmax=RMAX)
    out = pl.pallas_call(
        kernel,
        out_shape=jax.ShapeDtypeStruct((1, b), jnp.float32),
        grid=(b // bt,),
        in_specs=[pl.BlockSpec((3, bt), lambda i: (0, i))] + [_VMEM] * 7,
        out_specs=pl.BlockSpec((1, bt), lambda i: (0, i)),
        compiler_params=pltpu.CompilerParams(dimension_semantics=("parallel",)),
    )(idx_t, *tables,
      params["fc1_w_t"], params["fc1_b_col"],
      params["fc3_w_col"], params["fc3_b_col"])
    return out[0]                                          # (B,)


def _cnn_forward(idx_t, tables, params, bt=None):
    b = idx_t.shape[1]
    bt = bt or _batch_tile(b)
    halo = CNN_HALO
    # Zero-pad the indices by one halo on each side; padded positions gather a
    # valid row but are masked to zero in-kernel (conv 'same' zero padding).
    idx_pad = jnp.pad(idx_t, ((0, 0), (halo, halo)))
    kernel = functools.partial(_etc_cnn_kernel, num_models=M_MODELS, rmax=RMAX,
                               bt=bt, halo=halo, batch=b)
    out = pl.pallas_call(
        kernel,
        out_shape=jax.ShapeDtypeStruct((1, b), jnp.float32),
        grid=(b // bt,),
        in_specs=[_VMEM] * 10,
        out_specs=pl.BlockSpec((1, bt), lambda i: (0, i)),
        compiler_params=pltpu.CompilerParams(dimension_semantics=("parallel",)),
    )(idx_pad, *tables,
      params["conv1_w_t0"], params["conv1_w_t1"], params["conv1_w_t2"],
      params["conv1_b_col"], params["conv2_w_taps"], params["conv2_b_col"])
    return out[0]                                          # (B,)


def etc_forward(params, idxs, agg_func="median"):
    idx_t = jnp.asarray(idxs, jnp.int32).T                 # (3, B), batch lane-dense
    tables = (params["u_flat"], params["v_flat"], params["w_flat"])
    if agg_func == "mlp":
        return _mlp_forward(idx_t, tables, params)
    if agg_func == "cnn":
        return _cnn_forward(idx_t, tables, params)
    mode = agg_func if agg_func in ("mean", "max", "min") else "median"
    return _reduce_forward(idx_t, tables, mode)


# ----------------------------------------------------------------------------
# Parameter construction (deterministic).  Kernel-ready weight layouts are
# precomputed here once (no per-call wrapper-side transposes/reshapes).
# ----------------------------------------------------------------------------
def make_params(key, dims):
    ks = jax.random.split(key, 12)
    rank_mask = (jnp.arange(RMAX)[None, None, :]
                 < jnp.asarray(RANKS, jnp.int32)[:, None, None]).astype(jnp.float32)
    dpad = _round_up(max(dims), 8)      # COMMON entity padding -> shared gather iota
    factors, flats = [], []
    for d in range(3):
        f = 0.2 * jax.random.normal(ks[d], (M_MODELS, dims[d], RMAX), jnp.float32)
        f = f * rank_mask
        factors.append(f)
        # Kernel layout: (model, rank) flattened on sublanes, entity dim on lanes.
        flat = jnp.transpose(f, (0, 2, 1)).reshape(M_MODELS * RMAX, dims[d])
        flats.append(jnp.pad(flat, ((0, 0), (0, dpad - dims[d]))))

    fc1_w = 0.1 * jax.random.normal(ks[3], (M_MODELS, MLP_HIDDEN1), jnp.float32)
    fc1_b = 0.01 * jax.random.normal(ks[4], (MLP_HIDDEN1,), jnp.float32)
    fc3_w = 0.1 * jax.random.normal(ks[5], (MLP_HIDDEN1, 1), jnp.float32)
    fc3_b = 0.01 * jax.random.normal(ks[6], (1,), jnp.float32)
    conv1_w = 0.1 * jax.random.normal(ks[7], (CNN_HIDDEN1, M_MODELS, 3), jnp.float32)
    conv1_b = 0.01 * jax.random.normal(ks[8], (CNN_HIDDEN1,), jnp.float32)
    conv2_w = 0.1 * jax.random.normal(ks[9], (1, CNN_HIDDEN1, 3), jnp.float32)
    conv2_b = 0.01 * jax.random.normal(ks[10], (1,), jnp.float32)

    return {
        "factors": factors,
        "u_flat": flats[0], "v_flat": flats[1], "w_flat": flats[2],
        # Raw torch-layout weights (reference path uses these).
        "fc1_w": fc1_w, "fc1_b": fc1_b, "fc3_w": fc3_w, "fc3_b": fc3_b,
        "conv1_w": conv1_w, "conv1_b": conv1_b,
        "conv2_w": conv2_w, "conv2_b": conv2_b,
        # Kernel-ready layouts, precomputed once.
        "fc1_w_t": fc1_w.T,                       # (H1, M)
        "fc1_b_col": fc1_b[:, None],              # (H1, 1)
        "fc3_w_col": fc3_w,                       # (H1, 1)
        "fc3_b_col": fc3_b[:, None],              # (1, 1)
        "conv1_w_t0": conv1_w[:, :, 0],           # (C1, M) tap @ x[p-1]
        "conv1_w_t1": conv1_w[:, :, 1],           # (C1, M) tap @ x[p]
        "conv1_w_t2": conv1_w[:, :, 2],           # (C1, M) tap @ x[p+1]
        "conv1_b_col": conv1_b[:, None],          # (C1, 1)
        "conv2_w_taps": conv2_w[0],               # (C1, 3)
        "conv2_b_col": conv2_b[:, None],          # (1, 1)
    }


# ----------------------------------------------------------------------------
# Pure-JAX reference (silent sanity check).
# ----------------------------------------------------------------------------
def _ref_forward(params, idxs, agg_func):
    u, v, w = [jnp.take(params["factors"][d], idxs[:, d], axis=1) for d in range(3)]
    preds = jnp.sum(u * v * w, axis=-1)                    # (M, B)
    pt = preds.T                                           # (B, M)
    if agg_func == "mean":
        return pt.mean(axis=1)
    if agg_func == "max":
        return pt.max(axis=1)
    if agg_func == "min":
        return pt.min(axis=1)
    if agg_func == "median":
        return jnp.sort(pt, axis=1)[:, (M_MODELS - 1) // 2]   # torch lower median
    if agg_func == "mlp":
        h = jnp.maximum(jnp.dot(pt, params["fc1_w"], precision=HI) + params["fc1_b"], 0.0)
        return (jnp.dot(h, params["fc3_w"], precision=HI) + params["fc3_b"])[:, 0]
    if agg_func == "cnn":
        def conv(x, wt, bias):
            xp = jnp.pad(x, ((0, 0), (1, 1)))
            return sum(jnp.dot(wt[:, :, t], xp[:, t:t + x.shape[1]], precision=HI)
                       for t in range(3)) + bias[:, None]
        h = jnp.maximum(conv(preds, params["conv1_w"], params["conv1_b"]), 0.0)
        return conv(h, params["conv2_w"], params["conv2_b"])[0]
    raise ValueError(agg_func)


if __name__ == "__main__":
    key = jax.random.PRNGKey(0)
    dims = (16, 12, 10)                                    # synthetic 3-way tensor shape
    batch = 384                                            # 3 x 128: exercises tiling

    k_idx, k_par = jax.random.split(key)
    idxs = jnp.stack(
        [jax.random.randint(jax.random.fold_in(k_idx, d), (batch,), 0, dims[d])
         for d in range(3)], axis=1).astype(jnp.int32)     # (B, 3) index tuples

    params = make_params(k_par, dims)

    ok = True
    for agg in ("mean", "median", "max", "min", "mlp", "cnn"):
        out = jax.block_until_ready(etc_forward(params, idxs, agg_func=agg))
        ref = _ref_forward(params, idxs, agg)
        ok = ok and out.shape == (batch,)
        ok = ok and bool(jnp.allclose(out, ref, rtol=1e-4, atol=1e-4))

    # Explicit multi-tile checks (3 tiles of 128): pipelined MLP path and the
    # halo-carrying CNN path across tile boundaries.
    idx_t = jnp.asarray(idxs, jnp.int32).T
    tables = (params["u_flat"], params["v_flat"], params["w_flat"])
    mlp_tiled = jax.block_until_ready(_mlp_forward(idx_t, tables, params, bt=128))
    cnn_tiled = jax.block_until_ready(_cnn_forward(idx_t, tables, params, bt=128))
    ok = ok and bool(jnp.allclose(mlp_tiled, _ref_forward(params, idxs, "mlp"),
                                  rtol=1e-4, atol=1e-4))
    ok = ok and bool(jnp.allclose(cnn_tiled, _ref_forward(params, idxs, "cnn"),
                                  rtol=1e-4, atol=1e-4))

    print("KERNEL_OK" if ok else "MISMATCH")
</pallas_src>

<mosaic_0001>
module attributes {stable_mosaic.version = 11 : i64} {
  func.func @_etc_reduce_kernel(%arg0: i32, %arg1: memref<3x384xi32, #tpu.memory_space<vmem>>, %arg2: memref<64x16xf32, #tpu.memory_space<vmem>>, %arg3: memref<64x16xf32, #tpu.memory_space<vmem>>, %arg4: memref<64x16xf32, #tpu.memory_space<vmem>>, %arg5: memref<1x384xf32, #tpu.memory_space<vmem>>) attributes {dimension_semantics = [#tpu.dimension_semantics<parallel>], iteration_bounds = array<i64: 1>, scalar_prefetch = 0 : i64, scratch_operands = 0 : i64, tpu.core_type = #tpu.core_type<tc>, window_params = [{transform_indices = @transform_0, window_bounds = array<i64: 3, 384>}, {pipeline_mode = #tpu.pipeline_mode<synchronous>, transform_indices = @transform_1, window_bounds = array<i64: 64, 16>}, {pipeline_mode = #tpu.pipeline_mode<synchronous>, transform_indices = @transform_2, window_bounds = array<i64: 64, 16>}, {pipeline_mode = #tpu.pipeline_mode<synchronous>, transform_indices = @transform_3, window_bounds = array<i64: 64, 16>}, {transform_indices = @transform_4, window_bounds = array<i64: 1, 384>}]} {
    %c0 = arith.constant 0 : index
    %c0_0 = arith.constant 0 : index
    %0 = vector.load %arg1[%c0, %c0_0] : memref<3x384xi32, #tpu.memory_space<vmem>>, vector<3x384xi32>
    %1 = tpu.iota {dimensions = array<i32: 0>} : vector<16x384xi32>
    %2 = vector.extract_strided_slice %0 {offsets = [0, 0], sizes = [1, 384], strides = [1, 1]} : vector<3x384xi32> to vector<1x384xi32>
    %3 = vector.broadcast %2 : vector<1x384xi32> to vector<16x384xi32>
    %4 = arith.cmpi eq, %1, %3 : vector<16x384xi32>
    %cst = arith.constant 1.000000e+00 : f32
    %cst_1 = arith.constant 0.000000e+00 : f32
    %5 = vector.broadcast %cst : f32 to vector<16x384xf32>
    %6 = vector.broadcast %cst_1 : f32 to vector<16x384xf32>
    %7 = arith.select %4, %5, %6 : vector<16x384xi1>, vector<16x384xf32>
    %c0_2 = arith.constant 0 : index
    %c0_3 = arith.constant 0 : index
    %8 = vector.load %arg2[%c0_2, %c0_3] : memref<64x16xf32, #tpu.memory_space<vmem>>, vector<64x16xf32>
    %cst_4 = arith.constant dense<0.000000e+00> : vector<64x384xf32>
    %9 = tpu.matmul %8, %7, %cst_4 {dimension_numbers = #tpu.dot_dimension_numbers<[1], [0], [0], [1], [0, 0, 1, 1], [], []>, precision = #tpu.contract_precision<fp32>} : vector<64x16xf32>, vector<16x384xf32>, vector<64x384xf32> -> vector<64x384xf32>
    %10 = vector.extract_strided_slice %0 {offsets = [1, 0], sizes = [1, 384], strides = [1, 1]} : vector<3x384xi32> to vector<1x384xi32>
    %11 = vector.broadcast %10 : vector<1x384xi32> to vector<16x384xi32>
    %12 = arith.cmpi eq, %1, %11 : vector<16x384xi32>
    %cst_5 = arith.constant 1.000000e+00 : f32
    %cst_6 = arith.constant 0.000000e+00 : f32
    %13 = vector.broadcast %cst_5 : f32 to vector<16x384xf32>
    %14 = vector.broadcast %cst_6 : f32 to vector<16x384xf32>
    %15 = arith.select %12, %13, %14 : vector<16x384xi1>, vector<16x384xf32>
    %c0_7 = arith.constant 0 : index
    %c0_8 = arith.constant 0 : index
    %16 = vector.load %arg3[%c0_7, %c0_8] : memref<64x16xf32, #tpu.memory_space<vmem>>, vector<64x16xf32>
    %cst_9 = arith.constant dense<0.000000e+00> : vector<64x384xf32>
    %17 = tpu.matmul %16, %15, %cst_9 {dimension_numbers = #tpu.dot_dimension_numbers<[1], [0], [0], [1], [0, 0, 1, 1], [], []>, precision = #tpu.contract_precision<fp32>} : vector<64x16xf32>, vector<16x384xf32>, vector<64x384xf32> -> vector<64x384xf32>
    %18 = arith.mulf %9, %17 : vector<64x384xf32>
    %19 = vector.extract_strided_slice %0 {offsets = [2, 0], sizes = [1, 384], strides = [1, 1]} : vector<3x384xi32> to vector<1x384xi32>
    %20 = vector.broadcast %19 : vector<1x384xi32> to vector<16x384xi32>
    %21 = arith.cmpi eq, %1, %20 : vector<16x384xi32>
    %cst_10 = arith.constant 1.000000e+00 : f32
    %cst_11 = arith.constant 0.000000e+00 : f32
    %22 = vector.broadcast %cst_10 : f32 to vector<16x384xf32>
    %23 = vector.broadcast %cst_11 : f32 to vector<16x384xf32>
    %24 = arith.select %21, %22, %23 : vector<16x384xi1>, vector<16x384xf32>
    %c0_12 = arith.constant 0 : index
    %c0_13 = arith.constant 0 : index
    %25 = vector.load %arg4[%c0_12, %c0_13] : memref<64x16xf32, #tpu.memory_space<vmem>>, vector<64x16xf32>
    %cst_14 = arith.constant dense<0.000000e+00> : vector<64x384xf32>
    %26 = tpu.matmul %25, %24, %cst_14 {dimension_numbers = #tpu.dot_dimension_numbers<[1], [0], [0], [1], [0, 0, 1, 1], [], []>, precision = #tpu.contract_precision<fp32>} : vector<64x16xf32>, vector<16x384xf32>, vector<64x384xf32> -> vector<64x384xf32>
    %27 = arith.mulf %18, %26 : vector<64x384xf32>
    %28 = vector.extract_strided_slice %27 {offsets = [0, 0], sizes = [16, 384], strides = [1, 1]} : vector<64x384xf32> to vector<16x384xf32>
    %cst_15 = arith.constant dense<0.000000e+00> : vector<384xf32>
    %29 = vector.multi_reduction <add>, %28, %cst_15 [0] : vector<16x384xf32> to vector<384xf32>
    %30 = vector.shape_cast %29 : vector<384xf32> to vector<1x384xf32>
    %31 = vector.extract_strided_slice %27 {offsets = [16, 0], sizes = [16, 384], strides = [1, 1]} : vector<64x384xf32> to vector<16x384xf32>
    %cst_16 = arith.constant dense<0.000000e+00> : vector<384xf32>
    %32 = vector.multi_reduction <add>, %31, %cst_16 [0] : vector<16x384xf32> to vector<384xf32>
    %33 = vector.shape_cast %32 : vector<384xf32> to vector<1x384xf32>
    %34 = vector.extract_strided_slice %27 {offsets = [32, 0], sizes = [16, 384], strides = [1, 1]} : vector<64x384xf32> to vector<16x384xf32>
    %cst_17 = arith.constant dense<0.000000e+00> : vector<384xf32>
    %35 = vector.multi_reduction <add>, %34, %cst_17 [0] : vector<16x384xf32> to vector<384xf32>
    %36 = vector.shape_cast %35 : vector<384xf32> to vector<1x384xf32>
    %37 = vector.extract_strided_slice %27 {offsets = [48, 0], sizes = [16, 384], strides = [1, 1]} : vector<64x384xf32> to vector<16x384xf32>
    %cst_18 = arith.constant dense<0.000000e+00> : vector<384xf32>
    %38 = vector.multi_reduction <add>, %37, %cst_18 [0] : vector<16x384xf32> to vector<384xf32>
    %39 = vector.shape_cast %38 : vector<384xf32> to vector<1x384xf32>
    %40 = arith.addf %30, %33 : vector<1x384xf32>
    %41 = arith.addf %40, %36 : vector<1x384xf32>
    %42 = arith.addf %41, %39 : vector<1x384xf32>
    %cst_19 = arith.constant 2.500000e-01 : f32
    %43 = vector.broadcast %cst_19 : f32 to vector<1x384xf32>
    %44 = arith.mulf %42, %43 : vector<1x384xf32>
    %c0_20 = arith.constant 0 : index
    %c0_21 = arith.constant 0 : index
    %45 = vector.load %arg5[%c0_20, %c0_21] : memref<1x384xf32, #tpu.memory_space<vmem>>, vector<1x384xf32>
    tpu.vector_store %arg5[%c0_20, %c0_21], %44 {strides = array<i32>} : memref<1x384xf32, #tpu.memory_space<vmem>>, vector<1x384xf32>,
    return
  }
  func.func @transform_0(%arg0: i32) -> (i32, i32) {
    %c0_i32 = arith.constant 0 : i32
    %c0_i32_0 = arith.constant 0 : i32
    return %c0_i32, %arg0 : i32, i32
  }
  func.func @transform_1(%arg0: i32) -> (i32, i32) {
    %c0_i32 = arith.constant 0 : i32
    %c0_i32_0 = arith.constant 0 : i32
    %c0_i32_1 = arith.constant 0 : i32
    return %c0_i32, %c0_i32_0 : i32, i32
  }
  func.func @transform_2(%arg0: i32) -> (i32, i32) {
    %c0_i32 = arith.constant 0 : i32
    %c0_i32_0 = arith.constant 0 : i32
    %c0_i32_1 = arith.constant 0 : i32
    return %c0_i32, %c0_i32_0 : i32, i32
  }
  func.func @transform_3(%arg0: i32) -> (i32, i32) {
    %c0_i32 = arith.constant 0 : i32
    %c0_i32_0 = arith.constant 0 : i32
    %c0_i32_1 = arith.constant 0 : i32
    return %c0_i32, %c0_i32_0 : i32, i32
  }
  func.func @transform_4(%arg0: i32) -> (i32, i32) {
    %c0_i32 = arith.constant 0 : i32
    %c0_i32_0 = arith.constant 0 : i32
    return %c0_i32, %arg0 : i32, i32
  }
}

</mosaic_0001>

<llo_original>
// kernel: tpu_custom_call.1
$region0: #{tpu_custom_call.1}
  #allocation0 [shape = 'u32[]', space=smem, size = 0x4, offset = 0x4, fixed_abs, tag = 'smem constant byte address 0x4 - core index']
  #allocation1 [shape = 'u32[144,128]{1,0:T(1,128)}', space=vmem, size = 0x12000, scoped, tag = 'internal scratch']
  %s0 = inlined_call_operand.vmem [shape: s32[3,384], index: 0, kind: input, shape index: {}]
  %s1 = inlined_call_operand.vmem [shape: f32[64,16], index: 1, kind: input, shape index: {}]
  %s2 = inlined_call_operand.vmem [shape: f32[64,16], index: 2, kind: input, shape index: {}]
  %s3 = inlined_call_operand.vmem [shape: f32[64,16], index: 3, kind: input, shape index: {}]
  %s4 = inlined_call_operand.hbm [shape: f32[1,384], index: 4, kind: output, shape index: {}]
  %s5 = sld [smem:[#allocation0]]
  $region26: #{tpu_custom_call.1} parent=0
    _
  %s7 = ssub.s32 1, %s5
  %s8 = scalar_select 0, %s7, %s5
  $region1: #{tpu_custom_call.1} parent=0
    #allocation2 [shape = 'u8[1536]{0}', space=vmem, size = 0x800, scoped, tag = 'output window, operand 0, single buffered']
    #allocation3 [shape = 's32[1]{0}', space=sflag, size = 0x4, scoped, tag = 'scoped memory for tpu_custom_call.1']
    %9 = vsyncpa [#allocation3], 0
    // Predicated region
    $region2: #{tpu_custom_call.1} parent=1 // pred_check
      _
    $region3: #{tpu_custom_call.1} parent=1 // pred_check_branch
      %11 = sbr.rel (0) target = $region5
    $region4: #{tpu_custom_call.1} parent=1 // pred_region
      _
    $region5: #{tpu_custom_call.1} parent=1 // pred_fallthru
      _
    // Predicated region
    $region6: #{tpu_custom_call.1} parent=1 // pred_check
      _
    $region7: #{tpu_custom_call.1} parent=1 // pred_check_branch
      %13 = sbr.rel (0) target = $region9
    $region8: #{tpu_custom_call.1} parent=1 // pred_region
      _
    $region9: #{tpu_custom_call.1} parent=1 // pred_fallthru
      _
    // Predicated region
    $region10: #{tpu_custom_call.1} parent=1 // pred_check
      _
    $region11: #{tpu_custom_call.1} parent=1 // pred_check_branch
      %15 = sbr.rel (0) target = $region13
    $region12: #{tpu_custom_call.1} parent=1 // pred_region
      _
    $region13: #{tpu_custom_call.1} parent=1 // pred_fallthru
      _
    // Predicated region
    $region14: #{tpu_custom_call.1} parent=1 // pred_check
      _
    $region15: #{tpu_custom_call.1} parent=1 // pred_check_branch
      %17 = sbr.rel (0) target = $region17
    $region16: #{tpu_custom_call.1} parent=1 // pred_region
      _
    $region17: #{tpu_custom_call.1} parent=1 // pred_fallthru
      _
    %v18 = vld [vmem:[%s0] sm:$0x77]
    %v19 = vld [vmem:[%s0 + $0x8] sm:$0x7]
    %v20 = vlaneseq
    %v21 = vshrl.u32 %v20, 7
    %v22 = vadd.s32 %v21, 8
    %v23 = vlaneseq
    %v24 = vshrl.u32 %v23, 7
    %v25 = vsub.s32 0, %v24
    %v26 = vrot.slane %v18, %v25
    %v27 = vlaneseq
    %v28 = vshrl.u32 %v27, 7
    %v29 = vsub.s32 4, %v28
    %v30 = vrot.slane %v18, %v29
    %v31 = vlaneseq
    %v32 = vshrl.u32 %v31, 7
    %v33 = vsub.s32 0, %v32
    %v34 = vrot.slane %v19, %v33
    %v35 = vlaneseq
    %v36 = vshrl.u32 %v35, 7
    %v37 = vsub.s32 0, %v36
    %v38 = vrot.slane %v26, %v37
    %v39 = vlaneseq
    %v40 = vshrl.u32 %v39, 7
    %v41 = vsub.s32 0, %v40
    %v42 = vrot.slane %v30, %v41
    %v43 = vlaneseq
    %v44 = vshrl.u32 %v43, 7
    %v45 = vsub.s32 0, %v44
    %v46 = vrot.slane %v34, %v45
    %vm47 = vcmp.eq.s32.totalorder %v21, %v38
    %vm48 = vcmp.eq.s32.totalorder %v21, %v42
    %vm49 = vcmp.eq.s32.totalorder %v21, %v46
    %vm50 = vcmp.eq.s32.totalorder %v22, %v38
    %vm51 = vcmp.eq.s32.totalorder %v22, %v42
    %vm52 = vcmp.eq.s32.totalorder %v22, %v46
    %v53 = vsel %vm47, 1.0, 0.0
    %v54 = vsel %vm48, 1.0, 0.0
    %v55 = vsel %vm49, 1.0, 0.0
    %v56 = vsel %vm50, 1.0, 0.0
    %v57 = vsel %vm51, 1.0, 0.0
    %v58 = vsel %vm52, 1.0, 0.0
    %v59 = vld [vmem:[%s1] sm:$0xff]
    %v60 = vld [vmem:[%s1 + $0x8] sm:$0xff]
    %v61 = vld [vmem:[%s1 + $0x10] sm:$0xff]
    %v62 = vld [vmem:[%s1 + $0x18] sm:$0xff]
    %v63 = vld [vmem:[%s1 + $0x20] sm:$0xff]
    %v64 = vld [vmem:[%s1 + $0x28] sm:$0xff]
    %v65 = vld [vmem:[%s1 + $0x30] sm:$0xff]
    %v66 = vld [vmem:[%s1 + $0x38] sm:$0xff]
    %vm67 = vcmask 130048
    %v69 = vsel %vm67, %v59, 0
    %v72 = vsel %vm67, %v60, 0
    %v75 = vsel %vm67, %v61, 0
    %v78 = vsel %vm67, %v62, 0
    %v81 = vsel %vm67, %v63, 0
    %v84 = vsel %vm67, %v64, 0
    %v87 = vsel %vm67, %v65, 0
    %v90 = vsel %vm67, %v66, 0
    %92 = vmatprep.subr.mxu0 %v54
    %93 = vmatpush1.msra.mxu0 %v53
    %94 = vmatprep.subr.mxu0 %v57
    %95 = vmatpush1.msra.mxu0 %v56
    %96 = vmatprep.subr.mxu0 0.0
    %97 = vmatpush1.msra.mxu0 0.0
    %98 = vmatprep.subr.mxu0 0.0
    %99 = vmatpush1.msra.mxu0 0.0
    %100 = vmatprep.subr.mxu0 0.0
    %101 = vmatpush1.msra.mxu0 0.0
    %102 = vmatprep.subr.mxu0 0.0
    %103 = vmatpush1.msra.mxu0 0.0
    %104 = vmatprep.subr.mxu0 0.0
    %105 = vmatpush1.msra.mxu0 0.0
    %106 = vmatprep.subr.mxu0 0.0
    %107 = vmatpush1.msra.mxu0 0.0
    %108 = vmatprep.subr.mxu0 0.0
    %109 = vmatpush1.msra.mxu0 0.0
    %110 = vmatprep.subr.mxu0 0.0
    %111 = vmatpush1.msra.mxu0 0.0
    %112 = vmatprep.subr.mxu0 0.0
    %113 = vmatpush1.msra.mxu0 0.0
    %114 = vmatprep.subr.mxu0 0.0
    %115 = vmatpush1.msra.mxu0 0.0
    %116 = vmatprep.subr.mxu0 0.0
    %117 = vmatpush1.msra.mxu0 0.0
    %118 = vmatprep.subr.mxu0 0.0
    %119 = vmatpush1.msra.mxu0 0.0
    %120 = vmatprep.subr.mxu0 0.0
    %121 = vmatpush1.msra.mxu0 0.0
    %122 = vmatprep.subr.mxu0 0.0
    %123 = vmatpush1.msra.mxu0 0.0
    %124 = vmatprep.subr.mxu0 0.0
    %125 = vmatpush1.msra.mxu0 0.0
    %126 = vmatprep.subr.mxu0 0.0
    %127 = vmatpush1.msra.mxu0 0.0
    %128 = vmatprep.subr.mxu0 0.0
    %129 = vmatpush1.msra.mxu0 0.0
    %130 = vmatprep.subr.mxu0 0.0
    %131 = vmatpush1.msra.mxu0 0.0
    %132 = vmatprep.subr.mxu0 0.0
    %133 = vmatpush1.msra.mxu0 0.0
    %134 = vmatprep.subr.mxu0 0.0
    %135 = vmatpush1.msra.mxu0 0.0
    %136 = vmatprep.subr.mxu0 0.0
    %137 = vmatpush1.msra.mxu0 0.0
    %138 = vmatprep.subr.mxu0 0.0
    %139 = vmatpush1.msra.mxu0 0.0
    %140 = vmatprep.subr.mxu0 0.0
    %141 = vmatpush1.msra.mxu0 0.0
    %142 = vmatprep.subr.mxu0 0.0
    %143 = vmatpush1.msra.mxu0 0.0
    %144 = vmatprep.subr.mxu0 0.0
    %145 = vmatpush1.msra.mxu0 0.0
    %146 = vmatprep.subr.mxu0 0.0
    %147 = vmatpush1.msra.mxu0 0.0
    %148 = vmatprep.subr.mxu0 0.0
    %149 = vmatpush1.msra.mxu0 0.0
    %150 = vmatprep.subr.mxu0 0.0
    %151 = vmatpush1.msra.mxu0 0.0
    %152 = vmatprep.subr.mxu0 0.0
    %153 = vmatpush1.msra.mxu0 0.0
    %154 = vmatprep.subr.mxu0 0.0
    %155 = vmatpush1.msra.mxu0 0.0
    %156 = vmatprep.mubr.f32.mxu0 0.0
    %v157 = vand.u32 %v69, 4294901760
    %v158 = vsub.f32 %v69, %v157
    %v159 = vand.u32 %v158, 4294901760
    %v160 = vsub.f32 %v158, %v159
    %v161 = vand.u32 %v160, 4294901760
    %162 = vmatmul.mubr.f32.gmra.mrb[0].mxu0 %v161
    %v163 = vpop.f32.mrb[0].mxu0
    %v164 = vadd.f32 0.0, %v163
    %v165 = vpop.f32.mrb[0].mxu0
    %v166 = vadd.f32 0.0, %v165
    %167 = vmatprep.mubr.f32.mxu0 0.0
    %v168 = vand.u32 %v72, 4294901760
    %v169 = vsub.f32 %v72, %v168
    %v170 = vand.u32 %v169, 4294901760
    %v171 = vsub.f32 %v169, %v170
    %v172 = vand.u32 %v171, 4294901760
    %173 = vmatmul.mubr.f32.gmra.mrb[0].mxu0 %v172
    %v174 = vpop.f32.mrb[0].mxu0
    %v175 = vadd.f32 0.0, %v174
    %v176 = vpop.f32.mrb[0].mxu0
    %v177 = vadd.f32 0.0, %v176
    %178 = vmatprep.mubr.f32.mxu0 0.0
    %v179 = vand.u32 %v75, 4294901760
    %v180 = vsub.f32 %v75, %v179
    %v181 = vand.u32 %v180, 4294901760
    %v182 = vsub.f32 %v180, %v181
    %v183 = vand.u32 %v182, 4294901760
    %184 = vmatmul.mubr.f32.gmra.mrb[0].mxu0 %v183
    %v185 = vpop.f32.mrb[0].mxu0
    %v186 = vadd.f32 0.0, %v185
    %v187 = vpop.f32.mrb[0].mxu0
    %v188 = vadd.f32 0.0, %v187
    %189 = vmatprep.mubr.f32.mxu0 0.0
    %v190 = vand.u32 %v78, 4294901760
    %v191 = vsub.f32 %v78, %v190
    %v192 = vand.u32 %v191, 4294901760
    %v193 = vsub.f32 %v191, %v192
    %v194 = vand.u32 %v193, 4294901760
    %195 = vmatmul.mubr.f32.gmra.mrb[0].mxu0 %v194
    %v196 = vpop.f32.mrb[0].mxu0
    %v197 = vadd.f32 0.0, %v196
    %v198 = vpop.f32.mrb[0].mxu0
    %v199 = vadd.f32 0.0, %v198
    %200 = vmatprep.mubr.f32.mxu0 0.0
    %v201 = vand.u32 %v81, 4294901760
    %v202 = vsub.f32 %v81, %v201
    %v203 = vand.u32 %v202, 4294901760
    %v204 = vsub.f32 %v202, %v203
    %v205 = vand.u32 %v204, 4294901760
    %206 = vmatmul.mubr.f32.gmra.mrb[0].mxu0 %v205
    %v207 = vpop.f32.mrb[0].mxu0
    %v208 = vadd.f32 0.0, %v207
    %v209 = vpop.f32.mrb[0].mxu0
    %v210 = vadd.f32 0.0, %v209
    %211 = vmatprep.mubr.f32.mxu0 0.0
    %v212 = vand.u32 %v84, 4294901760
    %v213 = vsub.f32 %v84, %v212
    %v214 = vand.u32 %v213, 4294901760
    %v215 = vsub.f32 %v213, %v214
    %v216 = vand.u32 %v215, 4294901760
    %217 = vmatmul.mubr.f32.gmra.mrb[0].mxu0 %v216
    %v218 = vpop.f32.mrb[0].mxu0
    %v219 = vadd.f32 0.0, %v218
    %v220 = vpop.f32.mrb[0].mxu0
    %v221 = vadd.f32 0.0, %v220
    %222 = vmatprep.mubr.f32.mxu0 0.0
    %v223 = vand.u32 %v87, 4294901760
    %v224 = vsub.f32 %v87, %v223
    %v225 = vand.u32 %v224, 4294901760
    %v226 = vsub.f32 %v224, %v225
    %v227 = vand.u32 %v226, 4294901760
    %228 = vmatmul.mubr.f32.gmra.mrb[0].mxu0 %v227
    %v229 = vpop.f32.mrb[0].mxu0
    %v230 = vadd.f32 0.0, %v229
    %v231 = vpop.f32.mrb[0].mxu0
    %v232 = vadd.f32 0.0, %v231
    %233 = vmatprep.mubr.f32.mxu0 0.0
    %v234 = vand.u32 %v90, 4294901760
    %v235 = vsub.f32 %v90, %v234
    %v236 = vand.u32 %v235, 4294901760
    %v237 = vsub.f32 %v235, %v236
    %v238 = vand.u32 %v237, 4294901760
    %239 = vmatmul.mubr.f32.gmra.mrb[0].mxu0 %v238
    %v240 = vpop.f32.mrb[0].mxu0
    %v241 = vadd.f32 0.0, %v240
    %v242 = vpop.f32.mrb[0].mxu0
    %v243 = vadd.f32 0.0, %v242
    %244 = vdwg.mxu0
    %v245 = vsub.f32 %v54, %v54
    %v246 = vand.u32 %v245, 4294901760
    %v247 = vsub.f32 %v245, %v246
    %v248 = vand.u32 %v247, 4294901760
    %249 = vmatprep.subr.mxu0 %v248
    %v250 = vsub.f32 %v53, %v53
    %v251 = vand.u32 %v250, 4294901760
    %v252 = vsub.f32 %v250, %v251
    %v253 = vand.u32 %v252, 4294901760
    %254 = vmatpush1.msra.mxu0 %v253
    %v255 = vsub.f32 %v57, %v57
    %v256 = vand.u32 %v255, 4294901760
    %v257 = vsub.f32 %v255, %v256
    %v258 = vand.u32 %v257, 4294901760
    %259 = vmatprep.subr.mxu0 %v258
    %v260 = vsub.f32 %v56, %v56
    %v261 = vand.u32 %v260, 4294901760
    %v262 = vsub.f32 %v260, %v261
    %v263 = vand.u32 %v262, 4294901760
    %264 = vmatpush1.msra.mxu0 %v263
    %265 = vmatprep.subr.mxu0 0.0
    %266 = vmatpush1.msra.mxu0 0.0
    %267 = vmatprep.subr.mxu0 0.0
    %268 = vmatpush1.msra.mxu0 0.0
    %269 = vmatprep.subr.mxu0 0.0
    %270 = vmatpush1.msra.mxu0 0.0
    %271 = vmatprep.subr.mxu0 0.0
    %272 = vmatpush1.msra.mxu0 0.0
    %273 = vmatprep.subr.mxu0 0.0
    %274 = vmatpush1.msra.mxu0 0.0
    %275 = vmatprep.subr.mxu0 0.0
    %276 = vmatpush1.msra.mxu0 0.0
    %277 = vmatprep.subr.mxu0 0.0
    %278 = vmatpush1.msra.mxu0 0.0
    %279 = vmatprep.subr.mxu0 0.0
    %280 = vmatpush1.msra.mxu0 0.0
    %281 = vmatprep.subr.mxu0 0.0
    %282 = vmatpush1.msra.mxu0 0.0
    %283 = vmatprep.subr.mxu0 0.0
    %284 = vmatpush1.msra.mxu0 0.0
    %285 = vmatprep.subr.mxu0 0.0
    %286 = vmatpush1.msra.mxu0 0.0
    %287 = vmatprep.subr.mxu0 0.0
    %288 = vmatpush1.msra.mxu0 0.0
    %289 = vmatprep.subr.mxu0 0.0
    %290 = vmatpush1.msra.mxu0 0.0
    %291 = vmatprep.subr.mxu0 0.0
    %292 = vmatpush1.msra.mxu0 0.0
    %293 = vmatprep.subr.mxu0 0.0
    %294 = vmatpush1.msra.mxu0 0.0
    %295 = vmatprep.subr.mxu0 0.0
    %296 = vmatpush1.msra.mxu0 0.0
    %297 = vmatprep.subr.mxu0 0.0
    %298 = vmatpush1.msra.mxu0 0.0
    %299 = vmatprep.subr.mxu0 0.0
    %300 = vmatpush1.msra.mxu0 0.0
    %301 = vmatprep.subr.mxu0 0.0
    %302 = vmatpush1.msra.mxu0 0.0
    %303 = vmatprep.subr.mxu0 0.0
    %304 = vmatpush1.msra.mxu0 0.0
    %305 = vmatprep.subr.mxu0 0.0
    %306 = vmatpush1.msra.mxu0 0.0
    %307 = vmatprep.subr.mxu0 0.0
    %308 = vmatpush1.msra.mxu0 0.0
    %309 = vmatprep.subr.mxu0 0.0
    %310 = vmatpush1.msra.mxu0 0.0
    %311 = vmatprep.subr.mxu0 0.0
    %312 = vmatpush1.msra.mxu0 0.0
    %313 = vmatprep.subr.mxu0 0.0
    %314 = vmatpush1.msra.mxu0 0.0
    %315 = vmatprep.subr.mxu0 0.0
    %316 = vmatpush1.msra.mxu0 0.0
    %317 = vmatprep.subr.mxu0 0.0
    %318 = vmatpush1.msra.mxu0 0.0
    %319 = vmatprep.subr.mxu0 0.0
    %320 = vmatpush1.msra.mxu0 0.0
    %321 = vmatprep.subr.mxu0 0.0
    %322 = vmatpush1.msra.mxu0 0.0
    %323 = vmatprep.subr.mxu0 0.0
    %324 = vmatpush1.msra.mxu0 0.0
    %325 = vmatprep.mubr.f32.mxu0 0.0
    %v326 = vand.u32 %v69, 4294901760
    %327 = vmatmul.mubr.f32.gmra.mrb[0].mxu0 %v326
    %v328 = vpop.f32.mrb[0].mxu0
    %v329 = vadd.f32 %v164, %v328
    %v330 = vpop.f32.mrb[0].mxu0
    %v331 = vadd.f32 %v166, %v330
    %332 = vmatprep.mubr.f32.mxu0 0.0
    %v333 = vand.u32 %v72, 4294901760
    %334 = vmatmul.mubr.f32.gmra.mrb[0].mxu0 %v333
    %v335 = vpop.f32.mrb[0].mxu0
    %v336 = vadd.f32 %v175, %v335
    %v337 = vpop.f32.mrb[0].mxu0
    %v338 = vadd.f32 %v177, %v337
    %339 = vmatprep.mubr.f32.mxu0 0.0
    %v340 = vand.u32 %v75, 4294901760
    %341 = vmatmul.mubr.f32.gmra.mrb[0].mxu0 %v340
    %v342 = vpop.f32.mrb[0].mxu0
    %v343 = vadd.f32 %v186, %v342
    %v344 = vpop.f32.mrb[0].mxu0
    %v345 = vadd.f32 %v188, %v344
    %346 = vmatprep.mubr.f32.mxu0 0.0
    %v347 = vand.u32 %v78, 4294901760
    %348 = vmatmul.mubr.f32.gmra.mrb[0].mxu0 %v347
    %v349 = vpop.f32.mrb[0].mxu0
    %v350 = vadd.f32 %v197, %v349
    %v351 = vpop.f32.mrb[0].mxu0
    %v352 = vadd.f32 %v199, %v351
    %353 = vmatprep.mubr.f32.mxu0 0.0
    %v354 = vand.u32 %v81, 4294901760
    %355 = vmatmul.mubr.f32.gmra.mrb[0].mxu0 %v354
    %v356 = vpop.f32.mrb[0].mxu0
    %v357 = vadd.f32 %v208, %v356
    %v358 = vpop.f32.mrb[0].mxu0
    %v359 = vadd.f32 %v210, %v358
    %360 = vmatprep.mubr.f32.mxu0 0.0
    %v361 = vand.u32 %v84, 4294901760
    %362 = vmatmul.mubr.f32.gmra.mrb[0].mxu0 %v361
    %v363 = vpop.f32.mrb[0].mxu0
    %v364 = vadd.f32 %v219, %v363
    %v365 = vpop.f32.mrb[0].mxu0
    %v366 = vadd.f32 %v221, %v365
    %367 = vmatprep.mubr.f32.mxu0 0.0
    %v368 = vand.u32 %v87, 4294901760
    %369 = vmatmul.mubr.f32.gmra.mrb[0].mxu0 %v368
    %v370 = vpop.f32.mrb[0].mxu0
    %v371 = vadd.f32 %v230, %v370
    %v372 = vpop.f32.mrb[0].mxu0
    %v373 = vadd.f32 %v232, %v372
    %374 = vmatprep.mubr.f32.mxu0 0.0
    %v375 = vand.u32 %v90, 4294901760
    %376 = vmatmul.mubr.f32.gmra.mrb[0].mxu0 %v375
    %v377 = vpop.f32.mrb[0].mxu0
    %v378 = vadd.f32 %v241, %v377
    %v379 = vpop.f32.mrb[0].mxu0
    %v380 = vadd.f32 %v243, %v379
    %381 = vdwg.mxu0
    %v382 = vsub.f32 %v54, %v54
    %383 = vmatprep.subr.mxu0 %v382
    %v384 = vsub.f32 %v53, %v53
    %385 = vmatpush1.msra.mxu0 %v384
    %v386 = vsub.f32 %v57, %v57
    %387 = vmatprep.subr.mxu0 %v386
    %v388 = vsub.f32 %v56, %v56
    %389 = vmatpush1.msra.mxu0 %v388
    %390 = vmatprep.subr.mxu0 0.0
    %391 = vmatpush1.msra.mxu0 0.0
    %392 = vmatprep.subr.mxu0 0.0
    %393 = vmatpush1.msra.mxu0 0.0
    %394 = vmatprep.subr.mxu0 0.0
    %395 = vmatpush1.msra.mxu0 0.0
    %396 = vmatprep.subr.mxu0 0.0
    %397 = vmatpush1.msra.mxu0 0.0
    %398 = vmatprep.subr.mxu0 0.0
    %399 = vmatpush1.msra.mxu0 0.0
    %400 = vmatprep.subr.mxu0 0.0
    %401 = vmatpush1.msra.mxu0 0.0
    %402 = vmatprep.subr.mxu0 0.0
    %403 = vmatpush1.msra.mxu0 0.0
    %404 = vmatprep.subr.mxu0 0.0
    %405 = vmatpush1.msra.mxu0 0.0
    %406 = vmatprep.subr.mxu0 0.0
    %407 = vmatpush1.msra.mxu0 0.0
    %408 = vmatprep.subr.mxu0 0.0
    %409 = vmatpush1.msra.mxu0 0.0
    %410 = vmatprep.subr.mxu0 0.0
    %411 = vmatpush1.msra.mxu0 0.0
    %412 = vmatprep.subr.mxu0 0.0
    %413 = vmatpush1.msra.mxu0 0.0
    %414 = vmatprep.subr.mxu0 0.0
    %415 = vmatpush1.msra.mxu0 0.0
    %416 = vmatprep.subr.mxu0 0.0
    %417 = vmatpush1.msra.mxu0 0.0
    %418 = vmatprep.subr.mxu0 0.0
    %419 = vmatpush1.msra.mxu0 0.0
    %420 = vmatprep.subr.mxu0 0.0
    %421 = vmatpush1.msra.mxu0 0.0
    %422 = vmatprep.subr.mxu0 0.0
    %423 = vmatpush1.msra.mxu0 0.0
    %424 = vmatprep.subr.mxu0 0.0
    %425 = vmatpush1.msra.mxu0 0.0
    %426 = vmatprep.subr.mxu0 0.0
    %427 = vmatpush1.msra.mxu0 0.0
    %428 = vmatprep.subr.mxu0 0.0
    %429 = vmatpush1.msra.mxu0 0.0
    %430 = vmatprep.subr.mxu0 0.0
    %431 = vmatpush1.msra.mxu0 0.0
    %432 = vmatprep.subr.mxu0 0.0
    %433 = vmatpush1.msra.mxu0 0.0
    %434 = vmatprep.subr.mxu0 0.0
    %435 = vmatpush1.msra.mxu0 0.0
    %436 = vmatprep.subr.mxu0 0.0
    %437 = vmatpush1.msra.mxu0 0.0
    %438 = vmatprep.subr.mxu0 0.0
    %439 = vmatpush1.msra.mxu0 0.0
    %440 = vmatprep.subr.mxu0 0.0
    %441 = vmatpush1.msra.mxu0 0.0
    %442 = vmatprep.subr.mxu0 0.0
    %443 = vmatpush1.msra.mxu0 0.0
    %444 = vmatprep.subr.mxu0 0.0
    %445 = vmatpush1.msra.mxu0 0.0
    %446 = vmatprep.subr.mxu0 0.0
    %447 = vmatpush1.msra.mxu0 0.0
    %448 = vmatprep.subr.mxu0 0.0
    %449 = vmatpush1.msra.mxu0 0.0
    %450 = vmatprep.mubr.f32.mxu0 0.0
    %v451 = vand.u32 %v69, 4294901760
    %v452 = vsub.f32 %v69, %v451
    %453 = vmatmul.mubr.f32.gmra.mrb[0].mxu0 %v452
    %v454 = vpop.f32.mrb[0].mxu0
    %v455 = vadd.f32 %v329, %v454
    %v456 = vpop.f32.mrb[0].mxu0
    %v457 = vadd.f32 %v331, %v456
    %458 = vmatprep.mubr.f32.mxu0 0.0
    %v459 = vand.u32 %v72, 4294901760
    %v460 = vsub.f32 %v72, %v459
    %461 = vmatmul.mubr.f32.gmra.mrb[0].mxu0 %v460
    %v462 = vpop.f32.mrb[0].mxu0
    %v463 = vadd.f32 %v336, %v462
    %v464 = vpop.f32.mrb[0].mxu0
    %v465 = vadd.f32 %v338, %v464
    %466 = vmatprep.mubr.f32.mxu0 0.0
    %v467 = vand.u32 %v75, 4294901760
    %v468 = vsub.f32 %v75, %v467
    %469 = vmatmul.mubr.f32.gmra.mrb[0].mxu0 %v468
    %v470 = vpop.f32.mrb[0].mxu0
    %v471 = vadd.f32 %v343, %v470
    %v472 = vpop.f32.mrb[0].mxu0
    %v473 = vadd.f32 %v345, %v472
    %474 = vmatprep.mubr.f32.mxu0 0.0
    %v475 = vand.u32 %v78, 4294901760
    %v476 = vsub.f32 %v78, %v475
    %477 = vmatmul.mubr.f32.gmra.mrb[0].mxu0 %v476
    %v478 = vpop.f32.mrb[0].mxu0
    %v479 = vadd.f32 %v350, %v478
    %v480 = vpop.f32.mrb[0].mxu0
    %v481 = vadd.f32 %v352, %v480
    %482 = vmatprep.mubr.f32.mxu0 0.0
    %v483 = vand.u32 %v81, 4294901760
    %v484 = vsub.f32 %v81, %v483
    %485 = vmatmul.mubr.f32.gmra.mrb[0].mxu0 %v484
    %v486 = vpop.f32.mrb[0].mxu0
    %v487 = vadd.f32 %v357, %v486
    %v488 = vpop.f32.mrb[0].mxu0
    %v489 = vadd.f32 %v359, %v488
    %490 = vmatprep.mubr.f32.mxu0 0.0
    %v491 = vand.u32 %v84, 4294901760
    %v492 = vsub.f32 %v84, %v491
    %493 = vmatmul.mubr.f32.gmra.mrb[0].mxu0 %v492
    %v494 = vpop.f32.mrb[0].mxu0
    %v495 = vadd.f32 %v364, %v494
    %v496 = vpop.f32.mrb[0].mxu0
    %v497 = vadd.f32 %v366, %v496
    %498 = vmatprep.mubr.f32.mxu0 0.0
    %v499 = vand.u32 %v87, 4294901760
    %v500 = vsub.f32 %v87, %v499
    %501 = vmatmul.mubr.f32.gmra.mrb[0].mxu0 %v500
    %v502 = vpop.f32.mrb[0].mxu0
    %v503 = vadd.f32 %v371, %v502
    %v504 = vpop.f32.mrb[0].mxu0
    %v505 = vadd.f32 %v373, %v504
    %506 = vmatprep.mubr.f32.mxu0 0.0
    %v507 = vand.u32 %v90, 4294901760
    %v508 = vsub.f32 %v90, %v507
    %509 = vmatmul.mubr.f32.gmra.mrb[0].mxu0 %v508
    %v510 = vpop.f32.mrb[0].mxu0
    %v511 = vadd.f32 %v378, %v510
    %v512 = vpop.f32.mrb[0].mxu0
    %v513 = vadd.f32 %v380, %v512
    %514 = vdwg.mxu0
    %515 = vmatprep.subr.mxu0 %v54
    %516 = vmatpush1.msra.mxu0 %v53
    %517 = vmatprep.subr.mxu0 %v57
    %518 = vmatpush1.msra.mxu0 %v56
    %519 = vmatprep.subr.mxu0 0.0
    %520 = vmatpush1.msra.mxu0 0.0
    %521 = vmatprep.subr.mxu0 0.0
    %522 = vmatpush1.msra.mxu0 0.0
    %523 = vmatprep.subr.mxu0 0.0
    %524 = vmatpush1.msra.mxu0 0.0
    %525 = vmatprep.subr.mxu0 0.0
    %526 = vmatpush1.msra.mxu0 0.0
    %527 = vmatprep.subr.mxu0 0.0
    %528 = vmatpush1.msra.mxu0 0.0
    %529 = vmatprep.subr.mxu0 0.0
    %530 = vmatpush1.msra.mxu0 0.0
    %531 = vmatprep.subr.mxu0 0.0
    %532 = vmatpush1.msra.mxu0 0.0
    %533 = vmatprep.subr.mxu0 0.0
    %534 = vmatpush1.msra.mxu0 0.0
    %535 = vmatprep.subr.mxu0 0.0
    %536 = vmatpush1.msra.mxu0 0.0
    %537 = vmatprep.subr.mxu0 0.0
    %538 = vmatpush1.msra.mxu0 0.0
    %539 = vmatprep.subr.mxu0 0.0
    %540 = vmatpush1.msra.mxu0 0.0
    %541 = vmatprep.subr.mxu0 0.0
    %542 = vmatpush1.msra.mxu0 0.0
    %543 = vmatprep.subr.mxu0 0.0
    %544 = vmatpush1.msra.mxu0 0.0
    %545 = vmatprep.subr.mxu0 0.0
    %546 = vmatpush1.msra.mxu0 0.0
    %547 = vmatprep.subr.mxu0 0.0
    %548 = vmatpush1.msra.mxu0 0.0
    %549 = vmatprep.subr.mxu0 0.0
    %550 = vmatpush1.msra.mxu0 0.0
    %551 = vmatprep.subr.mxu0 0.0
    %552 = vmatpush1.msra.mxu0 0.0
    %553 = vmatprep.subr.mxu0 0.0
    %554 = vmatpush1.msra.mxu0 0.0
    %555 = vmatprep.subr.mxu0 0.0
    %556 = vmatpush1.msra.mxu0 0.0
    %557 = vmatprep.subr.mxu0 0.0
    %558 = vmatpush1.msra.mxu0 0.0
    %559 = vmatprep.subr.mxu0 0.0
    %560 = vmatpush1.msra.mxu0 0.0
    %561 = vmatprep.subr.mxu0 0.0
    %562 = vmatpush1.msra.mxu0 0.0
    %563 = vmatprep.subr.mxu0 0.0
    %564 = vmatpush1.msra.mxu0 0.0
    %565 = vmatprep.subr.mxu0 0.0
    %566 = vmatpush1.msra.mxu0 0.0
    %567 = vmatprep.subr.mxu0 0.0
    %568 = vmatpush1.msra.mxu0 0.0
    %569 = vmatprep.subr.mxu0 0.0
    %570 = vmatpush1.msra.mxu0 0.0
    %571 = vmatprep.subr.mxu0 0.0
    %572 = vmatpush1.msra.mxu0 0.0
    %573 = vmatprep.subr.mxu0 0.0
    %574 = vmatpush1.msra.mxu0 0.0
    %575 = vmatprep.subr.mxu0 0.0
    %576 = vmatpush1.msra.mxu0 0.0
    %577 = vmatprep.subr.mxu0 0.0
    %578 = vmatpush1.msra.mxu0 0.0
    %579 = vmatprep.mubr.f32.mxu0 0.0
    %v580 = vand.u32 %v69, 4294901760
    %v581 = vsub.f32 %v69, %v580
    %v582 = vand.u32 %v581, 4294901760
    %583 = vmatmul.mubr.f32.gmra.mrb[0].mxu0 %v582
    %v584 = vpop.f32.mrb[0].mxu0
    %v585 = vadd.f32 %v455, %v584
    %v586 = vpop.f32.mrb[0].mxu0
    %v587 = vadd.f32 %v457, %v586
    %588 = vmatprep.mubr.f32.mxu0 0.0
    %v589 = vand.u32 %v72, 4294901760
    %v590 = vsub.f32 %v72, %v589
    %v591 = vand.u32 %v590, 4294901760
    %592 = vmatmul.mubr.f32.gmra.mrb[0].mxu0 %v591
    %v593 = vpop.f32.mrb[0].mxu0
    %v594 = vadd.f32 %v463, %v593
    %v595 = vpop.f32.mrb[0].mxu0
    %v596 = vadd.f32 %v465, %v595
    %597 = vmatprep.mubr.f32.mxu0 0.0
    %v598 = vand.u32 %v75, 4294901760
    %v599 = vsub.f32 %v75, %v598
    %v600 = vand.u32 %v599, 4294901760
    %601 = vmatmul.mubr.f32.gmra.mrb[0].mxu0 %v600
    %v602 = vpop.f32.mrb[0].mxu0
    %v603 = vadd.f32 %v471, %v602
    %v604 = vpop.f32.mrb[0].mxu0
    %v605 = vadd.f32 %v473, %v604
    %606 = vmatprep.mubr.f32.mxu0 0.0
    %v607 = vand.u32 %v78, 4294901760
    %v608 = vsub.f32 %v78, %v607
    %v609 = vand.u32 %v608, 4294901760
    %610 = vmatmul.mubr.f32.gmra.mrb[0].mxu0 %v609
    %v611 = vpop.f32.mrb[0].mxu0
    %v612 = vadd.f32 %v479, %v611
    %v613 = vpop.f32.mrb[0].mxu0
    %v614 = vadd.f32 %v481, %v613
    %615 = vmatprep.mubr.f32.mxu0 0.0
    %v616 = vand.u32 %v81, 4294901760
    %v617 = vsub.f32 %v81, %v616
    %v618 = vand.u32 %v617, 4294901760
    %619 = vmatmul.mubr.f32.gmra.mrb[0].mxu0 %v618
    %v620 = vpop.f32.mrb[0].mxu0
    %v621 = vadd.f32 %v487, %v620
    %v622 = vpop.f32.mrb[0].mxu0
    %v623 = vadd.f32 %v489, %v622
    %624 = vmatprep.mubr.f32.mxu0 0.0
    %v625 = vand.u32 %v84, 4294901760
    %v626 = vsub.f32 %v84, %v625
    %v627 = vand.u32 %v626, 4294901760
    %628 = vmatmul.mubr.f32.gmra.mrb[0].mxu0 %v627
    %v629 = vpop.f32.mrb[0].mxu0
    %v630 = vadd.f32 %v495, %v629
    %v631 = vpop.f32.mrb[0].mxu0
    %v632 = vadd.f32 %v497, %v631
    %633 = vmatprep.mubr.f32.mxu0 0.0
    %v634 = vand.u32 %v87, 4294901760
    %v635 = vsub.f32 %v87, %v634
    %v636 = vand.u32 %v635, 4294901760
    %637 = vmatmul.mubr.f32.gmra.mrb[0].mxu0 %v636
    %v638 = vpop.f32.mrb[0].mxu0
    %v639 = vadd.f32 %v503, %v638
    %v640 = vpop.f32.mrb[0].mxu0
    %v641 = vadd.f32 %v505, %v640
    %642 = vmatprep.mubr.f32.mxu0 0.0
    %v643 = vand.u32 %v90, 4294901760
    %v644 = vsub.f32 %v90, %v643
    %v645 = vand.u32 %v644, 4294901760
    %646 = vmatmul.mubr.f32.gmra.mrb[0].mxu0 %v645
    %v647 = vpop.f32.mrb[0].mxu0
    %v648 = vadd.f32 %v511, %v647
    %v649 = vpop.f32.mrb[0].mxu0
    %v650 = vadd.f32 %v513, %v649
    %651 = vdwg.mxu0
    %v652 = vsub.f32 %v54, %v54
    %v653 = vand.u32 %v652, 4294901760
    %654 = vmatprep.subr.mxu0 %v653
    %v655 = vsub.f32 %v53, %v53
    %v656 = vand.u32 %v655, 4294901760
    %657 = vmatpush1.msra.mxu0 %v656
    %v658 = vsub.f32 %v57, %v57
    %v659 = vand.u32 %v658, 4294901760
    %660 = vmatprep.subr.mxu0 %v659
    %v661 = vsub.f32 %v56, %v56
    %v662 = vand.u32 %v661, 4294901760
    %663 = vmatpush1.msra.mxu0 %v662
    %664 = vmatprep.subr.mxu0 0.0
    %665 = vmatpush1.msra.mxu0 0.0
    %666 = vmatprep.subr.mxu0 0.0
    %667 = vmatpush1.msra.mxu0 0.0
    %668 = vmatprep.subr.mxu0 0.0
    %669 = vmatpush1.msra.mxu0 0.0
    %670 = vmatprep.subr.mxu0 0.0
    %671 = vmatpush1.msra.mxu0 0.0
    %672 = vmatprep.subr.mxu0 0.0
    %673 = vmatpush1.msra.mxu0 0.0
    %674 = vmatprep.subr.mxu0 0.0
    %675 = vmatpush1.msra.mxu0 0.0
    %676 = vmatprep.subr.mxu0 0.0
    %677 = vmatpush1.msra.mxu0 0.0
    %678 = vmatprep.subr.mxu0 0.0
    %679 = vmatpush1.msra.mxu0 0.0
    %680 = vmatprep.subr.mxu0 0.0
    %681 = vmatpush1.msra.mxu0 0.0
    %682 = vmatprep.subr.mxu0 0.0
    %683 = vmatpush1.msra.mxu0 0.0
    %684 = vmatprep.subr.mxu0 0.0
    %685 = vmatpush1.msra.mxu0 0.0
    %686 = vmatprep.subr.mxu0 0.0
    %687 = vmatpush1.msra.mxu0 0.0
    %688 = vmatprep.subr.mxu0 0.0
    %689 = vmatpush1.msra.mxu0 0.0
    %690 = vmatprep.subr.mxu0 0.0
    %691 = vmatpush1.msra.mxu0 0.0
    %692 = vmatprep.subr.mxu0 0.0
    %693 = vmatpush1.msra.mxu0 0.0
    %694 = vmatprep.subr.mxu0 0.0
    %695 = vmatpush1.msra.mxu0 0.0
    %696 = vmatprep.subr.mxu0 0.0
    %697 = vmatpush1.msra.mxu0 0.0
    %698 = vmatprep.subr.mxu0 0.0
    %699 = vmatpush1.msra.mxu0 0.0
    %700 = vmatprep.subr.mxu0 0.0
    %701 = vmatpush1.msra.mxu0 0.0
    %702 = vmatprep.subr.mxu0 0.0
    %703 = vmatpush1.msra.mxu0 0.0
    %704 = vmatprep.subr.mxu0 0.0
    %705 = vmatpush1.msra.mxu0 0.0
    %706 = vmatprep.subr.mxu0 0.0
    %707 = vmatpush1.msra.mxu0 0.0
    %708 = vmatprep.subr.mxu0 0.0
    %709 = vmatpush1.msra.mxu0 0.0
    %710 = vmatprep.subr.mxu0 0.0
    %711 = vmatpush1.msra.mxu0 0.0
    %712 = vmatprep.subr.mxu0 0.0
    %713 = vmatpush1.msra.mxu0 0.0
    %714 = vmatprep.subr.mxu0 0.0
    %715 = vmatpush1.msra.mxu0 0.0
    %716 = vmatprep.subr.mxu0 0.0
    %717 = vmatpush1.msra.mxu0 0.0
    %718 = vmatprep.subr.mxu0 0.0
    %719 = vmatpush1.msra.mxu0 0.0
    %720 = vmatprep.subr.mxu0 0.0
    %721 = vmatpush1.msra.mxu0 0.0
    %722 = vmatprep.subr.mxu0 0.0
    %723 = vmatpush1.msra.mxu0 0.0
    %724 = vmatprep.mubr.f32.mxu0 0.0
    %v725 = vand.u32 %v69, 4294901760
    %726 = vmatmul.mubr.f32.gmra.mrb[0].mxu0 %v725
    %v727 = vpop.f32.mrb[0].mxu0
    %v728 = vadd.f32 %v585, %v727
    %v729 = vpop.f32.mrb[0].mxu0
    %v730 = vadd.f32 %v587, %v729
    %731 = vmatprep.mubr.f32.mxu0 0.0
    %v732 = vand.u32 %v72, 4294901760
    %733 = vmatmul.mubr.f32.gmra.mrb[0].mxu0 %v732
    %v734 = vpop.f32.mrb[0].mxu0
    %v735 = vadd.f32 %v594, %v734
    %v736 = vpop.f32.mrb[0].mxu0
    %v737 = vadd.f32 %v596, %v736
    %738 = vmatprep.mubr.f32.mxu0 0.0
    %v739 = vand.u32 %v75, 4294901760
    %740 = vmatmul.mubr.f32.gmra.mrb[0].mxu0 %v739
    %v741 = vpop.f32.mrb[0].mxu0
    %v742 = vadd.f32 %v603, %v741
    %v743 = vpop.f32.mrb[0].mxu0
    %v744 = vadd.f32 %v605, %v743
    %745 = vmatprep.mubr.f32.mxu0 0.0
    %v746 = vand.u32 %v78, 4294901760
    %747 = vmatmul.mubr.f32.gmra.mrb[0].mxu0 %v746
    %v748 = vpop.f32.mrb[0].mxu0
    %v749 = vadd.f32 %v612, %v748
    %v750 = vpop.f32.mrb[0].mxu0
    %v751 = vadd.f32 %v614, %v750
    %752 = vmatprep.mubr.f32.mxu0 0.0
    %v753 = vand.u32 %v81, 4294901760
    %754 = vmatmul.mubr.f32.gmra.mrb[0].mxu0 %v753
    %v755 = vpop.f32.mrb[0].mxu0
    %v756 = vadd.f32 %v621, %v755
    %v757 = vpop.f32.mrb[0].mxu0
    %v758 = vadd.f32 %v623, %v757
    %759 = vmatprep.mubr.f32.mxu0 0.0
    %v760 = vand.u32 %v84, 4294901760
    %761 = vmatmul.mubr.f32.gmra.mrb[0].mxu0 %v760
    %v762 = vpop.f32.mrb[0].mxu0
    %v763 = vadd.f32 %v630, %v762
    %v764 = vpop.f32.mrb[0].mxu0
    %v765 = vadd.f32 %v632, %v764
    %766 = vmatprep.mubr.f32.mxu0 0.0
    %v767 = vand.u32 %v87, 4294901760
    %768 = vmatmul.mubr.f32.gmra.mrb[0].mxu0 %v767
    %v769 = vpop.f32.mrb[0].mxu0
    %v770 = vadd.f32 %v639, %v769
    %v771 = vpop.f32.mrb[0].mxu0
    %v772 = vadd.f32 %v641, %v771
    %773 = vmatprep.mubr.f32.mxu0 0.0
    %v774 = vand.u32 %v90, 4294901760
    %775 = vmatmul.mubr.f32.gmra.mrb[0].mxu0 %v774
    %v776 = vpop.f32.mrb[0].mxu0
    %v777 = vadd.f32 %v648, %v776
    %v778 = vpop.f32.mrb[0].mxu0
    %v779 = vadd.f32 %v650, %v778
    %780 = vdwg.mxu0
    %781 = vmatprep.subr.mxu0 %v54
    %782 = vmatpush1.msra.mxu0 %v53
    %783 = vmatprep.subr.mxu0 %v57
    %784 = vmatpush1.msra.mxu0 %v56
    %785 = vmatprep.subr.mxu0 0.0
    %786 = vmatpush1.msra.mxu0 0.0
    %787 = vmatprep.subr.mxu0 0.0
    %788 = vmatpush1.msra.mxu0 0.0
    %789 = vmatprep.subr.mxu0 0.0
    %790 = vmatpush1.msra.mxu0 0.0
    %791 = vmatprep.subr.mxu0 0.0
    %792 = vmatpush1.msra.mxu0 0.0
    %793 = vmatprep.subr.mxu0 0.0
    %794 = vmatpush1.msra.mxu0 0.0
    %795 = vmatprep.subr.mxu0 0.0
    %796 = vmatpush1.msra.mxu0 0.0
    %797 = vmatprep.subr.mxu0 0.0
    %798 = vmatpush1.msra.mxu0 0.0
    %799 = vmatprep.subr.mxu0 0.0
    %800 = vmatpush1.msra.mxu0 0.0
    %801 = vmatprep.subr.mxu0 0.0
    %802 = vmatpush1.msra.mxu0 0.0
    %803 = vmatprep.subr.mxu0 0.0
    %804 = vmatpush1.msra.mxu0 0.0
    %805 = vmatprep.subr.mxu0 0.0
    %806 = vmatpush1.msra.mxu0 0.0
    %807 = vmatprep.subr.mxu0 0.0
    %808 = vmatpush1.msra.mxu0 0.0
    %809 = vmatprep.subr.mxu0 0.0
    %810 = vmatpush1.msra.mxu0 0.0
    %811 = vmatprep.subr.mxu0 0.0
    %812 = vmatpush1.msra.mxu0 0.0
    %813 = vmatprep.subr.mxu0 0.0
    %814 = vmatpush1.msra.mxu0 0.0
    %815 = vmatprep.subr.mxu0 0.0
    %816 = vmatpush1.msra.mxu0 0.0
    %817 = vmatprep.subr.mxu0 0.0
    %818 = vmatpush1.msra.mxu0 0.0
    %819 = vmatprep.subr.mxu0 0.0
    %820 = vmatpush1.msra.mxu0 0.0
    %821 = vmatprep.subr.mxu0 0.0
    %822 = vmatpush1.msra.mxu0 0.0
    %823 = vmatprep.subr.mxu0 0.0
    %824 = vmatpush1.msra.mxu0 0.0
    %825 = vmatprep.subr.mxu0 0.0
    %826 = vmatpush1.msra.mxu0 0.0
    %827 = vmatprep.subr.mxu0 0.0
    %828 = vmatpush1.msra.mxu0 0.0
    %829 = vmatprep.subr.mxu0 0.0
    %830 = vmatpush1.msra.mxu0 0.0
    %831 = vmatprep.subr.mxu0 0.0
    %832 = vmatpush1.msra.mxu0 0.0
    %833 = vmatprep.subr.mxu0 0.0
    %834 = vmatpush1.msra.mxu0 0.0
    %835 = vmatprep.subr.mxu0 0.0
    %836 = vmatpush1.msra.mxu0 0.0
    %837 = vmatprep.subr.mxu0 0.0
    %838 = vmatpush1.msra.mxu0 0.0
    %839 = vmatprep.subr.mxu0 0.0
    %840 = vmatpush1.msra.mxu0 0.0
    %841 = vmatprep.subr.mxu0 0.0
    %842 = vmatpush1.msra.mxu0 0.0
    %843 = vmatprep.subr.mxu0 0.0
    %844 = vmatpush1.msra.mxu0 0.0
    %845 = vmatprep.mubr.f32.mxu0 0.0
    %v846 = vand.u32 %v69, 4294901760
    %847 = vmatmul.mubr.f32.gmra.mrb[0].mxu0 %v846
    %v848 = vpop.f32.mrb[0].mxu0
    %v849 = vadd.f32 %v728, %v848
    %v850 = vpop.f32.mrb[0].mxu0
    %v851 = vadd.f32 %v730, %v850
    %852 = vmatprep.mubr.f32.mxu0 0.0
    %v853 = vand.u32 %v72, 4294901760
    %854 = vmatmul.mubr.f32.gmra.mrb[0].mxu0 %v853
    %v855 = vpop.f32.mrb[0].mxu0
    %v856 = vadd.f32 %v735, %v855
    %v857 = vpop.f32.mrb[0].mxu0
    %v858 = vadd.f32 %v737, %v857
    %859 = vmatprep.mubr.f32.mxu0 0.0
    %v860 = vand.u32 %v75, 4294901760
    %861 = vmatmul.mubr.f32.gmra.mrb[0].mxu0 %v860
    %v862 = vpop.f32.mrb[0].mxu0
    %v863 = vadd.f32 %v742, %v862
    %v864 = vpop.f32.mrb[0].mxu0
    %v865 = vadd.f32 %v744, %v864
    %866 = vmatprep.mubr.f32.mxu0 0.0
    %v867 = vand.u32 %v78, 4294901760
    %868 = vmatmul.mubr.f32.gmra.mrb[0].mxu0 %v867
    %v869 = vpop.f32.mrb[0].mxu0
    %v870 = vadd.f32 %v749, %v869
    %v871 = vpop.f32.mrb[0].mxu0
    %v872 = vadd.f32 %v751, %v871
    %873 = vmatprep.mubr.f32.mxu0 0.0
    %v874 = vand.u32 %v81, 4294901760
    %875 = vmatmul.mubr.f32.gmra.mrb[0].mxu0 %v874
    %v876 = vpop.f32.mrb[0].mxu0
    %v877 = vadd.f32 %v756, %v876
    %v878 = vpop.f32.mrb[0].mxu0
    %v879 = vadd.f32 %v758, %v878
    %880 = vmatprep.mubr.f32.mxu0 0.0
    %v881 = vand.u32 %v84, 4294901760
    %882 = vmatmul.mubr.f32.gmra.mrb[0].mxu0 %v881
    %v883 = vpop.f32.mrb[0].mxu0
    %v884 = vadd.f32 %v763, %v883
    %v885 = vpop.f32.mrb[0].mxu0
    %v886 = vadd.f32 %v765, %v885
    %887 = vmatprep.mubr.f32.mxu0 0.0
    %v888 = vand.u32 %v87, 4294901760
    %889 = vmatmul.mubr.f32.gmra.mrb[0].mxu0 %v888
    %v890 = vpop.f32.mrb[0].mxu0
    %v891 = vadd.f32 %v770, %v890
    %v892 = vpop.f32.mrb[0].mxu0
    %v893 = vadd.f32 %v772, %v892
    %894 = vmatprep.mubr.f32.mxu0 0.0
    %v895 = vand.u32 %v90, 4294901760
    %896 = vmatmul.mubr.f32.gmra.mrb[0].mxu0 %v895
    %v897 = vpop.f32.mrb[0].mxu0
    %v898 = vadd.f32 %v777, %v897
    %v899 = vpop.f32.mrb[0].mxu0
    %v900 = vadd.f32 %v779, %v899
    %901 = vdwg.mxu0
    %902 = vmatprep.subr.mxu0 0.0
    %903 = vmatpush1.msra.mxu0 %v55
    %904 = vmatprep.subr.mxu0 0.0
    %905 = vmatpush1.msra.mxu0 %v58
    %906 = vmatprep.subr.mxu0 0.0
    %907 = vmatpush1.msra.mxu0 0.0
    %908 = vmatprep.subr.mxu0 0.0
    %909 = vmatpush1.msra.mxu0 0.0
    %910 = vmatprep.subr.mxu0 0.0
    %911 = vmatpush1.msra.mxu0 0.0
    %912 = vmatprep.subr.mxu0 0.0
    %913 = vmatpush1.msra.mxu0 0.0
    %914 = vmatprep.subr.mxu0 0.0
    %915 = vmatpush1.msra.mxu0 0.0
    %916 = vmatprep.subr.mxu0 0.0
    %917 = vmatpush1.msra.mxu0 0.0
    %918 = vmatprep.subr.mxu0 0.0
    %919 = vmatpush1.msra.mxu0 0.0
    %920 = vmatprep.subr.mxu0 0.0
    %921 = vmatpush1.msra.mxu0 0.0
    %922 = vmatprep.subr.mxu0 0.0
    %923 = vmatpush1.msra.mxu0 0.0
    %924 = vmatprep.subr.mxu0 0.0
    %925 = vmatpush1.msra.mxu0 0.0
    %926 = vmatprep.subr.mxu0 0.0
    %927 = vmatpush1.msra.mxu0 0.0
    %928 = vmatprep.subr.mxu0 0.0
    %929 = vmatpush1.msra.mxu0 0.0
    %930 = vmatprep.subr.mxu0 0.0
    %931 = vmatpush1.msra.mxu0 0.0
    %932 = vmatprep.subr.mxu0 0.0
    %933 = vmatpush1.msra.mxu0 0.0
    %934 = vmatprep.subr.mxu0 0.0
    %935 = vmatpush1.msra.mxu0 0.0
    %936 = vmatprep.subr.mxu0 0.0
    %937 = vmatpush1.msra.mxu0 0.0
    %938 = vmatprep.subr.mxu0 0.0
    %939 = vmatpush1.msra.mxu0 0.0
    %940 = vmatprep.subr.mxu0 0.0
    %941 = vmatpush1.msra.mxu0 0.0
    %942 = vmatprep.subr.mxu0 0.0
    %943 = vmatpush1.msra.mxu0 0.0
    %944 = vmatprep.subr.mxu0 0.0
    %945 = vmatpush1.msra.mxu0 0.0
    %946 = vmatprep.subr.mxu0 0.0
    %947 = vmatpush1.msra.mxu0 0.0
    %948 = vmatprep.subr.mxu0 0.0
    %949 = vmatpush1.msra.mxu0 0.0
    %950 = vmatprep.subr.mxu0 0.0
    %951 = vmatpush1.msra.mxu0 0.0
    %952 = vmatprep.subr.mxu0 0.0
    %953 = vmatpush1.msra.mxu0 0.0
    %954 = vmatprep.subr.mxu0 0.0
    %955 = vmatpush1.msra.mxu0 0.0
    %956 = vmatprep.subr.mxu0 0.0
    %957 = vmatpush1.msra.mxu0 0.0
    %958 = vmatprep.subr.mxu0 0.0
    %959 = vmatpush1.msra.mxu0 0.0
    %960 = vmatprep.subr.mxu0 0.0
    %961 = vmatpush1.msra.mxu0 0.0
    %962 = vmatprep.subr.mxu0 0.0
    %963 = vmatpush1.msra.mxu0 0.0
    %964 = vmatprep.subr.mxu0 0.0
    %965 = vmatpush1.msra.mxu0 0.0
    %966 = vmatprep.mubr.f32.mxu0 0.0
    %v967 = vand.u32 %v69, 4294901760
    %v968 = vsub.f32 %v69, %v967
    %v969 = vand.u32 %v968, 4294901760
    %v970 = vsub.f32 %v968, %v969
    %v971 = vand.u32 %v970, 4294901760
    %972 = vmatmul.mubr.f32.gmra.mrb[0].mxu0 %v971
    %v973 = vpop.f32.mrb[0].mxu0
    %v974 = vadd.f32 0.0, %v973
    %v975 = vpop.f32.mrb[0].mxu0
    %976 = vmatprep.mubr.f32.mxu0 0.0
    %v977 = vand.u32 %v72, 4294901760
    %v978 = vsub.f32 %v72, %v977
    %v979 = vand.u32 %v978, 4294901760
    %v980 = vsub.f32 %v978, %v979
    %v981 = vand.u32 %v980, 4294901760
    %982 = vmatmul.mubr.f32.gmra.mrb[0].mxu0 %v981
    %v983 = vpop.f32.mrb[0].mxu0
    %v984 = vadd.f32 0.0, %v983
    %v985 = vpop.f32.mrb[0].mxu0
    %986 = vmatprep.mubr.f32.mxu0 0.0
    %v987 = vand.u32 %v75, 4294901760
    %v988 = vsub.f32 %v75, %v987
    %v989 = vand.u32 %v988, 4294901760
    %v990 = vsub.f32 %v988, %v989
    %v991 = vand.u32 %v990, 4294901760
    %992 = vmatmul.mubr.f32.gmra.mrb[0].mxu0 %v991
    %v993 = vpop.f32.mrb[0].mxu0
    %v994 = vadd.f32 0.0, %v993
    %v995 = vpop.f32.mrb[0].mxu0
    %996 = vmatprep.mubr.f32.mxu0 0.0
    %v997 = vand.u32 %v78, 4294901760
    %v998 = vsub.f32 %v78, %v997
    %v999 = vand.u32 %v998, 4294901760
    %v1000 = vsub.f32 %v998, %v999
    %v1001 = vand.u32 %v1000, 4294901760
    %1002 = vmatmul.mubr.f32.gmra.mrb[0].mxu0 %v1001
    %v1003 = vpop.f32.mrb[0].mxu0
    %v1004 = vadd.f32 0.0, %v1003
    %v1005 = vpop.f32.mrb[0].mxu0
    %1006 = vmatprep.mubr.f32.mxu0 0.0
    %v1007 = vand.u32 %v81, 4294901760
    %v1008 = vsub.f32 %v81, %v1007
    %v1009 = vand.u32 %v1008, 4294901760
    %v1010 = vsub.f32 %v1008, %v1009
    %v1011 = vand.u32 %v1010, 4294901760
    %1012 = vmatmul.mubr.f32.gmra.mrb[0].mxu0 %v1011
    %v1013 = vpop.f32.mrb[0].mxu0
    %v1014 = vadd.f32 0.0, %v1013
    %v1015 = vpop.f32.mrb[0].mxu0
    %1016 = vmatprep.mubr.f32.mxu0 0.0
    %v1017 = vand.u32 %v84, 4294901760
    %v1018 = vsub.f32 %v84, %v1017
    %v1019 = vand.u32 %v1018, 4294901760
    %v1020 = vsub.f32 %v1018, %v1019
    %v1021 = vand.u32 %v1020, 4294901760
    %1022 = vmatmul.mubr.f32.gmra.mrb[0].mxu0 %v1021
    %v1023 = vpop.f32.mrb[0].mxu0
    %v1024 = vadd.f32 0.0, %v1023
    %v1025 = vpop.f32.mrb[0].mxu0
    %1026 = vmatprep.mubr.f32.mxu0 0.0
    %v1027 = vand.u32 %v87, 4294901760
    %v1028 = vsub.f32 %v87, %v1027
    %v1029 = vand.u32 %v1028, 4294901760
    %v1030 = vsub.f32 %v1028, %v1029
    %v1031 = vand.u32 %v1030, 4294901760
    %1032 = vmatmul.mubr.f32.gmra.mrb[0].mxu0 %v1031
    %v1033 = vpop.f32.mrb[0].mxu0
    %v1034 = vadd.f32 0.0, %v1033
    %v1035 = vpop.f32.mrb[0].mxu0
    %1036 = vmatprep.mubr.f32.mxu0 0.0
    %v1037 = vand.u32 %v90, 4294901760
    %v1038 = vsub.f32 %v90, %v1037
    %v1039 = vand.u32 %v1038, 4294901760
    %v1040 = vsub.f32 %v1038, %v1039
    %v1041 = vand.u32 %v1040, 4294901760
    %1042 = vmatmul.mubr.f32.gmra.mrb[0].mxu0 %v1041
    %v1043 = vpop.f32.mrb[0].mxu0
    %v1044 = vadd.f32 0.0, %v1043
    %v1045 = vpop.f32.mrb[0].mxu0
    %1046 = vdwg.mxu0
    %1047 = vmatprep.subr.mxu0 0.0
    %v1048 = vsub.f32 %v55, %v55
    %v1049 = vand.u32 %v1048, 4294901760
    %v1050 = vsub.f32 %v1048, %v1049
    %v1051 = vand.u32 %v1050, 4294901760
    %1052 = vmatpush1.msra.mxu0 %v1051
    %1053 = vmatprep.subr.mxu0 0.0
    %v1054 = vsub.f32 %v58, %v58
    %v1055 = vand.u32 %v1054, 4294901760
    %v1056 = vsub.f32 %v1054, %v1055
    %v1057 = vand.u32 %v1056, 4294901760
    %1058 = vmatpush1.msra.mxu0 %v1057
    %1059 = vmatprep.subr.mxu0 0.0
    %1060 = vmatpush1.msra.mxu0 0.0
    %1061 = vmatprep.subr.mxu0 0.0
    %1062 = vmatpush1.msra.mxu0 0.0
    %1063 = vmatprep.subr.mxu0 0.0
    %1064 = vmatpush1.msra.mxu0 0.0
    %1065 = vmatprep.subr.mxu0 0.0
    %1066 = vmatpush1.msra.mxu0 0.0
    %1067 = vmatprep.subr.mxu0 0.0
    %1068 = vmatpush1.msra.mxu0 0.0
    %1069 = vmatprep.subr.mxu0 0.0
    %1070 = vmatpush1.msra.mxu0 0.0
    %1071 = vmatprep.subr.mxu0 0.0
    %1072 = vmatpush1.msra.mxu0 0.0
    %1073 = vmatprep.subr.mxu0 0.0
    %1074 = vmatpush1.msra.mxu0 0.0
    %1075 = vmatprep.subr.mxu0 0.0
    %1076 = vmatpush1.msra.mxu0 0.0
    %1077 = vmatprep.subr.mxu0 0.0
    %1078 = vmatpush1.msra.mxu0 0.0
    %1079 = vmatprep.subr.mxu0 0.0
    %1080 = vmatpush1.msra.mxu0 0.0
    %1081 = vmatprep.subr.mxu0 0.0
    %1082 = vmatpush1.msra.mxu0 0.0
    %1083 = vmatprep.subr.mxu0 0.0
    %1084 = vmatpush1.msra.mxu0 0.0
    %1085 = vmatprep.subr.mxu0 0.0
    %1086 = vmatpush1.msra.mxu0 0.0
    %1087 = vmatprep.subr.mxu0 0.0
    %1088 = vmatpush1.msra.mxu0 0.0
    %1089 = vmatprep.subr.mxu0 0.0
    %1090 = vmatpush1.msra.mxu0 0.0
    %1091 = vmatprep.subr.mxu0 0.0
    %1092 = vmatpush1.msra.mxu0 0.0
    %1093 = vmatprep.subr.mxu0 0.0
    %1094 = vmatpush1.msra.mxu0 0.0
    %1095 = vmatprep.subr.mxu0 0.0
    %1096 = vmatpush1.msra.mxu0 0.0
    %1097 = vmatprep.subr.mxu0 0.0
    %1098 = vmatpush1.msra.mxu0 0.0
    %1099 = vmatprep.subr.mxu0 0.0
    %1100 = vmatpush1.msra.mxu0 0.0
    %1101 = vmatprep.subr.mxu0 0.0
    %1102 = vmatpush1.msra.mxu0 0.0
    %1103 = vmatprep.subr.mxu0 0.0
    %1104 = vmatpush1.msra.mxu0 0.0
    %1105 = vmatprep.subr.mxu0 0.0
    %1106 = vmatpush1.msra.mxu0 0.0
    %1107 = vmatprep.subr.mxu0 0.0
    %1108 = vmatpush1.msra.mxu0 0.0
    %1109 = vmatprep.subr.mxu0 0.0
    %1110 = vmatpush1.msra.mxu0 0.0
    %1111 = vmatprep.subr.mxu0 0.0
    %1112 = vmatpush1.msra.mxu0 0.0
    %1113 = vmatprep.subr.mxu0 0.0
    %1114 = vmatpush1.msra.mxu0 0.0
    %1115 = vmatprep.subr.mxu0 0.0
    %1116 = vmatpush1.msra.mxu0 0.0
    %1117 = vmatprep.subr.mxu0 0.0
    %1118 = vmatpush1.msra.mxu0 0.0
    %1119 = vmatprep.mubr.f32.mxu0 0.0
    %v1120 = vand.u32 %v69, 4294901760
    %1121 = vmatmul.mubr.f32.gmra.mrb[0].mxu0 %v1120
    %v1122 = vpop.f32.mrb[0].mxu0
    %v1123 = vadd.f32 %v974, %v1122
    %v1124 = vpop.f32.mrb[0].mxu0
    %1125 = vmatprep.mubr.f32.mxu0 0.0
    %v1126 = vand.u32 %v72, 4294901760
    %1127 = vmatmul.mubr.f32.gmra.mrb[0].mxu0 %v1126
    %v1128 = vpop.f32.mrb[0].mxu0
    %v1129 = vadd.f32 %v984, %v1128
    %v1130 = vpop.f32.mrb[0].mxu0
    %1131 = vmatprep.mubr.f32.mxu0 0.0
    %v1132 = vand.u32 %v75, 4294901760
    %1133 = vmatmul.mubr.f32.gmra.mrb[0].mxu0 %v1132
    %v1134 = vpop.f32.mrb[0].mxu0
    %v1135 = vadd.f32 %v994, %v1134
    %v1136 = vpop.f32.mrb[0].mxu0
    %1137 = vmatprep.mubr.f32.mxu0 0.0
    %v1138 = vand.u32 %v78, 4294901760
    %1139 = vmatmul.mubr.f32.gmra.mrb[0].mxu0 %v1138
    %v1140 = vpop.f32.mrb[0].mxu0
    %v1141 = vadd.f32 %v1004, %v1140
    %v1142 = vpop.f32.mrb[0].mxu0
    %1143 = vmatprep.mubr.f32.mxu0 0.0
    %v1144 = vand.u32 %v81, 4294901760
    %1145 = vmatmul.mubr.f32.gmra.mrb[0].mxu0 %v1144
    %v1146 = vpop.f32.mrb[0].mxu0
    %v1147 = vadd.f32 %v1014, %v1146
    %v1148 = vpop.f32.mrb[0].mxu0
    %1149 = vmatprep.mubr.f32.mxu0 0.0
    %v1150 = vand.u32 %v84, 4294901760
    %1151 = vmatmul.mubr.f32.gmra.mrb[0].mxu0 %v1150
    %v1152 = vpop.f32.mrb[0].mxu0
    %v1153 = vadd.f32 %v1024, %v1152
    %v1154 = vpop.f32.mrb[0].mxu0
    %1155 = vmatprep.mubr.f32.mxu0 0.0
    %v1156 = vand.u32 %v87, 4294901760
    %1157 = vmatmul.mubr.f32.gmra.mrb[0].mxu0 %v1156
    %v1158 = vpop.f32.mrb[0].mxu0
    %v1159 = vadd.f32 %v1034, %v1158
    %v1160 = vpop.f32.mrb[0].mxu0
    %1161 = vmatprep.mubr.f32.mxu0 0.0
    %v1162 = vand.u32 %v90, 4294901760
    %1163 = vmatmul.mubr.f32.gmra.mrb[0].mxu0 %v1162
    %v1164 = vpop.f32.mrb[0].mxu0
    %v1165 = vadd.f32 %v1044, %v1164
    %v1166 = vpop.f32.mrb[0].mxu0
    %1167 = vdwg.mxu0
    %1168 = vmatprep.subr.mxu0 0.0
    %v1169 = vsub.f32 %v55, %v55
    %1170 = vmatpush1.msra.mxu0 %v1169
    %1171 = vmatprep.subr.mxu0 0.0
    %v1172 = vsub.f32 %v58, %v58
    %1173 = vmatpush1.msra.mxu0 %v1172
    %1174 = vmatprep.subr.mxu0 0.0
    %1175 = vmatpush1.msra.mxu0 0.0
    %1176 = vmatprep.subr.mxu0 0.0
    %1177 = vmatpush1.msra.mxu0 0.0
    %1178 = vmatprep.subr.mxu0 0.0
    %1179 = vmatpush1.msra.mxu0 0.0
    %1180 = vmatprep.subr.mxu0 0.0
    %1181 = vmatpush1.msra.mxu0 0.0
    %1182 = vmatprep.subr.mxu0 0.0
    %1183 = vmatpush1.msra.mxu0 0.0
    %1184 = vmatprep.subr.mxu0 0.0
    %1185 = vmatpush1.msra.mxu0 0.0
    %1186 = vmatprep.subr.mxu0 0.0
    %1187 = vmatpush1.msra.mxu0 0.0
    %1188 = vmatprep.subr.mxu0 0.0
    %1189 = vmatpush1.msra.mxu0 0.0
    %1190 = vmatprep.subr.mxu0 0.0
    %1191 = vmatpush1.msra.mxu0 0.0
    %1192 = vmatprep.subr.mxu0 0.0
    %1193 = vmatpush1.msra.mxu0 0.0
    %1194 = vmatprep.subr.mxu0 0.0
    %1195 = vmatpush1.msra.mxu0 0.0
    %1196 = vmatprep.subr.mxu0 0.0
    %1197 = vmatpush1.msra.mxu0 0.0
    %1198 = vmatprep.subr.mxu0 0.0
    %1199 = vmatpush1.msra.mxu0 0.0
    %1200 = vmatprep.subr.mxu0 0.0
    %1201 = vmatpush1.msra.mxu0 0.0
    %1202 = vmatprep.subr.mxu0 0.0
    %1203 = vmatpush1.msra.mxu0 0.0
    %1204 = vmatprep.subr.mxu0 0.0
    %1205 = vmatpush1.msra.mxu0 0.0
    %1206 = vmatprep.subr.mxu0 0.0
    %1207 = vmatpush1.msra.mxu0 0.0
    %1208 = vmatprep.subr.mxu0 0.0
    %1209 = vmatpush1.msra.mxu0 0.0
    %1210 = vmatprep.subr.mxu0 0.0
    %1211 = vmatpush1.msra.mxu0 0.0
    %1212 = vmatprep.subr.mxu0 0.0
    %1213 = vmatpush1.msra.mxu0 0.0
    %1214 = vmatprep.subr.mxu0 0.0
    %1215 = vmatpush1.msra.mxu0 0.0
    %1216 = vmatprep.subr.mxu0 0.0
    %1217 = vmatpush1.msra.mxu0 0.0
    %1218 = vmatprep.subr.mxu0 0.0
    %1219 = vmatpush1.msra.mxu0 0.0
    %1220 = vmatprep.subr.mxu0 0.0
    %1221 = vmatpush1.msra.mxu0 0.0
    %1222 = vmatprep.subr.mxu0 0.0
    %1223 = vmatpush1.msra.mxu0 0.0
    %1224 = vmatprep.subr.mxu0 0.0
    %1225 = vmatpush1.msra.mxu0 0.0
    %1226 = vmatprep.subr.mxu0 0.0
    %1227 = vmatpush1.msra.mxu0 0.0
    %1228 = vmatprep.subr.mxu0 0.0
    %1229 = vmatpush1.msra.mxu0 0.0
    %1230 = vmatprep.subr.mxu0 0.0
    %1231 = vmatpush1.msra.mxu0 0.0
    %1232 = vmatprep.subr.mxu0 0.0
    %1233 = vmatpush1.msra.mxu0 0.0
    %1234 = vmatprep.mubr.f32.mxu0 0.0
    %v1235 = vand.u32 %v69, 4294901760
    %v1236 = vsub.f32 %v69, %v1235
    %1237 = vmatmul.mubr.f32.gmra.mrb[0].mxu0 %v1236
    %v1238 = vpop.f32.mrb[0].mxu0
    %v1239 = vadd.f32 %v1123, %v1238
    %v1240 = vpop.f32.mrb[0].mxu0
    %1241 = vmatprep.mubr.f32.mxu0 0.0
    %v1242 = vand.u32 %v72, 4294901760
    %v1243 = vsub.f32 %v72, %v1242
    %1244 = vmatmul.mubr.f32.gmra.mrb[0].mxu0 %v1243
    %v1245 = vpop.f32.mrb[0].mxu0
    %v1246 = vadd.f32 %v1129, %v1245
    %v1247 = vpop.f32.mrb[0].mxu0
    %1248 = vmatprep.mubr.f32.mxu0 0.0
    %v1249 = vand.u32 %v75, 4294901760
    %v1250 = vsub.f32 %v75, %v1249
    %1251 = vmatmul.mubr.f32.gmra.mrb[0].mxu0 %v1250
    %v1252 = vpop.f32.mrb[0].mxu0
    %v1253 = vadd.f32 %v1135, %v1252
    %v1254 = vpop.f32.mrb[0].mxu0
    %1255 = vmatprep.mubr.f32.mxu0 0.0
    %v1256 = vand.u32 %v78, 4294901760
    %v1257 = vsub.f32 %v78, %v1256
    %1258 = vmatmul.mubr.f32.gmra.mrb[0].mxu0 %v1257
    %v1259 = vpop.f32.mrb[0].mxu0
    %v1260 = vadd.f32 %v1141, %v1259
    %v1261 = vpop.f32.mrb[0].mxu0
    %1262 = vmatprep.mubr.f32.mxu0 0.0
    %v1263 = vand.u32 %v81, 4294901760
    %v1264 = vsub.f32 %v81, %v1263
    %1265 = vmatmul.mubr.f32.gmra.mrb[0].mxu0 %v1264
    %v1266 = vpop.f32.mrb[0].mxu0
    %v1267 = vadd.f32 %v1147, %v1266
    %v1268 = vpop.f32.mrb[0].mxu0
    %1269 = vmatprep.mubr.f32.mxu0 0.0
    %v1270 = vand.u32 %v84, 4294901760
    %v1271 = vsub.f32 %v84, %v1270
    %1272 = vmatmul.mubr.f32.gmra.mrb[0].mxu0 %v1271
    %v1273 = vpop.f32.mrb[0].mxu0
    %v1274 = vadd.f32 %v1153, %v1273
    %v1275 = vpop.f32.mrb[0].mxu0
    %1276 = vmatprep.mubr.f32.mxu0 0.0
    %v1277 = vand.u32 %v87, 4294901760
    %v1278 = vsub.f32 %v87, %v1277
    %1279 = vmatmul.mubr.f32.gmra.mrb[0].mxu0 %v1278
    %v1280 = vpop.f32.mrb[0].mxu0
    %v1281 = vadd.f32 %v1159, %v1280
    %v1282 = vpop.f32.mrb[0].mxu0
    %1283 = vmatprep.mubr.f32.mxu0 0.0
    %v1284 = vand.u32 %v90, 4294901760
    %v1285 = vsub.f32 %v90, %v1284
    %1286 = vmatmul.mubr.f32.gmra.mrb[0].mxu0 %v1285
    %v1287 = vpop.f32.mrb[0].mxu0
    %v1288 = vadd.f32 %v1165, %v1287
    %v1289 = vpop.f32.mrb[0].mxu0
    %1290 = vdwg.mxu0
    %1291 = vmatprep.subr.mxu0 0.0
    %1292 = vmatpush1.msra.mxu0 %v55
    %1293 = vmatprep.subr.mxu0 0.0
    %1294 = vmatpush1.msra.mxu0 %v58
    %1295 = vmatprep.subr.mxu0 0.0
    %1296 = vmatpush1.msra.mxu0 0.0
    %1297 = vmatprep.subr.mxu0 0.0
    %1298 = vmatpush1.msra.mxu0 0.0
    %1299 = vmatprep.subr.mxu0 0.0
    %1300 = vmatpush1.msra.mxu0 0.0
    %1301 = vmatprep.subr.mxu0 0.0
    %1302 = vmatpush1.msra.mxu0 0.0
    %1303 = vmatprep.subr.mxu0 0.0
    %1304 = vmatpush1.msra.mxu0 0.0
    %1305 = vmatprep.subr.mxu0 0.0
    %1306 = vmatpush1.msra.mxu0 0.0
    %1307 = vmatprep.subr.mxu0 0.0
    %1308 = vmatpush1.msra.mxu0 0.0
    %1309 = vmatprep.subr.mxu0 0.0
    %1310 = vmatpush1.msra.mxu0 0.0
    %1311 = vmatprep.subr.mxu0 0.0
    %1312 = vmatpush1.msra.mxu0 0.0
    %1313 = vmatprep.subr.mxu0 0.0
    %1314 = vmatpush1.msra.mxu0 0.0
    %1315 = vmatprep.subr.mxu0 0.0
    %1316 = vmatpush1.msra.mxu0 0.0
    %1317 = vmatprep.subr.mxu0 0.0
    %1318 = vmatpush1.msra.mxu0 0.0
    %1319 = vmatprep.subr.mxu0 0.0
    %1320 = vmatpush1.msra.mxu0 0.0
    %1321 = vmatprep.subr.mxu0 0.0
    %1322 = vmatpush1.msra.mxu0 0.0
    %1323 = vmatprep.subr.mxu0 0.0
    %1324 = vmatpush1.msra.mxu0 0.0
    %1325 = vmatprep.subr.mxu0 0.0
    %1326 = vmatpush1.msra.mxu0 0.0
    %1327 = vmatprep.subr.mxu0 0.0
    %1328 = vmatpush1.msra.mxu0 0.0
    %1329 = vmatprep.subr.mxu0 0.0
    %1330 = vmatpush1.msra.mxu0 0.0
    %1331 = vmatprep.subr.mxu0 0.0
    %1332 = vmatpush1.msra.mxu0 0.0
    %1333 = vmatprep.subr.mxu0 0.0
    %1334 = vmatpush1.msra.mxu0 0.0
    %1335 = vmatprep.subr.mxu0 0.0
    %1336 = vmatpush1.msra.mxu0 0.0
    %1337 = vmatprep.subr.mxu0 0.0
    %1338 = vmatpush1.msra.mxu0 0.0
    %1339 = vmatprep.subr.mxu0 0.0
    %1340 = vmatpush1.msra.mxu0 0.0
    %1341 = vmatprep.subr.mxu0 0.0
    %1342 = vmatpush1.msra.mxu0 0.0
    %1343 = vmatprep.subr.mxu0 0.0
    %1344 = vmatpush1.msra.mxu0 0.0
    %1345 = vmatprep.subr.mxu0 0.0
    %1346 = vmatpush1.msra.mxu0 0.0
    %1347 = vmatprep.subr.mxu0 0.0
    %1348 = vmatpush1.msra.mxu0 0.0
    %1349 = vmatprep.subr.mxu0 0.0
    %1350 = vmatpush1.msra.mxu0 0.0
    %1351 = vmatprep.subr.mxu0 0.0
    %1352 = vmatpush1.msra.mxu0 0.0
    %1353 = vmatprep.subr.mxu0 0.0
    %1354 = vmatpush1.msra.mxu0 0.0
    %1355 = vmatprep.mubr.f32.mxu0 0.0
    %v1356 = vand.u32 %v69, 4294901760
    %v1357 = vsub.f32 %v69, %v1356
    %v1358 = vand.u32 %v1357, 4294901760
    %1359 = vmatmul.mubr.f32.gmra.mrb[0].mxu0 %v1358
    %v1360 = vpop.f32.mrb[0].mxu0
    %v1361 = vadd.f32 %v1239, %v1360
    %v1362 = vpop.f32.mrb[0].mxu0
    %1363 = vmatprep.mubr.f32.mxu0 0.0
    %v1364 = vand.u32 %v72, 4294901760
    %v1365 = vsub.f32 %v72, %v1364
    %v1366 = vand.u32 %v1365, 4294901760
    %1367 = vmatmul.mubr.f32.gmra.mrb[0].mxu0 %v1366
    %v1368 = vpop.f32.mrb[0].mxu0
    %v1369 = vadd.f32 %v1246, %v1368
    %v1370 = vpop.f32.mrb[0].mxu0
    %1371 = vmatprep.mubr.f32.mxu0 0.0
    %v1372 = vand.u32 %v75, 4294901760
    %v1373 = vsub.f32 %v75, %v1372
    %v1374 = vand.u32 %v1373, 4294901760
    %1375 = vmatmul.mubr.f32.gmra.mrb[0].mxu0 %v1374
    %v1376 = vpop.f32.mrb[0].mxu0
    %v1377 = vadd.f32 %v1253, %v1376
    %v1378 = vpop.f32.mrb[0].mxu0
    %1379 = vmatprep.mubr.f32.mxu0 0.0
    %v1380 = vand.u32 %v78, 4294901760
    %v1381 = vsub.f32 %v78, %v1380
    %v1382 = vand.u32 %v1381, 4294901760
    %1383 = vmatmul.mubr.f32.gmra.mrb[0].mxu0 %v1382
    %v1384 = vpop.f32.mrb[0].mxu0
    %v1385 = vadd.f32 %v1260, %v1384
    %v1386 = vpop.f32.mrb[0].mxu0
    %1387 = vmatprep.mubr.f32.mxu0 0.0
    %v1388 = vand.u32 %v81, 4294901760
    %v1389 = vsub.f32 %v81, %v1388
    %v1390 = vand.u32 %v1389, 4294901760
    %1391 = vmatmul.mubr.f32.gmra.mrb[0].mxu0 %v1390
    %v1392 = vpop.f32.mrb[0].mxu0
    %v1393 = vadd.f32 %v1267, %v1392
    %v1394 = vpop.f32.mrb[0].mxu0
    %1395 = vmatprep.mubr.f32.mxu0 0.0
    %v1396 = vand.u32 %v84, 4294901760
    %v1397 = vsub.f32 %v84, %v1396
    %v1398 = vand.u32 %v1397, 4294901760
    %1399 = vmatmul.mubr.f32.gmra.mrb[0].mxu0 %v1398
    %v1400 = vpop.f32.mrb[0].mxu0
    %v1401 = vadd.f32 %v1274, %v1400
    %v1402 = vpop.f32.mrb[0].mxu0
    %1403 = vmatprep.mubr.f32.mxu0 0.0
    %v1404 = vand.u32 %v87, 4294901760
    %v1405 = vsub.f32 %v87, %v1404
    %v1406 = vand.u32 %v1405, 4294901760
    %1407 = vmatmul.mubr.f32.gmra.mrb[0].mxu0 %v1406
    %v1408 = vpop.f32.mrb[0].mxu0
    %v1409 = vadd.f32 %v1281, %v1408
    %v1410 = vpop.f32.mrb[0].mxu0
    %1411 = vmatprep.mubr.f32.mxu0 0.0
    %v1412 = vand.u32 %v90, 4294901760
    %v1413 = vsub.f32 %v90, %v1412
    %v1414 = vand.u32 %v1413, 4294901760
    %1415 = vmatmul.mubr.f32.gmra.mrb[0].mxu0 %v1414
    %v1416 = vpop.f32.mrb[0].mxu0
    %v1417 = vadd.f32 %v1288, %v1416
    %v1418 = vpop.f32.mrb[0].mxu0
    %1419 = vdwg.mxu0
    %1420 = vmatprep.subr.mxu0 0.0
    %v1421 = vsub.f32 %v55, %v55
    %v1422 = vand.u32 %v1421, 4294901760
    %1423 = vmatpush1.msra.mxu0 %v1422
    %1424 = vmatprep.subr.mxu0 0.0
    %v1425 = vsub.f32 %v58, %v58
    %v1426 = vand.u32 %v1425, 4294901760
    %1427 = vmatpush1.msra.mxu0 %v1426
    %1428 = vmatprep.subr.mxu0 0.0
    %1429 = vmatpush1.msra.mxu0 0.0
    %1430 = vmatprep.subr.mxu0 0.0
    %1431 = vmatpush1.msra.mxu0 0.0
    %1432 = vmatprep.subr.mxu0 0.0
    %1433 = vmatpush1.msra.mxu0 0.0
    %1434 = vmatprep.subr.mxu0 0.0
    %1435 = vmatpush1.msra.mxu0 0.0
    %1436 = vmatprep.subr.mxu0 0.0
    %1437 = vmatpush1.msra.mxu0 0.0
    %1438 = vmatprep.subr.mxu0 0.0
    %1439 = vmatpush1.msra.mxu0 0.0
    %1440 = vmatprep.subr.mxu0 0.0
    %1441 = vmatpush1.msra.mxu0 0.0
    %1442 = vmatprep.subr.mxu0 0.0
    %1443 = vmatpush1.msra.mxu0 0.0
    %1444 = vmatprep.subr.mxu0 0.0
    %1445 = vmatpush1.msra.mxu0 0.0
    %1446 = vmatprep.subr.mxu0 0.0
    %1447 = vmatpush1.msra.mxu0 0.0
    %1448 = vmatprep.subr.mxu0 0.0
    %1449 = vmatpush1.msra.mxu0 0.0
    %1450 = vmatprep.subr.mxu0 0.0
    %1451 = vmatpush1.msra.mxu0 0.0
    %1452 = vmatprep.subr.mxu0 0.0
    %1453 = vmatpush1.msra.mxu0 0.0
    %1454 = vmatprep.subr.mxu0 0.0
    %1455 = vmatpush1.msra.mxu0 0.0
    %1456 = vmatprep.subr.mxu0 0.0
    %1457 = vmatpush1.msra.mxu0 0.0
    %1458 = vmatprep.subr.mxu0 0.0
    %1459 = vmatpush1.msra.mxu0 0.0
    %1460 = vmatprep.subr.mxu0 0.0
    %1461 = vmatpush1.msra.mxu0 0.0
    %1462 = vmatprep.subr.mxu0 0.0
    %1463 = vmatpush1.msra.mxu0 0.0
    %1464 = vmatprep.subr.mxu0 0.0
    %1465 = vmatpush1.msra.mxu0 0.0
    %1466 = vmatprep.subr.mxu0 0.0
    %1467 = vmatpush1.msra.mxu0 0.0
    %1468 = vmatprep.subr.mxu0 0.0
    %1469 = vmatpush1.msra.mxu0 0.0
    %1470 = vmatprep.subr.mxu0 0.0
    %1471 = vmatpush1.msra.mxu0 0.0
    %1472 = vmatprep.subr.mxu0 0.0
    %1473 = vmatpush1.msra.mxu0 0.0
    %1474 = vmatprep.subr.mxu0 0.0
    %1475 = vmatpush1.msra.mxu0 0.0
    %1476 = vmatprep.subr.mxu0 0.0
    %1477 = vmatpush1.msra.mxu0 0.0
    %1478 = vmatprep.subr.mxu0 0.0
    %1479 = vmatpush1.msra.mxu0 0.0
    %1480 = vmatprep.subr.mxu0 0.0
    %1481 = vmatpush1.msra.mxu0 0.0
    %1482 = vmatprep.subr.mxu0 0.0
    %1483 = vmatpush1.msra.mxu0 0.0
    %1484 = vmatprep.subr.mxu0 0.0
    %1485 = vmatpush1.msra.mxu0 0.0
    %1486 = vmatprep.subr.mxu0 0.0
    %1487 = vmatpush1.msra.mxu0 0.0
    %1488 = vmatprep.mubr.f32.mxu0 0.0
    %v1489 = vand.u32 %v69, 4294901760
    %1490 = vmatmul.mubr.f32.gmra.mrb[0].mxu0 %v1489
    %v1491 = vpop.f32.mrb[0].mxu0
    %v1492 = vadd.f32 %v1361, %v1491
    %v1493 = vpop.f32.mrb[0].mxu0
    %1494 = vmatprep.mubr.f32.mxu0 0.0
    %v1495 = vand.u32 %v72, 4294901760
    %1496 = vmatmul.mubr.f32.gmra.mrb[0].mxu0 %v1495
    %v1497 = vpop.f32.mrb[0].mxu0
    %v1498 = vadd.f32 %v1369, %v1497
    %v1499 = vpop.f32.mrb[0].mxu0
    %1500 = vmatprep.mubr.f32.mxu0 0.0
    %v1501 = vand.u32 %v75, 4294901760
    %1502 = vmatmul.mubr.f32.gmra.mrb[0].mxu0 %v1501
    %v1503 = vpop.f32.mrb[0].mxu0
    %v1504 = vadd.f32 %v1377, %v1503
    %v1505 = vpop.f32.mrb[0].mxu0
    %1506 = vmatprep.mubr.f32.mxu0 0.0
    %v1507 = vand.u32 %v78, 4294901760
    %1508 = vmatmul.mubr.f32.gmra.mrb[0].mxu0 %v1507
    %v1509 = vpop.f32.mrb[0].mxu0
    %v1510 = vadd.f32 %v1385, %v1509
    %v1511 = vpop.f32.mrb[0].mxu0
    %1512 = vmatprep.mubr.f32.mxu0 0.0
    %v1513 = vand.u32 %v81, 4294901760
    %1514 = vmatmul.mubr.f32.gmra.mrb[0].mxu0 %v1513
    %v1515 = vpop.f32.mrb[0].mxu0
    %v1516 = vadd.f32 %v1393, %v1515
    %v1517 = vpop.f32.mrb[0].mxu0
    %1518 = vmatprep.mubr.f32.mxu0 0.0
    %v1519 = vand.u32 %v84, 4294901760
    %1520 = vmatmul.mubr.f32.gmra.mrb[0].mxu0 %v1519
    %v1521 = vpop.f32.mrb[0].mxu0
    %v1522 = vadd.f32 %v1401, %v1521
    %v1523 = vpop.f32.mrb[0].mxu0
    %1524 = vmatprep.mubr.f32.mxu0 0.0
    %v1525 = vand.u32 %v87, 4294901760
    %1526 = vmatmul.mubr.f32.gmra.mrb[0].mxu0 %v1525
    %v1527 = vpop.f32.mrb[0].mxu0
    %v1528 = vadd.f32 %v1409, %v1527
    %v1529 = vpop.f32.mrb[0].mxu0
    %1530 = vmatprep.mubr.f32.mxu0 0.0
    %v1531 = vand.u32 %v90, 4294901760
    %1532 = vmatmul.mubr.f32.gmra.mrb[0].mxu0 %v1531
    %v1533 = vpop.f32.mrb[0].mxu0
    %v1534 = vadd.f32 %v1417, %v1533
    %v1535 = vpop.f32.mrb[0].mxu0
    %1536 = vdwg.mxu0
    %1537 = vmatprep.subr.mxu0 0.0
    %1538 = vmatpush1.msra.mxu0 %v55
    %1539 = vmatprep.subr.mxu0 0.0
    %1540 = vmatpush1.msra.mxu0 %v58
    %1541 = vmatprep.subr.mxu0 0.0
    %1542 = vmatpush1.msra.mxu0 0.0
    %1543 = vmatprep.subr.mxu0 0.0
    %1544 = vmatpush1.msra.mxu0 0.0
    %1545 = vmatprep.subr.mxu0 0.0
    %1546 = vmatpush1.msra.mxu0 0.0
    %1547 = vmatprep.subr.mxu0 0.0
    %1548 = vmatpush1.msra.mxu0 0.0
    %1549 = vmatprep.subr.mxu0 0.0
    %1550 = vmatpush1.msra.mxu0 0.0
    %1551 = vmatprep.subr.mxu0 0.0
    %1552 = vmatpush1.msra.mxu0 0.0
    %1553 = vmatprep.subr.mxu0 0.0
    %1554 = vmatpush1.msra.mxu0 0.0
    %1555 = vmatprep.subr.mxu0 0.0
    %1556 = vmatpush1.msra.mxu0 0.0
    %1557 = vmatprep.subr.mxu0 0.0
    %1558 = vmatpush1.msra.mxu0 0.0
    %1559 = vmatprep.subr.mxu0 0.0
    %1560 = vmatpush1.msra.mxu0 0.0
    %1561 = vmatprep.subr.mxu0 0.0
    %1562 = vmatpush1.msra.mxu0 0.0
    %1563 = vmatprep.subr.mxu0 0.0
    %1564 = vmatpush1.msra.mxu0 0.0
    %1565 = vmatprep.subr.mxu0 0.0
    %1566 = vmatpush1.msra.mxu0 0.0
    %1567 = vmatprep.subr.mxu0 0.0
    %1568 = vmatpush1.msra.mxu0 0.0
    %1569 = vmatprep.subr.mxu0 0.0
    %1570 = vmatpush1.msra.mxu0 0.0
    %1571 = vmatprep.subr.mxu0 0.0
    %1572 = vmatpush1.msra.mxu0 0.0
    %1573 = vmatprep.subr.mxu0 0.0
    %1574 = vmatpush1.msra.mxu0 0.0
    %1575 = vmatprep.subr.mxu0 0.0
    %1576 = vmatpush1.msra.mxu0 0.0
    %1577 = vmatprep.subr.mxu0 0.0
    %1578 = vmatpush1.msra.mxu0 0.0
    %1579 = vmatprep.subr.mxu0 0.0
    %1580 = vmatpush1.msra.mxu0 0.0
    %1581 = vmatprep.subr.mxu0 0.0
    %1582 = vmatpush1.msra.mxu0 0.0
    %1583 = vmatprep.subr.mxu0 0.0
    %1584 = vmatpush1.msra.mxu0 0.0
    %1585 = vmatprep.subr.mxu0 0.0
    %1586 = vmatpush1.msra.mxu0 0.0
    %1587 = vmatprep.subr.mxu0 0.0
    %1588 = vmatpush1.msra.mxu0 0.0
    %1589 = vmatprep.subr.mxu0 0.0
    %1590 = vmatpush1.msra.mxu0 0.0
    %1591 = vmatprep.subr.mxu0 0.0
    %1592 = vmatpush1.msra.mxu0 0.0
    %1593 = vmatprep.subr.mxu0 0.0
    %1594 = vmatpush1.msra.mxu0 0.0
    %1595 = vmatprep.subr.mxu0 0.0
    %1596 = vmatpush1.msra.mxu0 0.0
    %1597 = vmatprep.subr.mxu0 0.0
    %1598 = vmatpush1.msra.mxu0 0.0
    %1599 = vmatprep.subr.mxu0 0.0
    %1600 = vmatpush1.msra.mxu0 0.0
    %1601 = vmatprep.mubr.f32.mxu0 0.0
    %v1602 = vand.u32 %v69, 4294901760
    %1603 = vmatmul.mubr.f32.gmra.mrb[0].mxu0 %v1602
    %v1604 = vpop.f32.mrb[0].mxu0
    %v1605 = vadd.f32 %v1492, %v1604
    %v1606 = vpop.f32.mrb[0].mxu0
    %1607 = vmatprep.mubr.f32.mxu0 0.0
    %v1608 = vand.u32 %v72, 4294901760
    %1609 = vmatmul.mubr.f32.gmra.mrb[0].mxu0 %v1608
    %v1610 = vpop.f32.mrb[0].mxu0
    %v1611 = vadd.f32 %v1498, %v1610
    %v1612 = vpop.f32.mrb[0].mxu0
    %1613 = vmatprep.mubr.f32.mxu0 0.0
    %v1614 = vand.u32 %v75, 4294901760
    %1615 = vmatmul.mubr.f32.gmra.mrb[0].mxu0 %v1614
    %v1616 = vpop.f32.mrb[0].mxu0
    %v1617 = vadd.f32 %v1504, %v1616
    %v1618 = vpop.f32.mrb[0].mxu0
    %1619 = vmatprep.mubr.f32.mxu0 0.0
    %v1620 = vand.u32 %v78, 4294901760
    %1621 = vmatmul.mubr.f32.gmra.mrb[0].mxu0 %v1620
    %v1622 = vpop.f32.mrb[0].mxu0
    %v1623 = vadd.f32 %v1510, %v1622
    %v1624 = vpop.f32.mrb[0].mxu0
    %1625 = vmatprep.mubr.f32.mxu0 0.0
    %v1626 = vand.u32 %v81, 4294901760
    %1627 = vmatmul.mubr.f32.gmra.mrb[0].mxu0 %v1626
    %v1628 = vpop.f32.mrb[0].mxu0
    %v1629 = vadd.f32 %v1516, %v1628
    %v1630 = vpop.f32.mrb[0].mxu0
    %1631 = vmatprep.mubr.f32.mxu0 0.0
    %v1632 = vand.u32 %v84, 4294901760
    %1633 = vmatmul.mubr.f32.gmra.mrb[0].mxu0 %v1632
    %v1634 = vpop.f32.mrb[0].mxu0
    %v1635 = vadd.f32 %v1522, %v1634
    %v1636 = vpop.f32.mrb[0].mxu0
    %1637 = vmatprep.mubr.f32.mxu0 0.0
    %v1638 = vand.u32 %v87, 4294901760
    %1639 = vmatmul.mubr.f32.gmra.mrb[0].mxu0 %v1638
    %v1640 = vpop.f32.mrb[0].mxu0
    %v1641 = vadd.f32 %v1528, %v1640
    %v1642 = vpop.f32.mrb[0].mxu0
    %1643 = vmatprep.mubr.f32.mxu0 0.0
    %v1644 = vand.u32 %v90, 4294901760
    %1645 = vmatmul.mubr.f32.gmra.mrb[0].mxu0 %v1644
    %v1646 = vpop.f32.mrb[0].mxu0
    %v1647 = vadd.f32 %v1534, %v1646
    %v1648 = vpop.f32.mrb[0].mxu0
    %1649 = vdwg.mxu0
    %v1650 = vlaneseq
    %v1651 = vshrl.u32 %v1650, 7
    %v1652 = vsub.s32 1, %v1651
    %v1653 = vrot.slane %v18, %v1652
    %v1654 = vlaneseq
    %v1655 = vshrl.u32 %v1654, 7
    %v1656 = vsub.s32 5, %v1655
    %v1657 = vrot.slane %v18, %v1656
    %v1658 = vlaneseq
    %v1659 = vshrl.u32 %v1658, 7
    %v1660 = vsub.s32 1, %v1659
    %v1661 = vrot.slane %v19, %v1660
    %v1662 = vlaneseq
    %v1663 = vshrl.u32 %v1662, 7
    %v1664 = vsub.s32 1, %v1663
    %v1665 = vrot.slane %v1653, %v1664
    %v1666 = vlaneseq
    %v1667 = vshrl.u32 %v1666, 7
    %v1668 = vsub.s32 1, %v1667
    %v1669 = vrot.slane %v1657, %v1668
    %v1670 = vlaneseq
    %v1671 = vshrl.u32 %v1670, 7
    %v1672 = vsub.s32 1, %v1671
    %v1673 = vrot.slane %v1661, %v1672
    %vm1674 = vcmp.eq.s32.totalorder %v21, %v1665
    %vm1675 = vcmp.eq.s32.totalorder %v21, %v1669
    %vm1676 = vcmp.eq.s32.totalorder %v21, %v1673
    %vm1677 = vcmp.eq.s32.totalorder %v22, %v1665
    %vm1678 = vcmp.eq.s32.totalorder %v22, %v1669
    %vm1679 = vcmp.eq.s32.totalorder %v22, %v1673
    %v1680 = vsel %vm1674, 1.0, 0.0
    %v1681 = vsel %vm1675, 1.0, 0.0
    %v1682 = vsel %vm1676, 1.0, 0.0
    %v1683 = vsel %vm1677, 1.0, 0.0
    %v1684 = vsel %vm1678, 1.0, 0.0
    %v1685 = vsel %vm1679, 1.0, 0.0
    %v1686 = vld [vmem:[%s2] sm:$0xff]
    %v1687 = vld [vmem:[%s2 + $0x8] sm:$0xff]
    %v1688 = vld [vmem:[%s2 + $0x10] sm:$0xff]
    %v1689 = vld [vmem:[%s2 + $0x18] sm:$0xff]
    %v1690 = vld [vmem:[%s2 + $0x20] sm:$0xff]
    %v1691 = vld [vmem:[%s2 + $0x28] sm:$0xff]
    %v1692 = vld [vmem:[%s2 + $0x30] sm:$0xff]
    %v1693 = vld [vmem:[%s2 + $0x38] sm:$0xff]
    %v1695 = vsel %vm67, %v1686, 0
    %v1698 = vsel %vm67, %v1687, 0
    %v1701 = vsel %vm67, %v1688, 0
    %v1704 = vsel %vm67, %v1689, 0
    %v1707 = vsel %vm67, %v1690, 0
    %v1710 = vsel %vm67, %v1691, 0
    %v1713 = vsel %vm67, %v1692, 0
    %v1716 = vsel %vm67, %v1693, 0
    %1718 = vmatprep.subr.mxu0 %v1681
    %1719 = vmatpush1.msra.mxu0 %v1680
    %1720 = vmatprep.subr.mxu0 %v1684
    %1721 = vmatpush1.msra.mxu0 %v1683
    %1722 = vmatprep.subr.mxu0 0.0
    %1723 = vmatpush1.msra.mxu0 0.0
    %1724 = vmatprep.subr.mxu0 0.0
    %1725 = vmatpush1.msra.mxu0 0.0
    %1726 = vmatprep.subr.mxu0 0.0
    %1727 = vmatpush1.msra.mxu0 0.0
    %1728 = vmatprep.subr.mxu0 0.0
    %1729 = vmatpush1.msra.mxu0 0.0
    %1730 = vmatprep.subr.mxu0 0.0
    %1731 = vmatpush1.msra.mxu0 0.0
    %1732 = vmatprep.subr.mxu0 0.0
    %1733 = vmatpush1.msra.mxu0 0.0
    %1734 = vmatprep.subr.mxu0 0.0
    %1735 = vmatpush1.msra.mxu0 0.0
    %1736 = vmatprep.subr.mxu0 0.0
    %1737 = vmatpush1.msra.mxu0 0.0
    %1738 = vmatprep.subr.mxu0 0.0
    %1739 = vmatpush1.msra.mxu0 0.0
    %1740 = vmatprep.subr.mxu0 0.0
    %1741 = vmatpush1.msra.mxu0 0.0
    %1742 = vmatprep.subr.mxu0 0.0
    %1743 = vmatpush1.msra.mxu0 0.0
    %1744 = vmatprep.subr.mxu0 0.0
    %1745 = vmatpush1.msra.mxu0 0.0
    %1746 = vmatprep.subr.mxu0 0.0
    %1747 = vmatpush1.msra.mxu0 0.0
    %1748 = vmatprep.subr.mxu0 0.0
    %1749 = vmatpush1.msra.mxu0 0.0
    %1750 = vmatprep.subr.mxu0 0.0
    %1751 = vmatpush1.msra.mxu0 0.0
    %1752 = vmatprep.subr.mxu0 0.0
    %1753 = vmatpush1.msra.mxu0 0.0
    %1754 = vmatprep.subr.mxu0 0.0
    %1755 = vmatpush1.msra.mxu0 0.0
    %1756 = vmatprep.subr.mxu0 0.0
    %1757 = vmatpush1.msra.mxu0 0.0
    %1758 = vmatprep.subr.mxu0 0.0
    %1759 = vmatpush1.msra.mxu0 0.0
    %1760 = vmatprep.subr.mxu0 0.0
    %1761 = vmatpush1.msra.mxu0 0.0
    %1762 = vmatprep.subr.mxu0 0.0
    %1763 = vmatpush1.msra.mxu0 0.0
    %1764 = vmatprep.subr.mxu0 0.0
    %1765 = vmatpush1.msra.mxu0 0.0
    %1766 = vmatprep.subr.mxu0 0.0
    %1767 = vmatpush1.msra.mxu0 0.0
    %1768 = vmatprep.subr.mxu0 0.0
    %1769 = vmatpush1.msra.mxu0 0.0
    %1770 = vmatprep.subr.mxu0 0.0
    %1771 = vmatpush1.msra.mxu0 0.0
    %1772 = vmatprep.subr.mxu0 0.0
    %1773 = vmatpush1.msra.mxu0 0.0
    %1774 = vmatprep.subr.mxu0 0.0
    %1775 = vmatpush1.msra.mxu0 0.0
    %1776 = vmatprep.subr.mxu0 0.0
    %1777 = vmatpush1.msra.mxu0 0.0
    %1778 = vmatprep.subr.mxu0 0.0
    %1779 = vmatpush1.msra.mxu0 0.0
    %1780 = vmatprep.subr.mxu0 0.0
    %1781 = vmatpush1.msra.mxu0 0.0
    %1782 = vmatprep.mubr.f32.mxu0 0.0
    %v1783 = vand.u32 %v1695, 4294901760
    %v1784 = vsub.f32 %v1695, %v1783
    %v1785 = vand.u32 %v1784, 4294901760
    %v1786 = vsub.f32 %v1784, %v1785
    %v1787 = vand.u32 %v1786, 4294901760
    %1788 = vmatmul.mubr.f32.gmra.mrb[0].mxu0 %v1787
    %v1789 = vpop.f32.mrb[0].mxu0
    %v1790 = vadd.f32 0.0, %v1789
    %v1791 = vpop.f32.mrb[0].mxu0
    %v1792 = vadd.f32 0.0, %v1791
    %1793 = vmatprep.mubr.f32.mxu0 0.0
    %v1794 = vand.u32 %v1698, 4294901760
    %v1795 = vsub.f32 %v1698, %v1794
    %v1796 = vand.u32 %v1795, 4294901760
    %v1797 = vsub.f32 %v1795, %v1796
    %v1798 = vand.u32 %v1797, 4294901760
    %1799 = vmatmul.mubr.f32.gmra.mrb[0].mxu0 %v1798
    %v1800 = vpop.f32.mrb[0].mxu0
    %v1801 = vadd.f32 0.0, %v1800
    %v1802 = vpop.f32.mrb[0].mxu0
    %v1803 = vadd.f32 0.0, %v1802
    %1804 = vmatprep.mubr.f32.mxu0 0.0
    %v1805 = vand.u32 %v1701, 4294901760
    %v1806 = vsub.f32 %v1701, %v1805
    %v1807 = vand.u32 %v1806, 4294901760
    %v1808 = vsub.f32 %v1806, %v1807
    %v1809 = vand.u32 %v1808, 4294901760
    %1810 = vmatmul.mubr.f32.gmra.mrb[0].mxu0 %v1809
    %v1811 = vpop.f32.mrb[0].mxu0
    %v1812 = vadd.f32 0.0, %v1811
    %v1813 = vpop.f32.mrb[0].mxu0
    %v1814 = vadd.f32 0.0, %v1813
    %1815 = vmatprep.mubr.f32.mxu0 0.0
    %v1816 = vand.u32 %v1704, 4294901760
    %v1817 = vsub.f32 %v1704, %v1816
    %v1818 = vand.u32 %v1817, 4294901760
    %v1819 = vsub.f32 %v1817, %v1818
    %v1820 = vand.u32 %v1819, 4294901760
    %1821 = vmatmul.mubr.f32.gmra.mrb[0].mxu0 %v1820
    %v1822 = vpop.f32.mrb[0].mxu0
    %v1823 = vadd.f32 0.0, %v1822
    %v1824 = vpop.f32.mrb[0].mxu0
    %v1825 = vadd.f32 0.0, %v1824
    %1826 = vmatprep.mubr.f32.mxu0 0.0
    %v1827 = vand.u32 %v1707, 4294901760
    %v1828 = vsub.f32 %v1707, %v1827
    %v1829 = vand.u32 %v1828, 4294901760
    %v1830 = vsub.f32 %v1828, %v1829
    %v1831 = vand.u32 %v1830, 4294901760
    %1832 = vmatmul.mubr.f32.gmra.mrb[0].mxu0 %v1831
    %v1833 = vpop.f32.mrb[0].mxu0
    %v1834 = vadd.f32 0.0, %v1833
    %v1835 = vpop.f32.mrb[0].mxu0
    %v1836 = vadd.f32 0.0, %v1835
    %1837 = vmatprep.mubr.f32.mxu0 0.0
    %v1838 = vand.u32 %v1710, 4294901760
    %v1839 = vsub.f32 %v1710, %v1838
    %v1840 = vand.u32 %v1839, 4294901760
    %v1841 = vsub.f32 %v1839, %v1840
    %v1842 = vand.u32 %v1841, 4294901760
    %1843 = vmatmul.mubr.f32.gmra.mrb[0].mxu0 %v1842
    %v1844 = vpop.f32.mrb[0].mxu0
    %v1845 = vadd.f32 0.0, %v1844
    %v1846 = vpop.f32.mrb[0].mxu0
    %v1847 = vadd.f32 0.0, %v1846
    %1848 = vmatprep.mubr.f32.mxu0 0.0
    %v1849 = vand.u32 %v1713, 4294901760
    %v1850 = vsub.f32 %v1713, %v1849
    %v1851 = vand.u32 %v1850, 4294901760
    %v1852 = vsub.f32 %v1850, %v1851
    %v1853 = vand.u32 %v1852, 4294901760
    %1854 = vmatmul.mubr.f32.gmra.mrb[0].mxu0 %v1853
    %v1855 = vpop.f32.mrb[0].mxu0
    %v1856 = vadd.f32 0.0, %v1855
    %v1857 = vpop.f32.mrb[0].mxu0
    %v1858 = vadd.f32 0.0, %v1857
    %1859 = vmatprep.mubr.f32.mxu0 0.0
    %v1860 = vand.u32 %v1716, 4294901760
    %v1861 = vsub.f32 %v1716, %v1860
    %v1862 = vand.u32 %v1861, 4294901760
    %v1863 = vsub.f32 %v1861, %v1862
    %v1864 = vand.u32 %v1863, 4294901760
    %1865 = vmatmul.mubr.f32.gmra.mrb[0].mxu0 %v1864
    %v1866 = vpop.f32.mrb[0].mxu0
    %v1867 = vadd.f32 0.0, %v1866
    %v1868 = vpop.f32.mrb[0].mxu0
    %v1869 = vadd.f32 0.0, %v1868
    %1870 = vdwg.mxu0
    %v1871 = vsub.f32 %v1681, %v1681
    %v1872 = vand.u32 %v1871, 4294901760
    %v1873 = vsub.f32 %v1871, %v1872
    %v1874 = vand.u32 %v1873, 4294901760
    %1875 = vmatprep.subr.mxu0 %v1874
    %v1876 = vsub.f32 %v1680, %v1680
    %v1877 = vand.u32 %v1876, 4294901760
    %v1878 = vsub.f32 %v1876, %v1877
    %v1879 = vand.u32 %v1878, 4294901760
    %1880 = vmatpush1.msra.mxu0 %v1879
    %v1881 = vsub.f32 %v1684, %v1684
    %v1882 = vand.u32 %v1881, 4294901760
    %v1883 = vsub.f32 %v1881, %v1882
    %v1884 = vand.u32 %v1883, 4294901760
    %1885 = vmatprep.subr.mxu0 %v1884
    %v1886 = vsub.f32 %v1683, %v1683
    %v1887 = vand.u32 %v1886, 4294901760
    %v1888 = vsub.f32 %v1886, %v1887
    %v1889 = vand.u32 %v1888, 4294901760
    %1890 = vmatpush1.msra.mxu0 %v1889
    %1891 = vmatprep.subr.mxu0 0.0
    %1892 = vmatpush1.msra.mxu0 0.0
    %1893 = vmatprep.subr.mxu0 0.0
    %1894 = vmatpush1.msra.mxu0 0.0
    %1895 = vmatprep.subr.mxu0 0.0
    %1896 = vmatpush1.msra.mxu0 0.0
    %1897 = vmatprep.subr.mxu0 0.0
    %1898 = vmatpush1.msra.mxu0 0.0
    %1899 = vmatprep.subr.mxu0 0.0
    %1900 = vmatpush1.msra.mxu0 0.0
    %1901 = vmatprep.subr.mxu0 0.0
    %1902 = vmatpush1.msra.mxu0 0.0
    %1903 = vmatprep.subr.mxu0 0.0
    %1904 = vmatpush1.msra.mxu0 0.0
    %1905 = vmatprep.subr.mxu0 0.0
    %1906 = vmatpush1.msra.mxu0 0.0
    %1907 = vmatprep.subr.mxu0 0.0
    %1908 = vmatpush1.msra.mxu0 0.0
    %1909 = vmatprep.subr.mxu0 0.0
    %1910 = vmatpush1.msra.mxu0 0.0
    %1911 = vmatprep.subr.mxu0 0.0
    %1912 = vmatpush1.msra.mxu0 0.0
    %1913 = vmatprep.subr.mxu0 0.0
    %1914 = vmatpush1.msra.mxu0 0.0
    %1915 = vmatprep.subr.mxu0 0.0
    %1916 = vmatpush1.msra.mxu0 0.0
    %1917 = vmatprep.subr.mxu0 0.0
    %1918 = vmatpush1.msra.mxu0 0.0
    %1919 = vmatprep.subr.mxu0 0.0
    %1920 = vmatpush1.msra.mxu0 0.0
    %1921 = vmatprep.subr.mxu0 0.0
    %1922 = vmatpush1.msra.mxu0 0.0
    %1923 = vmatprep.subr.mxu0 0.0
    %1924 = vmatpush1.msra.mxu0 0.0
    %1925 = vmatprep.subr.mxu0 0.0
    %1926 = vmatpush1.msra.mxu0 0.0
    %1927 = vmatprep.subr.mxu0 0.0
    %1928 = vmatpush1.msra.mxu0 0.0
    %1929 = vmatprep.subr.mxu0 0.0
    %1930 = vmatpush1.msra.mxu0 0.0
    %1931 = vmatprep.subr.mxu0 0.0
    %1932 = vmatpush1.msra.mxu0 0.0
    %1933 = vmatprep.subr.mxu0 0.0
    %1934 = vmatpush1.msra.mxu0 0.0
    %1935 = vmatprep.subr.mxu0 0.0
    %1936 = vmatpush1.msra.mxu0 0.0
    %1937 = vmatprep.subr.mxu0 0.0
    %1938 = vmatpush1.msra.mxu0 0.0
    %1939 = vmatprep.subr.mxu0 0.0
    %1940 = vmatpush1.msra.mxu0 0.0
    %1941 = vmatprep.subr.mxu0 0.0
    %1942 = vmatpush1.msra.mxu0 0.0
    %1943 = vmatprep.subr.mxu0 0.0
    %1944 = vmatpush1.msra.mxu0 0.0
    %1945 = vmatprep.subr.mxu0 0.0
    %1946 = vmatpush1.msra.mxu0 0.0
    %1947 = vmatprep.subr.mxu0 0.0
    %1948 = vmatpush1.msra.mxu0 0.0
    %1949 = vmatprep.subr.mxu0 0.0
    %1950 = vmatpush1.msra.mxu0 0.0
    %1951 = vmatprep.mubr.f32.mxu0 0.0
    %v1952 = vand.u32 %v1695, 4294901760
    %1953 = vmatmul.mubr.f32.gmra.mrb[0].mxu0 %v1952
    %v1954 = vpop.f32.mrb[0].mxu0
    %v1955 = vadd.f32 %v1790, %v1954
    %v1956 = vpop.f32.mrb[0].mxu0
    %v1957 = vadd.f32 %v1792, %v1956
    %1958 = vmatprep.mubr.f32.mxu0 0.0
    %v1959 = vand.u32 %v1698, 4294901760
    %1960 = vmatmul.mubr.f32.gmra.mrb[0].mxu0 %v1959
    %v1961 = vpop.f32.mrb[0].mxu0
    %v1962 = vadd.f32 %v1801, %v1961
    %v1963 = vpop.f32.mrb[0].mxu0
    %v1964 = vadd.f32 %v1803, %v1963
    %1965 = vmatprep.mubr.f32.mxu0 0.0
    %v1966 = vand.u32 %v1701, 4294901760
    %1967 = vmatmul.mubr.f32.gmra.mrb[0].mxu0 %v1966
    %v1968 = vpop.f32.mrb[0].mxu0
    %v1969 = vadd.f32 %v1812, %v1968
    %v1970 = vpop.f32.mrb[0].mxu0
    %v1971 = vadd.f32 %v1814, %v1970
    %1972 = vmatprep.mubr.f32.mxu0 0.0
    %v1973 = vand.u32 %v1704, 4294901760
    %1974 = vmatmul.mubr.f32.gmra.mrb[0].mxu0 %v1973
    %v1975 = vpop.f32.mrb[0].mxu0
    %v1976 = vadd.f32 %v1823, %v1975
    %v1977 = vpop.f32.mrb[0].mxu0
    %v1978 = vadd.f32 %v1825, %v1977
    %1979 = vmatprep.mubr.f32.mxu0 0.0
    %v1980 = vand.u32 %v1707, 4294901760
    %1981 = vmatmul.mubr.f32.gmra.mrb[0].mxu0 %v1980
    %v1982 = vpop.f32.mrb[0].mxu0
    %v1983 = vadd.f32 %v1834, %v1982
    %v1984 = vpop.f32.mrb[0].mxu0
    %v1985 = vadd.f32 %v1836, %v1984
    %1986 = vmatprep.mubr.f32.mxu0 0.0
    %v1987 = vand.u32 %v1710, 4294901760
    %1988 = vmatmul.mubr.f32.gmra.mrb[0].mxu0 %v1987
    %v1989 = vpop.f32.mrb[0].mxu0
    %v1990 = vadd.f32 %v1845, %v1989
    %v1991 = vpop.f32.mrb[0].mxu0
    %v1992 = vadd.f32 %v1847, %v1991
    %1993 = vmatprep.mubr.f32.mxu0 0.0
    %v1994 = vand.u32 %v1713, 4294901760
    %1995 = vmatmul.mubr.f32.gmra.mrb[0].mxu0 %v1994
    %v1996 = vpop.f32.mrb[0].mxu0
    %v1997 = vadd.f32 %v1856, %v1996
    %v1998 = vpop.f32.mrb[0].mxu0
    %v1999 = vadd.f32 %v1858, %v1998
    %2000 = vmatprep.mubr.f32.mxu0 0.0
    %v2001 = vand.u32 %v1716, 4294901760
    %2002 = vmatmul.mubr.f32.gmra.mrb[0].mxu0 %v2001
    %v2003 = vpop.f32.mrb[0].mxu0
    %v2004 = vadd.f32 %v1867, %v2003
    %v2005 = vpop.f32.mrb[0].mxu0
    %v2006 = vadd.f32 %v1869, %v2005
    %2007 = vdwg.mxu0
    %v2008 = vsub.f32 %v1681, %v1681
    %2009 = vmatprep.subr.mxu0 %v2008
    %v2010 = vsub.f32 %v1680, %v1680
    %2011 = vmatpush1.msra.mxu0 %v2010
    %v2012 = vsub.f32 %v1684, %v1684
    %2013 = vmatprep.subr.mxu0 %v2012
    %v2014 = vsub.f32 %v1683, %v1683
    %2015 = vmatpush1.msra.mxu0 %v2014
    %2016 = vmatprep.subr.mxu0 0.0
    %2017 = vmatpush1.msra.mxu0 0.0
    %2018 = vmatprep.subr.mxu0 0.0
    %2019 = vmatpush1.msra.mxu0 0.0
    %2020 = vmatprep.subr.mxu0 0.0
    %2021 = vmatpush1.msra.mxu0 0.0
    %2022 = vmatprep.subr.mxu0 0.0
    %2023 = vmatpush1.msra.mxu0 0.0
    %2024 = vmatprep.subr.mxu0 0.0
    %2025 = vmatpush1.msra.mxu0 0.0
    %2026 = vmatprep.subr.mxu0 0.0
    %2027 = vmatpush1.msra.mxu0 0.0
    %2028 = vmatprep.subr.mxu0 0.0
    %2029 = vmatpush1.msra.mxu0 0.0
    %2030 = vmatprep.subr.mxu0 0.0
    %2031 = vmatpush1.msra.mxu0 0.0
    %2032 = vmatprep.subr.mxu0 0.0
    %2033 = vmatpush1.msra.mxu0 0.0
    %2034 = vmatprep.subr.mxu0 0.0
    %2035 = vmatpush1.msra.mxu0 0.0
    %2036 = vmatprep.subr.mxu0 0.0
    %2037 = vmatpush1.msra.mxu0 0.0
    %2038 = vmatprep.subr.mxu0 0.0
    %2039 = vmatpush1.msra.mxu0 0.0
    %2040 = vmatprep.subr.mxu0 0.0
    %2041 = vmatpush1.msra.mxu0 0.0
    %2042 = vmatprep.subr.mxu0 0.0
    %2043 = vmatpush1.msra.mxu0 0.0
    %2044 = vmatprep.subr.mxu0 0.0
    %2045 = vmatpush1.msra.mxu0 0.0
    %2046 = vmatprep.subr.mxu0 0.0
    %2047 = vmatpush1.msra.mxu0 0.0
    %2048 = vmatprep.subr.mxu0 0.0
    %2049 = vmatpush1.msra.mxu0 0.0
    %2050 = vmatprep.subr.mxu0 0.0
    %2051 = vmatpush1.msra.mxu0 0.0
    %2052 = vmatprep.subr.mxu0 0.0
    %2053 = vmatpush1.msra.mxu0 0.0
    %2054 = vmatprep.subr.mxu0 0.0
    %2055 = vmatpush1.msra.mxu0 0.0
    %2056 = vmatprep.subr.mxu0 0.0
    %2057 = vmatpush1.msra.mxu0 0.0
    %2058 = vmatprep.subr.mxu0 0.0
    %2059 = vmatpush1.msra.mxu0 0.0
    %2060 = vmatprep.subr.mxu0 0.0
    %2061 = vmatpush1.msra.mxu0 0.0
    %2062 = vmatprep.subr.mxu0 0.0
    %2063 = vmatpush1.msra.mxu0 0.0
    %2064 = vmatprep.subr.mxu0 0.0
    %2065 = vmatpush1.msra.mxu0 0.0
    %2066 = vmatprep.subr.mxu0 0.0
    %2067 = vmatpush1.msra.mxu0 0.0
    %2068 = vmatprep.subr.mxu0 0.0
    %2069 = vmatpush1.msra.mxu0 0.0
    %2070 = vmatprep.subr.mxu0 0.0
    %2071 = vmatpush1.msra.mxu0 0.0
    %2072 = vmatprep.subr.mxu0 0.0
    %2073 = vmatpush1.msra.mxu0 0.0
    %2074 = vmatprep.subr.mxu0 0.0
    %2075 = vmatpush1.msra.mxu0 0.0
    %2076 = vmatprep.mubr.f32.mxu0 0.0
    %v2077 = vand.u32 %v1695, 4294901760
    %v2078 = vsub.f32 %v1695, %v2077
    %2079 = vmatmul.mubr.f32.gmra.mrb[0].mxu0 %v2078
    %v2080 = vpop.f32.mrb[0].mxu0
    %v2081 = vadd.f32 %v1955, %v2080
    %v2082 = vpop.f32.mrb[0].mxu0
    %v2083 = vadd.f32 %v1957, %v2082
    %2084 = vmatprep.mubr.f32.mxu0 0.0
    %v2085 = vand.u32 %v1698, 4294901760
    %v2086 = vsub.f32 %v1698, %v2085
    %2087 = vmatmul.mubr.f32.gmra.mrb[0].mxu0 %v2086
    %v2088 = vpop.f32.mrb[0].mxu0
    %v2089 = vadd.f32 %v1962, %v2088
    %v2090 = vpop.f32.mrb[0].mxu0
    %v2091 = vadd.f32 %v1964, %v2090
    %2092 = vmatprep.mubr.f32.mxu0 0.0
    %v2093 = vand.u32 %v1701, 4294901760
    %v2094 = vsub.f32 %v1701, %v2093
    %2095 = vmatmul.mubr.f32.gmra.mrb[0].mxu0 %v2094
    %v2096 = vpop.f32.mrb[0].mxu0
    %v2097 = vadd.f32 %v1969, %v2096
    %v2098 = vpop.f32.mrb[0].mxu0
    %v2099 = vadd.f32 %v1971, %v2098
    %2100 = vmatprep.mubr.f32.mxu0 0.0
    %v2101 = vand.u32 %v1704, 4294901760
    %v2102 = vsub.f32 %v1704, %v2101
    %2103 = vmatmul.mubr.f32.gmra.mrb[0].mxu0 %v2102
    %v2104 = vpop.f32.mrb[0].mxu0
    %v2105 = vadd.f32 %v1976, %v2104
    %v2106 = vpop.f32.mrb[0].mxu0
    %v2107 = vadd.f32 %v1978, %v2106
    %2108 = vmatprep.mubr.f32.mxu0 0.0
    %v2109 = vand.u32 %v1707, 4294901760
    %v2110 = vsub.f32 %v1707, %v2109
    %2111 = vmatmul.mubr.f32.gmra.mrb[0].mxu0 %v2110
    %v2112 = vpop.f32.mrb[0].mxu0
    %v2113 = vadd.f32 %v1983, %v2112
    %v2114 = vpop.f32.mrb[0].mxu0
    %v2115 = vadd.f32 %v1985, %v2114
    %2116 = vmatprep.mubr.f32.mxu0 0.0
    %v2117 = vand.u32 %v1710, 4294901760
    %v2118 = vsub.f32 %v1710, %v2117
    %2119 = vmatmul.mubr.f32.gmra.mrb[0].mxu0 %v2118
    %v2120 = vpop.f32.mrb[0].mxu0
    %v2121 = vadd.f32 %v1990, %v2120
    %v2122 = vpop.f32.mrb[0].mxu0
    %v2123 = vadd.f32 %v1992, %v2122
    %2124 = vmatprep.mubr.f32.mxu0 0.0
    %v2125 = vand.u32 %v1713, 4294901760
    %v2126 = vsub.f32 %v1713, %v2125
    %2127 = vmatmul.mubr.f32.gmra.mrb[0].mxu0 %v2126
    %v2128 = vpop.f32.mrb[0].mxu0
    %v2129 = vadd.f32 %v1997, %v2128
    %v2130 = vpop.f32.mrb[0].mxu0
    %v2131 = vadd.f32 %v1999, %v2130
    %2132 = vmatprep.mubr.f32.mxu0 0.0
    %v2133 = vand.u32 %v1716, 4294901760
    %v2134 = vsub.f32 %v1716, %v2133
    %2135 = vmatmul.mubr.f32.gmra.mrb[0].mxu0 %v2134
    %v2136 = vpop.f32.mrb[0].mxu0
    %v2137 = vadd.f32 %v2004, %v2136
    %v2138 = vpop.f32.mrb[0].mxu0
    %v2139 = vadd.f32 %v2006, %v2138
    %2140 = vdwg.mxu0
    %2141 = vmatprep.subr.mxu0 %v1681
    %2142 = vmatpush1.msra.mxu0 %v1680
    %2143 = vmatprep.subr.mxu0 %v1684
    %2144 = vmatpush1.msra.mxu0 %v1683
    %2145 = vmatprep.subr.mxu0 0.0
    %2146 = vmatpush1.msra.mxu0 0.0
    %2147 = vmatprep.subr.mxu0 0.0
    %2148 = vmatpush1.msra.mxu0 0.0
    %2149 = vmatprep.subr.mxu0 0.0
    %2150 = vmatpush1.msra.mxu0 0.0
    %2151 = vmatprep.subr.mxu0 0.0
    %2152 = vmatpush1.msra.mxu0 0.0
    %2153 = vmatprep.subr.mxu0 0.0
    %2154 = vmatpush1.msra.mxu0 0.0
    %2155 = vmatprep.subr.mxu0 0.0
    %2156 = vmatpush1.msra.mxu0 0.0
    %2157 = vmatprep.subr.mxu0 0.0
    %2158 = vmatpush1.msra.mxu0 0.0
    %2159 = vmatprep.subr.mxu0 0.0
    %2160 = vmatpush1.msra.mxu0 0.0
    %2161 = vmatprep.subr.mxu0 0.0
    %2162 = vmatpush1.msra.mxu0 0.0
    %2163 = vmatprep.subr.mxu0 0.0
    %2164 = vmatpush1.msra.mxu0 0.0
    %2165 = vmatprep.subr.mxu0 0.0
    %2166 = vmatpush1.msra.mxu0 0.0
    %2167 = vmatprep.subr.mxu0 0.0
    %2168 = vmatpush1.msra.mxu0 0.0
    %2169 = vmatprep.subr.mxu0 0.0
    %2170 = vmatpush1.msra.mxu0 0.0
    %2171 = vmatprep.subr.mxu0 0.0
    %2172 = vmatpush1.msra.mxu0 0.0
    %2173 = vmatprep.subr.mxu0 0.0
    %2174 = vmatpush1.msra.mxu0 0.0
    %2175 = vmatprep.subr.mxu0 0.0
    %2176 = vmatpush1.msra.mxu0 0.0
    %2177 = vmatprep.subr.mxu0 0.0
    %2178 = vmatpush1.msra.mxu0 0.0
    %2179 = vmatprep.subr.mxu0 0.0
    %2180 = vmatpush1.msra.mxu0 0.0
    %2181 = vmatprep.subr.mxu0 0.0
    %2182 = vmatpush1.msra.mxu0 0.0
    %2183 = vmatprep.subr.mxu0 0.0
    %2184 = vmatpush1.msra.mxu0 0.0
    %2185 = vmatprep.subr.mxu0 0.0
    %2186 = vmatpush1.msra.mxu0 0.0
    %2187 = vmatprep.subr.mxu0 0.0
    %2188 = vmatpush1.msra.mxu0 0.0
    %2189 = vmatprep.subr.mxu0 0.0
    %2190 = vmatpush1.msra.mxu0 0.0
    %2191 = vmatprep.subr.mxu0 0.0
    %2192 = vmatpush1.msra.mxu0 0.0
    %2193 = vmatprep.subr.mxu0 0.0
    %2194 = vmatpush1.msra.mxu0 0.0
    %2195 = vmatprep.subr.mxu0 0.0
    %2196 = vmatpush1.msra.mxu0 0.0
    %2197 = vmatprep.subr.mxu0 0.0
    %2198 = vmatpush1.msra.mxu0 0.0
    %2199 = vmatprep.subr.mxu0 0.0
    %2200 = vmatpush1.msra.mxu0 0.0
    %2201 = vmatprep.subr.mxu0 0.0
    %2202 = vmatpush1.msra.mxu0 0.0
    %2203 = vmatprep.subr.mxu0 0.0
    %2204 = vmatpush1.msra.mxu0 0.0
    %2205 = vmatprep.mubr.f32.mxu0 0.0
    %v2206 = vand.u32 %v1695, 4294901760
    %v2207 = vsub.f32 %v1695, %v2206
    %v2208 = vand.u32 %v2207, 4294901760
    %2209 = vmatmul.mubr.f32.gmra.mrb[0].mxu0 %v2208
    %v2210 = vpop.f32.mrb[0].mxu0
    %v2211 = vadd.f32 %v2081, %v2210
    %v2212 = vpop.f32.mrb[0].mxu0
    %v2213 = vadd.f32 %v2083, %v2212
    %2214 = vmatprep.mubr.f32.mxu0 0.0
    %v2215 = vand.u32 %v1698, 4294901760
    %v2216 = vsub.f32 %v1698, %v2215
    %v2217 = vand.u32 %v2216, 4294901760
    %2218 = vmatmul.mubr.f32.gmra.mrb[0].mxu0 %v2217
    %v2219 = vpop.f32.mrb[0].mxu0
    %v2220 = vadd.f32 %v2089, %v2219
    %v2221 = vpop.f32.mrb[0].mxu0
    %v2222 = vadd.f32 %v2091, %v2221
    %2223 = vmatprep.mubr.f32.mxu0 0.0
    %v2224 = vand.u32 %v1701, 4294901760
    %v2225 = vsub.f32 %v1701, %v2224
    %v2226 = vand.u32 %v2225, 4294901760
    %2227 = vmatmul.mubr.f32.gmra.mrb[0].mxu0 %v2226
    %v2228 = vpop.f32.mrb[0].mxu0
    %v2229 = vadd.f32 %v2097, %v2228
    %v2230 = vpop.f32.mrb[0].mxu0
    %v2231 = vadd.f32 %v2099, %v2230
    %2232 = vmatprep.mubr.f32.mxu0 0.0
    %v2233 = vand.u32 %v1704, 4294901760
    %v2234 = vsub.f32 %v1704, %v2233
    %v2235 = vand.u32 %v2234, 4294901760
    %2236 = vmatmul.mubr.f32.gmra.mrb[0].mxu0 %v2235
    %v2237 = vpop.f32.mrb[0].mxu0
    %v2238 = vadd.f32 %v2105, %v2237
    %v2239 = vpop.f32.mrb[0].mxu0
    %v2240 = vadd.f32 %v2107, %v2239
    %2241 = vmatprep.mubr.f32.mxu0 0.0
    %v2242 = vand.u32 %v1707, 4294901760
    %v2243 = vsub.f32 %v1707, %v2242
    %v2244 = vand.u32 %v2243, 4294901760
    %2245 = vmatmul.mubr.f32.gmra.mrb[0].mxu0 %v2244
    %v2246 = vpop.f32.mrb[0].mxu0
    %v2247 = vadd.f32 %v2113, %v2246
    %v2248 = vpop.f32.mrb[0].mxu0
    %v2249 = vadd.f32 %v2115, %v2248
    %2250 = vmatprep.mubr.f32.mxu0 0.0
    %v2251 = vand.u32 %v1710, 4294901760
    %v2252 = vsub.f32 %v1710, %v2251
    %v2253 = vand.u32 %v2252, 4294901760
    %2254 = vmatmul.mubr.f32.gmra.mrb[0].mxu0 %v2253
    %v2255 = vpop.f32.mrb[0].mxu0
    %v2256 = vadd.f32 %v2121, %v2255
    %v2257 = vpop.f32.mrb[0].mxu0
    %v2258 = vadd.f32 %v2123, %v2257
    %2259 = vmatprep.mubr.f32.mxu0 0.0
    %v2260 = vand.u32 %v1713, 4294901760
    %v2261 = vsub.f32 %v1713, %v2260
    %v2262 = vand.u32 %v2261, 4294901760
    %2263 = vmatmul.mubr.f32.gmra.mrb[0].mxu0 %v2262
    %v2264 = vpop.f32.mrb[0].mxu0
    %v2265 = vadd.f32 %v2129, %v2264
    %v2266 = vpop.f32.mrb[0].mxu0
    %v2267 = vadd.f32 %v2131, %v2266
    %2268 = vmatprep.mubr.f32.mxu0 0.0
    %v2269 = vand.u32 %v1716, 4294901760
    %v2270 = vsub.f32 %v1716, %v2269
    %v2271 = vand.u32 %v2270, 4294901760
    %2272 = vmatmul.mubr.f32.gmra.mrb[0].mxu0 %v2271
    %v2273 = vpop.f32.mrb[0].mxu0
    %v2274 = vadd.f32 %v2137, %v2273
    %v2275 = vpop.f32.mrb[0].mxu0
    %v2276 = vadd.f32 %v2139, %v2275
    %2277 = vdwg.mxu0
    %v2278 = vsub.f32 %v1681, %v1681
    %v2279 = vand.u32 %v2278, 4294901760
    %2280 = vmatprep.subr.mxu0 %v2279
    %v2281 = vsub.f32 %v1680, %v1680
    %v2282 = vand.u32 %v2281, 4294901760
    %2283 = vmatpush1.msra.mxu0 %v2282
    %v2284 = vsub.f32 %v1684, %v1684
    %v2285 = vand.u32 %v2284, 4294901760
    %2286 = vmatprep.subr.mxu0 %v2285
    %v2287 = vsub.f32 %v1683, %v1683
    %v2288 = vand.u32 %v2287, 4294901760
    %2289 = vmatpush1.msra.mxu0 %v2288
    %2290 = vmatprep.subr.mxu0 0.0
    %2291 = vmatpush1.msra.mxu0 0.0
    %2292 = vmatprep.subr.mxu0 0.0
    %2293 = vmatpush1.msra.mxu0 0.0
    %2294 = vmatprep.subr.mxu0 0.0
    %2295 = vmatpush1.msra.mxu0 0.0
    %2296 = vmatprep.subr.mxu0 0.0
    %2297 = vmatpush1.msra.mxu0 0.0
    %2298 = vmatprep.subr.mxu0 0.0
    %2299 = vmatpush1.msra.mxu0 0.0
    %2300 = vmatprep.subr.mxu0 0.0
    %2301 = vmatpush1.msra.mxu0 0.0
    %2302 = vmatprep.subr.mxu0 0.0
    %2303 = vmatpush1.msra.mxu0 0.0
    %2304 = vmatprep.subr.mxu0 0.0
    %2305 = vmatpush1.msra.mxu0 0.0
    %2306 = vmatprep.subr.mxu0 0.0
    %2307 = vmatpush1.msra.mxu0 0.0
    %2308 = vmatprep.subr.mxu0 0.0
    %2309 = vmatpush1.msra.mxu0 0.0
    %2310 = vmatprep.subr.mxu0 0.0
    %2311 = vmatpush1.msra.mxu0 0.0
    %2312 = vmatprep.subr.mxu0 0.0
    %2313 = vmatpush1.msra.mxu0 0.0
    %2314 = vmatprep.subr.mxu0 0.0
    %2315 = vmatpush1.msra.mxu0 0.0
    %2316 = vmatprep.subr.mxu0 0.0
    %2317 = vmatpush1.msra.mxu0 0.0
    %2318 = vmatprep.subr.mxu0 0.0
    %2319 = vmatpush1.msra.mxu0 0.0
    %2320 = vmatprep.subr.mxu0 0.0
    %2321 = vmatpush1.msra.mxu0 0.0
    %2322 = vmatprep.subr.mxu0 0.0
    %2323 = vmatpush1.msra.mxu0 0.0
    %2324 = vmatprep.subr.mxu0 0.0
    %2325 = vmatpush1.msra.mxu0 0.0
    %2326 = vmatprep.subr.mxu0 0.0
    %2327 = vmatpush1.msra.mxu0 0.0
    %2328 = vmatprep.subr.mxu0 0.0
    %2329 = vmatpush1.msra.mxu0 0.0
    %2330 = vmatprep.subr.mxu0 0.0
    %2331 = vmatpush1.msra.mxu0 0.0
    %2332 = vmatprep.subr.mxu0 0.0
    %2333 = vmatpush1.msra.mxu0 0.0
    %2334 = vmatprep.subr.mxu0 0.0
    %2335 = vmatpush1.msra.mxu0 0.0
    %2336 = vmatprep.subr.mxu0 0.0
    %2337 = vmatpush1.msra.mxu0 0.0
    %2338 = vmatprep.subr.mxu0 0.0
    %2339 = vmatpush1.msra.mxu0 0.0
    %2340 = vmatprep.subr.mxu0 0.0
    %2341 = vmatpush1.msra.mxu0 0.0
    %2342 = vmatprep.subr.mxu0 0.0
    %2343 = vmatpush1.msra.mxu0 0.0
    %2344 = vmatprep.subr.mxu0 0.0
    %2345 = vmatpush1.msra.mxu0 0.0
    %2346 = vmatprep.subr.mxu0 0.0
    %2347 = vmatpush1.msra.mxu0 0.0
    %2348 = vmatprep.subr.mxu0 0.0
    %2349 = vmatpush1.msra.mxu0 0.0
    %2350 = vmatprep.mubr.f32.mxu0 0.0
    %v2351 = vand.u32 %v1695, 4294901760
    %2352 = vmatmul.mubr.f32.gmra.mrb[0].mxu0 %v2351
    %v2353 = vpop.f32.mrb[0].mxu0
    %v2354 = vadd.f32 %v2211, %v2353
    %v2355 = vpop.f32.mrb[0].mxu0
    %v2356 = vadd.f32 %v2213, %v2355
    %2357 = vmatprep.mubr.f32.mxu0 0.0
    %v2358 = vand.u32 %v1698, 4294901760
    %2359 = vmatmul.mubr.f32.gmra.mrb[0].mxu0 %v2358
    %v2360 = vpop.f32.mrb[0].mxu0
    %v2361 = vadd.f32 %v2220, %v2360
    %v2362 = vpop.f32.mrb[0].mxu0
    %v2363 = vadd.f32 %v2222, %v2362
    %2364 = vmatprep.mubr.f32.mxu0 0.0
    %v2365 = vand.u32 %v1701, 4294901760
    %2366 = vmatmul.mubr.f32.gmra.mrb[0].mxu0 %v2365
    %v2367 = vpop.f32.mrb[0].mxu0
    %v2368 = vadd.f32 %v2229, %v2367
    %v2369 = vpop.f32.mrb[0].mxu0
    %v2370 = vadd.f32 %v2231, %v2369
    %2371 = vmatprep.mubr.f32.mxu0 0.0
    %v2372 = vand.u32 %v1704, 4294901760
    %2373 = vmatmul.mubr.f32.gmra.mrb[0].mxu0 %v2372
    %v2374 = vpop.f32.mrb[0].mxu0
    %v2375 = vadd.f32 %v2238, %v2374
    %v2376 = vpop.f32.mrb[0].mxu0
    %v2377 = vadd.f32 %v2240, %v2376
    %2378 = vmatprep.mubr.f32.mxu0 0.0
    %v2379 = vand.u32 %v1707, 4294901760
    %2380 = vmatmul.mubr.f32.gmra.mrb[0].mxu0 %v2379
    %v2381 = vpop.f32.mrb[0].mxu0
    %v2382 = vadd.f32 %v2247, %v2381
    %v2383 = vpop.f32.mrb[0].mxu0
    %v2384 = vadd.f32 %v2249, %v2383
    %2385 = vmatprep.mubr.f32.mxu0 0.0
    %v2386 = vand.u32 %v1710, 4294901760
    %2387 = vmatmul.mubr.f32.gmra.mrb[0].mxu0 %v2386
    %v2388 = vpop.f32.mrb[0].mxu0
    %v2389 = vadd.f32 %v2256, %v2388
    %v2390 = vpop.f32.mrb[0].mxu0
    %v2391 = vadd.f32 %v2258, %v2390
    %2392 = vmatprep.mubr.f32.mxu0 0.0
    %v2393 = vand.u32 %v1713, 4294901760
    %2394 = vmatmul.mubr.f32.gmra.mrb[0].mxu0 %v2393
    %v2395 = vpop.f32.mrb[0].mxu0
    %v2396 = vadd.f32 %v2265, %v2395
    %v2397 = vpop.f32.mrb[0].mxu0
    %v2398 = vadd.f32 %v2267, %v2397
    %2399 = vmatprep.mubr.f32.mxu0 0.0
    %v2400 = vand.u32 %v1716, 4294901760
    %2401 = vmatmul.mubr.f32.gmra.mrb[0].mxu0 %v2400
    %v2402 = vpop.f32.mrb[0].mxu0
    %v2403 = vadd.f32 %v2274, %v2402
    %v2404 = vpop.f32.mrb[0].mxu0
    %v2405 = vadd.f32 %v2276, %v2404
    %2406 = vdwg.mxu0
    %2407 = vmatprep.subr.mxu0 %v1681
    %2408 = vmatpush1.msra.mxu0 %v1680
    %2409 = vmatprep.subr.mxu0 %v1684
    %2410 = vmatpush1.msra.mxu0 %v1683
    %2411 = vmatprep.subr.mxu0 0.0
    %2412 = vmatpush1.msra.mxu0 0.0
    %2413 = vmatprep.subr.mxu0 0.0
    %2414 = vmatpush1.msra.mxu0 0.0
    %2415 = vmatprep.subr.mxu0 0.0
    %2416 = vmatpush1.msra.mxu0 0.0
    %2417 = vmatprep.subr.mxu0 0.0
    %2418 = vmatpush1.msra.mxu0 0.0
    %2419 = vmatprep.subr.mxu0 0.0
    %2420 = vmatpush1.msra.mxu0 0.0
    %2421 = vmatprep.subr.mxu0 0.0
    %2422 = vmatpush1.msra.mxu0 0.0
    %2423 = vmatprep.subr.mxu0 0.0
    %2424 = vmatpush1.msra.mxu0 0.0
    %2425 = vmatprep.subr.mxu0 0.0
    %2426 = vmatpush1.msra.mxu0 0.0
    %2427 = vmatprep.subr.mxu0 0.0
    %2428 = vmatpush1.msra.mxu0 0.0
    %2429 = vmatprep.subr.mxu0 0.0
    %2430 = vmatpush1.msra.mxu0 0.0
    %2431 = vmatprep.subr.mxu0 0.0
    %2432 = vmatpush1.msra.mxu0 0.0
    %2433 = vmatprep.subr.mxu0 0.0
    %2434 = vmatpush1.msra.mxu0 0.0
    %2435 = vmatprep.subr.mxu0 0.0
    %2436 = vmatpush1.msra.mxu0 0.0
    %2437 = vmatprep.subr.mxu0 0.0
    %2438 = vmatpush1.msra.mxu0 0.0
    %2439 = vmatprep.subr.mxu0 0.0
    %2440 = vmatpush1.msra.mxu0 0.0
    %2441 = vmatprep.subr.mxu0 0.0
    %2442 = vmatpush1.msra.mxu0 0.0
    %2443 = vmatprep.subr.mxu0 0.0
    %2444 = vmatpush1.msra.mxu0 0.0
    %2445 = vmatprep.subr.mxu0 0.0
    %2446 = vmatpush1.msra.mxu0 0.0
    %2447 = vmatprep.subr.mxu0 0.0
    %2448 = vmatpush1.msra.mxu0 0.0
    %2449 = vmatprep.subr.mxu0 0.0
    %2450 = vmatpush1.msra.mxu0 0.0
    %2451 = vmatprep.subr.mxu0 0.0
    %2452 = vmatpush1.msra.mxu0 0.0
    %2453 = vmatprep.subr.mxu0 0.0
    %2454 = vmatpush1.msra.mxu0 0.0
    %2455 = vmatprep.subr.mxu0 0.0
    %2456 = vmatpush1.msra.mxu0 0.0
    %2457 = vmatprep.subr.mxu0 0.0
    %2458 = vmatpush1.msra.mxu0 0.0
    %2459 = vmatprep.subr.mxu0 0.0
    %2460 = vmatpush1.msra.mxu0 0.0
    %2461 = vmatprep.subr.mxu0 0.0
    %2462 = vmatpush1.msra.mxu0 0.0
    %2463 = vmatprep.subr.mxu0 0.0
    %2464 = vmatpush1.msra.mxu0 0.0
    %2465 = vmatprep.subr.mxu0 0.0
    %2466 = vmatpush1.msra.mxu0 0.0
    %2467 = vmatprep.subr.mxu0 0.0
    %2468 = vmatpush1.msra.mxu0 0.0
    %2469 = vmatprep.subr.mxu0 0.0
    %2470 = vmatpush1.msra.mxu0 0.0
    %2471 = vmatprep.mubr.f32.mxu0 0.0
    %v2472 = vand.u32 %v1695, 4294901760
    %2473 = vmatmul.mubr.f32.gmra.mrb[0].mxu0 %v2472
    %v2474 = vpop.f32.mrb[0].mxu0
    %v2475 = vadd.f32 %v2354, %v2474
    %v2476 = vpop.f32.mrb[0].mxu0
    %v2477 = vadd.f32 %v2356, %v2476
    %2478 = vmatprep.mubr.f32.mxu0 0.0
    %v2479 = vand.u32 %v1698, 4294901760
    %2480 = vmatmul.mubr.f32.gmra.mrb[0].mxu0 %v2479
    %v2481 = vpop.f32.mrb[0].mxu0
    %v2482 = vadd.f32 %v2361, %v2481
    %v2483 = vpop.f32.mrb[0].mxu0
    %v2484 = vadd.f32 %v2363, %v2483
    %2485 = vmatprep.mubr.f32.mxu0 0.0
    %v2486 = vand.u32 %v1701, 4294901760
    %2487 = vmatmul.mubr.f32.gmra.mrb[0].mxu0 %v2486
    %v2488 = vpop.f32.mrb[0].mxu0
    %v2489 = vadd.f32 %v2368, %v2488
    %v2490 = vpop.f32.mrb[0].mxu0
    %v2491 = vadd.f32 %v2370, %v2490
    %2492 = vmatprep.mubr.f32.mxu0 0.0
    %v2493 = vand.u32 %v1704, 4294901760
    %2494 = vmatmul.mubr.f32.gmra.mrb[0].mxu0 %v2493
    %v2495 = vpop.f32.mrb[0].mxu0
    %v2496 = vadd.f32 %v2375, %v2495
    %v2497 = vpop.f32.mrb[0].mxu0
    %v2498 = vadd.f32 %v2377, %v2497
    %2499 = vmatprep.mubr.f32.mxu0 0.0
    %v2500 = vand.u32 %v1707, 4294901760
    %2501 = vmatmul.mubr.f32.gmra.mrb[0].mxu0 %v2500
    %v2502 = vpop.f32.mrb[0].mxu0
    %v2503 = vadd.f32 %v2382, %v2502
    %v2504 = vpop.f32.mrb[0].mxu0
    %v2505 = vadd.f32 %v2384, %v2504
    %2506 = vmatprep.mubr.f32.mxu0 0.0
    %v2507 = vand.u32 %v1710, 4294901760
    %2508 = vmatmul.mubr.f32.gmra.mrb[0].mxu0 %v2507
    %v2509 = vpop.f32.mrb[0].mxu0
    %v2510 = vadd.f32 %v2389, %v2509
    %v2511 = vpop.f32.mrb[0].mxu0
    %v2512 = vadd.f32 %v2391, %v2511
    %2513 = vmatprep.mubr.f32.mxu0 0.0
    %v2514 = vand.u32 %v1713, 4294901760
    %2515 = vmatmul.mubr.f32.gmra.mrb[0].mxu0 %v2514
    %v2516 = vpop.f32.mrb[0].mxu0
    %v2517 = vadd.f32 %v2396, %v2516
    %v2518 = vpop.f32.mrb[0].mxu0
    %v2519 = vadd.f32 %v2398, %v2518
    %2520 = vmatprep.mubr.f32.mxu0 0.0
    %v2521 = vand.u32 %v1716, 4294901760
    %2522 = vmatmul.mubr.f32.gmra.mrb[0].mxu0 %v2521
    %v2523 = vpop.f32.mrb[0].mxu0
    %v2524 = vadd.f32 %v2403, %v2523
    %v2525 = vpop.f32.mrb[0].mxu0
    %v2526 = vadd.f32 %v2405, %v2525
    %2527 = vdwg.mxu0
    %2528 = vmatprep.subr.mxu0 0.0
    %2529 = vmatpush1.msra.mxu0 %v1682
    %2530 = vmatprep.subr.mxu0 0.0
    %2531 = vmatpush1.msra.mxu0 %v1685
    %2532 = vmatprep.subr.mxu0 0.0
    %2533 = vmatpush1.msra.mxu0 0.0
    %2534 = vmatprep.subr.mxu0 0.0
    %2535 = vmatpush1.msra.mxu0 0.0
    %2536 = vmatprep.subr.mxu0 0.0
    %2537 = vmatpush1.msra.mxu0 0.0
    %2538 = vmatprep.subr.mxu0 0.0
    %2539 = vmatpush1.msra.mxu0 0.0
    %2540 = vmatprep.subr.mxu0 0.0
    %2541 = vmatpush1.msra.mxu0 0.0
    %2542 = vmatprep.subr.mxu0 0.0
    %2543 = vmatpush1.msra.mxu0 0.0
    %2544 = vmatprep.subr.mxu0 0.0
    %2545 = vmatpush1.msra.mxu0 0.0
    %2546 = vmatprep.subr.mxu0 0.0
    %2547 = vmatpush1.msra.mxu0 0.0
    %2548 = vmatprep.subr.mxu0 0.0
    %2549 = vmatpush1.msra.mxu0 0.0
    %2550 = vmatprep.subr.mxu0 0.0
    %2551 = vmatpush1.msra.mxu0 0.0
    %2552 = vmatprep.subr.mxu0 0.0
    %2553 = vmatpush1.msra.mxu0 0.0
    %2554 = vmatprep.subr.mxu0 0.0
    %2555 = vmatpush1.msra.mxu0 0.0
    %2556 = vmatprep.subr.mxu0 0.0
    %2557 = vmatpush1.msra.mxu0 0.0
    %2558 = vmatprep.subr.mxu0 0.0
    %2559 = vmatpush1.msra.mxu0 0.0
    %2560 = vmatprep.subr.mxu0 0.0
    %2561 = vmatpush1.msra.mxu0 0.0
    %2562 = vmatprep.subr.mxu0 0.0
    %2563 = vmatpush1.msra.mxu0 0.0
    %2564 = vmatprep.subr.mxu0 0.0
    %2565 = vmatpush1.msra.mxu0 0.0
    %2566 = vmatprep.subr.mxu0 0.0
    %2567 = vmatpush1.msra.mxu0 0.0
    %2568 = vmatprep.subr.mxu0 0.0
    %2569 = vmatpush1.msra.mxu0 0.0
    %2570 = vmatprep.subr.mxu0 0.0
    %2571 = vmatpush1.msra.mxu0 0.0
    %2572 = vmatprep.subr.mxu0 0.0
    %2573 = vmatpush1.msra.mxu0 0.0
    %2574 = vmatprep.subr.mxu0 0.0
    %2575 = vmatpush1.msra.mxu0 0.0
    %2576 = vmatprep.subr.mxu0 0.0
    %2577 = vmatpush1.msra.mxu0 0.0
    %2578 = vmatprep.subr.mxu0 0.0
    %2579 = vmatpush1.msra.mxu0 0.0
    %2580 = vmatprep.subr.mxu0 0.0
    %2581 = vmatpush1.msra.mxu0 0.0
    %2582 = vmatprep.subr.mxu0 0.0
    %2583 = vmatpush1.msra.mxu0 0.0
    %2584 = vmatprep.subr.mxu0 0.0
    %2585 = vmatpush1.msra.mxu0 0.0
    %2586 = vmatprep.subr.mxu0 0.0
    %2587 = vmatpush1.msra.mxu0 0.0
    %2588 = vmatprep.subr.mxu0 0.0
    %2589 = vmatpush1.msra.mxu0 0.0
    %2590 = vmatprep.subr.mxu0 0.0
    %2591 = vmatpush1.msra.mxu0 0.0
    %2592 = vmatprep.mubr.f32.mxu0 0.0
    %v2593 = vand.u32 %v1695, 4294901760
    %v2594 = vsub.f32 %v1695, %v2593
    %v2595 = vand.u32 %v2594, 4294901760
    %v2596 = vsub.f32 %v2594, %v2595
    %v2597 = vand.u32 %v2596, 4294901760
    %2598 = vmatmul.mubr.f32.gmra.mrb[0].mxu0 %v2597
    %v2599 = vpop.f32.mrb[0].mxu0
    %v2600 = vadd.f32 0.0, %v2599
    %v2601 = vpop.f32.mrb[0].mxu0
    %2602 = vmatprep.mubr.f32.mxu0 0.0
    %v2603 = vand.u32 %v1698, 4294901760
    %v2604 = vsub.f32 %v1698, %v2603
    %v2605 = vand.u32 %v2604, 4294901760
    %v2606 = vsub.f32 %v2604, %v2605
    %v2607 = vand.u32 %v2606, 4294901760
    %2608 = vmatmul.mubr.f32.gmra.mrb[0].mxu0 %v2607
    %v2609 = vpop.f32.mrb[0].mxu0
    %v2610 = vadd.f32 0.0, %v2609
    %v2611 = vpop.f32.mrb[0].mxu0
    %2612 = vmatprep.mubr.f32.mxu0 0.0
    %v2613 = vand.u32 %v1701, 4294901760
    %v2614 = vsub.f32 %v1701, %v2613
    %v2615 = vand.u32 %v2614, 4294901760
    %v2616 = vsub.f32 %v2614, %v2615
    %v2617 = vand.u32 %v2616, 4294901760
    %2618 = vmatmul.mubr.f32.gmra.mrb[0].mxu0 %v2617
    %v2619 = vpop.f32.mrb[0].mxu0
    %v2620 = vadd.f32 0.0, %v2619
    %v2621 = vpop.f32.mrb[0].mxu0
    %2622 = vmatprep.mubr.f32.mxu0 0.0
    %v2623 = vand.u32 %v1704, 4294901760
    %v2624 = vsub.f32 %v1704, %v2623
    %v2625 = vand.u32 %v2624, 4294901760
    %v2626 = vsub.f32 %v2624, %v2625
    %v2627 = vand.u32 %v2626, 4294901760
    %2628 = vmatmul.mubr.f32.gmra.mrb[0].mxu0 %v2627
    %v2629 = vpop.f32.mrb[0].mxu0
    %v2630 = vadd.f32 0.0, %v2629
    %v2631 = vpop.f32.mrb[0].mxu0
    %2632 = vmatprep.mubr.f32.mxu0 0.0
    %v2633 = vand.u32 %v1707, 4294901760
    %v2634 = vsub.f32 %v1707, %v2633
    %v2635 = vand.u32 %v2634, 4294901760
    %v2636 = vsub.f32 %v2634, %v2635
    %v2637 = vand.u32 %v2636, 4294901760
    %2638 = vmatmul.mubr.f32.gmra.mrb[0].mxu0 %v2637
    %v2639 = vpop.f32.mrb[0].mxu0
    %v2640 = vadd.f32 0.0, %v2639
    %v2641 = vpop.f32.mrb[0].mxu0
    %2642 = vmatprep.mubr.f32.mxu0 0.0
    %v2643 = vand.u32 %v1710, 4294901760
    %v2644 = vsub.f32 %v1710, %v2643
    %v2645 = vand.u32 %v2644, 4294901760
    %v2646 = vsub.f32 %v2644, %v2645
    %v2647 = vand.u32 %v2646, 4294901760
    %2648 = vmatmul.mubr.f32.gmra.mrb[0].mxu0 %v2647
    %v2649 = vpop.f32.mrb[0].mxu0
    %v2650 = vadd.f32 0.0, %v2649
    %v2651 = vpop.f32.mrb[0].mxu0
    %2652 = vmatprep.mubr.f32.mxu0 0.0
    %v2653 = vand.u32 %v1713, 4294901760
    %v2654 = vsub.f32 %v1713, %v2653
    %v2655 = vand.u32 %v2654, 4294901760
    %v2656 = vsub.f32 %v2654, %v2655
    %v2657 = vand.u32 %v2656, 4294901760
    %2658 = vmatmul.mubr.f32.gmra.mrb[0].mxu0 %v2657
    %v2659 = vpop.f32.mrb[0].mxu0
    %v2660 = vadd.f32 0.0, %v2659
    %v2661 = vpop.f32.mrb[0].mxu0
    %2662 = vmatprep.mubr.f32.mxu0 0.0
    %v2663 = vand.u32 %v1716, 4294901760
    %v2664 = vsub.f32 %v1716, %v2663
    %v2665 = vand.u32 %v2664, 4294901760
    %v2666 = vsub.f32 %v2664, %v2665
    %v2667 = vand.u32 %v2666, 4294901760
    %2668 = vmatmul.mubr.f32.gmra.mrb[0].mxu0 %v2667
    %v2669 = vpop.f32.mrb[0].mxu0
    %v2670 = vadd.f32 0.0, %v2669
    %v2671 = vpop.f32.mrb[0].mxu0
    %2672 = vdwg.mxu0
    %2673 = vmatprep.subr.mxu0 0.0
    %v2674 = vsub.f32 %v1682, %v1682
    %v2675 = vand.u32 %v2674, 4294901760
    %v2676 = vsub.f32 %v2674, %v2675
    %v2677 = vand.u32 %v2676, 4294901760
    %2678 = vmatpush1.msra.mxu0 %v2677
    %2679 = vmatprep.subr.mxu0 0.0
    %v2680 = vsub.f32 %v1685, %v1685
    %v2681 = vand.u32 %v2680, 4294901760
    %v2682 = vsub.f32 %v2680, %v2681
    %v2683 = vand.u32 %v2682, 4294901760
    %2684 = vmatpush1.msra.mxu0 %v2683
    %2685 = vmatprep.subr.mxu0 0.0
    %2686 = vmatpush1.msra.mxu0 0.0
    %2687 = vmatprep.subr.mxu0 0.0
    %2688 = vmatpush1.msra.mxu0 0.0
    %2689 = vmatprep.subr.mxu0 0.0
    %2690 = vmatpush1.msra.mxu0 0.0
    %2691 = vmatprep.subr.mxu0 0.0
    %2692 = vmatpush1.msra.mxu0 0.0
    %2693 = vmatprep.subr.mxu0 0.0
    %2694 = vmatpush1.msra.mxu0 0.0
    %2695 = vmatprep.subr.mxu0 0.0
    %2696 = vmatpush1.msra.mxu0 0.0
    %2697 = vmatprep.subr.mxu0 0.0
    %2698 = vmatpush1.msra.mxu0 0.0
    %2699 = vmatprep.subr.mxu0 0.0
    %2700 = vmatpush1.msra.mxu0 0.0
    %2701 = vmatprep.subr.mxu0 0.0
    %2702 = vmatpush1.msra.mxu0 0.0
    %2703 = vmatprep.subr.mxu0 0.0
    %2704 = vmatpush1.msra.mxu0 0.0
    %2705 = vmatprep.subr.mxu0 0.0
    %2706 = vmatpush1.msra.mxu0 0.0
    %2707 = vmatprep.subr.mxu0 0.0
    %2708 = vmatpush1.msra.mxu0 0.0
    %2709 = vmatprep.subr.mxu0 0.0
    %2710 = vmatpush1.msra.mxu0 0.0
    %2711 = vmatprep.subr.mxu0 0.0
    %2712 = vmatpush1.msra.mxu0 0.0
    %2713 = vmatprep.subr.mxu0 0.0
    %2714 = vmatpush1.msra.mxu0 0.0
    %2715 = vmatprep.subr.mxu0 0.0
    %2716 = vmatpush1.msra.mxu0 0.0
    %2717 = vmatprep.subr.mxu0 0.0
    %2718 = vmatpush1.msra.mxu0 0.0
    %2719 = vmatprep.subr.mxu0 0.0
    %2720 = vmatpush1.msra.mxu0 0.0
    %2721 = vmatprep.subr.mxu0 0.0
    %2722 = vmatpush1.msra.mxu0 0.0
    %2723 = vmatprep.subr.mxu0 0.0
    %2724 = vmatpush1.msra.mxu0 0.0
    %2725 = vmatprep.subr.mxu0 0.0
    %2726 = vmatpush1.msra.mxu0 0.0
    %2727 = vmatprep.subr.mxu0 0.0
    %2728 = vmatpush1.msra.mxu0 0.0
    %2729 = vmatprep.subr.mxu0 0.0
    %2730 = vmatpush1.msra.mxu0 0.0
    %2731 = vmatprep.subr.mxu0 0.0
    %2732 = vmatpush1.msra.mxu0 0.0
    %2733 = vmatprep.subr.mxu0 0.0
    %2734 = vmatpush1.msra.mxu0 0.0
    %2735 = vmatprep.subr.mxu0 0.0
    %2736 = vmatpush1.msra.mxu0 0.0
    %2737 = vmatprep.subr.mxu0 0.0
    %2738 = vmatpush1.msra.mxu0 0.0
    %2739 = vmatprep.subr.mxu0 0.0
    %2740 = vmatpush1.msra.mxu0 0.0
    %2741 = vmatprep.subr.mxu0 0.0
    %2742 = vmatpush1.msra.mxu0 0.0
    %2743 = vmatprep.subr.mxu0 0.0
    %2744 = vmatpush1.msra.mxu0 0.0
    %2745 = vmatprep.mubr.f32.mxu0 0.0
    %v2746 = vand.u32 %v1695, 4294901760
    %2747 = vmatmul.mubr.f32.gmra.mrb[0].mxu0 %v2746
    %v2748 = vpop.f32.mrb[0].mxu0
    %v2749 = vadd.f32 %v2600, %v2748
    %v2750 = vpop.f32.mrb[0].mxu0
    %2751 = vmatprep.mubr.f32.mxu0 0.0
    %v2752 = vand.u32 %v1698, 4294901760
    %2753 = vmatmul.mubr.f32.gmra.mrb[0].mxu0 %v2752
    %v2754 = vpop.f32.mrb[0].mxu0
    %v2755 = vadd.f32 %v2610, %v2754
    %v2756 = vpop.f32.mrb[0].mxu0
    %2757 = vmatprep.mubr.f32.mxu0 0.0
    %v2758 = vand.u32 %v1701, 4294901760
    %2759 = vmatmul.mubr.f32.gmra.mrb[0].mxu0 %v2758
    %v2760 = vpop.f32.mrb[0].mxu0
    %v2761 = vadd.f32 %v2620, %v2760
    %v2762 = vpop.f32.mrb[0].mxu0
    %2763 = vmatprep.mubr.f32.mxu0 0.0
    %v2764 = vand.u32 %v1704, 4294901760
    %2765 = vmatmul.mubr.f32.gmra.mrb[0].mxu0 %v2764
    %v2766 = vpop.f32.mrb[0].mxu0
    %v2767 = vadd.f32 %v2630, %v2766
    %v2768 = vpop.f32.mrb[0].mxu0
    %2769 = vmatprep.mubr.f32.mxu0 0.0
    %v2770 = vand.u32 %v1707, 4294901760
    %2771 = vmatmul.mubr.f32.gmra.mrb[0].mxu0 %v2770
    %v2772 = vpop.f32.mrb[0].mxu0
    %v2773 = vadd.f32 %v2640, %v2772
    %v2774 = vpop.f32.mrb[0].mxu0
    %2775 = vmatprep.mubr.f32.mxu0 0.0
    %v2776 = vand.u32 %v1710, 4294901760
    %2777 = vmatmul.mubr.f32.gmra.mrb[0].mxu0 %v2776
    %v2778 = vpop.f32.mrb[0].mxu0
    %v2779 = vadd.f32 %v2650, %v2778
    %v2780 = vpop.f32.mrb[0].mxu0
    %2781 = vmatprep.mubr.f32.mxu0 0.0
    %v2782 = vand.u32 %v1713, 4294901760
    %2783 = vmatmul.mubr.f32.gmra.mrb[0].mxu0 %v2782
    %v2784 = vpop.f32.mrb[0].mxu0
    %v2785 = vadd.f32 %v2660, %v2784
    %v2786 = vpop.f32.mrb[0].mxu0
    %2787 = vmatprep.mubr.f32.mxu0 0.0
    %v2788 = vand.u32 %v1716, 4294901760
    %2789 = vmatmul.mubr.f32.gmra.mrb[0].mxu0 %v2788
    %v2790 = vpop.f32.mrb[0].mxu0
    %v2791 = vadd.f32 %v2670, %v2790
    %v2792 = vpop.f32.mrb[0].mxu0
    %2793 = vdwg.mxu0
    %2794 = vmatprep.subr.mxu0 0.0
    %v2795 = vsub.f32 %v1682, %v1682
    %2796 = vmatpush1.msra.mxu0 %v2795
    %2797 = vmatprep.subr.mxu0 0.0
    %v2798 = vsub.f32 %v1685, %v1685
    %2799 = vmatpush1.msra.mxu0 %v2798
    %2800 = vmatprep.subr.mxu0 0.0
    %2801 = vmatpush1.msra.mxu0 0.0
    %2802 = vmatprep.subr.mxu0 0.0
    %2803 = vmatpush1.msra.mxu0 0.0
    %2804 = vmatprep.subr.mxu0 0.0
    %2805 = vmatpush1.msra.mxu0 0.0
    %2806 = vmatprep.subr.mxu0 0.0
    %2807 = vmatpush1.msra.mxu0 0.0
    %2808 = vmatprep.subr.mxu0 0.0
    %2809 = vmatpush1.msra.mxu0 0.0
    %2810 = vmatprep.subr.mxu0 0.0
    %2811 = vmatpush1.msra.mxu0 0.0
    %2812 = vmatprep.subr.mxu0 0.0
    %2813 = vmatpush1.msra.mxu0 0.0
    %2814 = vmatprep.subr.mxu0 0.0
    %2815 = vmatpush1.msra.mxu0 0.0
    %2816 = vmatprep.subr.mxu0 0.0
    %2817 = vmatpush1.msra.mxu0 0.0
    %2818 = vmatprep.subr.mxu0 0.0
    %2819 = vmatpush1.msra.mxu0 0.0
    %2820 = vmatprep.subr.mxu0 0.0
    %2821 = vmatpush1.msra.mxu0 0.0
    %2822 = vmatprep.subr.mxu0 0.0
    %2823 = vmatpush1.msra.mxu0 0.0
    %2824 = vmatprep.subr.mxu0 0.0
    %2825 = vmatpush1.msra.mxu0 0.0
    %2826 = vmatprep.subr.mxu0 0.0
    %2827 = vmatpush1.msra.mxu0 0.0
    %2828 = vmatprep.subr.mxu0 0.0
    %2829 = vmatpush1.msra.mxu0 0.0
    %2830 = vmatprep.subr.mxu0 0.0
    %2831 = vmatpush1.msra.mxu0 0.0
    %2832 = vmatprep.subr.mxu0 0.0
    %2833 = vmatpush1.msra.mxu0 0.0
    %2834 = vmatprep.subr.mxu0 0.0
    %2835 = vmatpush1.msra.mxu0 0.0
    %2836 = vmatprep.subr.mxu0 0.0
    %2837 = vmatpush1.msra.mxu0 0.0
    %2838 = vmatprep.subr.mxu0 0.0
    %2839 = vmatpush1.msra.mxu0 0.0
    %2840 = vmatprep.subr.mxu0 0.0
    %2841 = vmatpush1.msra.mxu0 0.0
    %2842 = vmatprep.subr.mxu0 0.0
    %2843 = vmatpush1.msra.mxu0 0.0
    %2844 = vmatprep.subr.mxu0 0.0
    %2845 = vmatpush1.msra.mxu0 0.0
    %2846 = vmatprep.subr.mxu0 0.0
    %2847 = vmatpush1.msra.mxu0 0.0
    %2848 = vmatprep.subr.mxu0 0.0
    %2849 = vmatpush1.msra.mxu0 0.0
    %2850 = vmatprep.subr.mxu0 0.0
    %2851 = vmatpush1.msra.mxu0 0.0
    %2852 = vmatprep.subr.mxu0 0.0
    %2853 = vmatpush1.msra.mxu0 0.0
    %2854 = vmatprep.subr.mxu0 0.0
    %2855 = vmatpush1.msra.mxu0 0.0
    %2856 = vmatprep.subr.mxu0 0.0
    %2857 = vmatpush1.msra.mxu0 0.0
    %2858 = vmatprep.subr.mxu0 0.0
    %2859 = vmatpush1.msra.mxu0 0.0
    %2860 = vmatprep.mubr.f32.mxu0 0.0
    %v2861 = vand.u32 %v1695, 4294901760
    %v2862 = vsub.f32 %v1695, %v2861
    %2863 = vmatmul.mubr.f32.gmra.mrb[0].mxu0 %v2862
    %v2864 = vpop.f32.mrb[0].mxu0
    %v2865 = vadd.f32 %v2749, %v2864
    %v2866 = vpop.f32.mrb[0].mxu0
    %2867 = vmatprep.mubr.f32.mxu0 0.0
    %v2868 = vand.u32 %v1698, 4294901760
    %v2869 = vsub.f32 %v1698, %v2868
    %2870 = vmatmul.mubr.f32.gmra.mrb[0].mxu0 %v2869
    %v2871 = vpop.f32.mrb[0].mxu0
    %v2872 = vadd.f32 %v2755, %v2871
    %v2873 = vpop.f32.mrb[0].mxu0
    %2874 = vmatprep.mubr.f32.mxu0 0.0
    %v2875 = vand.u32 %v1701, 4294901760
    %v2876 = vsub.f32 %v1701, %v2875
    %2877 = vmatmul.mubr.f32.gmra.mrb[0].mxu0 %v2876
    %v2878 = vpop.f32.mrb[0].mxu0
    %v2879 = vadd.f32 %v2761, %v2878
    %v2880 = vpop.f32.mrb[0].mxu0
    %2881 = vmatprep.mubr.f32.mxu0 0.0
    %v2882 = vand.u32 %v1704, 4294901760
    %v2883 = vsub.f32 %v1704, %v2882
    %2884 = vmatmul.mubr.f32.gmra.mrb[0].mxu0 %v2883
    %v2885 = vpop.f32.mrb[0].mxu0
    %v2886 = vadd.f32 %v2767, %v2885
    %v2887 = vpop.f32.mrb[0].mxu0
    %2888 = vmatprep.mubr.f32.mxu0 0.0
    %v2889 = vand.u32 %v1707, 4294901760
    %v2890 = vsub.f32 %v1707, %v2889
    %2891 = vmatmul.mubr.f32.gmra.mrb[0].mxu0 %v2890
    %v2892 = vpop.f32.mrb[0].mxu0
    %v2893 = vadd.f32 %v2773, %v2892
    %v2894 = vpop.f32.mrb[0].mxu0
    %2895 = vmatprep.mubr.f32.mxu0 0.0
    %v2896 = vand.u32 %v1710, 4294901760
    %v2897 = vsub.f32 %v1710, %v2896
    %2898 = vmatmul.mubr.f32.gmra.mrb[0].mxu0 %v2897
    %v2899 = vpop.f32.mrb[0].mxu0
    %v2900 = vadd.f32 %v2779, %v2899
    %v2901 = vpop.f32.mrb[0].mxu0
    %2902 = vmatprep.mubr.f32.mxu0 0.0
    %v2903 = vand.u32 %v1713, 4294901760
    %v2904 = vsub.f32 %v1713, %v2903
    %2905 = vmatmul.mubr.f32.gmra.mrb[0].mxu0 %v2904
    %v2906 = vpop.f32.mrb[0].mxu0
    %v2907 = vadd.f32 %v2785, %v2906
    %v2908 = vpop.f32.mrb[0].mxu0
    %2909 = vmatprep.mubr.f32.mxu0 0.0
    %v2910 = vand.u32 %v1716, 4294901760
    %v2911 = vsub.f32 %v1716, %v2910
    %2912 = vmatmul.mubr.f32.gmra.mrb[0].mxu0 %v2911
    %v2913 = vpop.f32.mrb[0].mxu0
    %v2914 = vadd.f32 %v2791, %v2913
    %v2915 = vpop.f32.mrb[0].mxu0
    %2916 = vdwg.mxu0
    %2917 = vmatprep.subr.mxu0 0.0
    %2918 = vmatpush1.msra.mxu0 %v1682
    %2919 = vmatprep.subr.mxu0 0.0
    %2920 = vmatpush1.msra.mxu0 %v1685
    %2921 = vmatprep.subr.mxu0 0.0
    %2922 = vmatpush1.msra.mxu0 0.0
    %2923 = vmatprep.subr.mxu0 0.0
    %2924 = vmatpush1.msra.mxu0 0.0
    %2925 = vmatprep.subr.mxu0 0.0
    %2926 = vmatpush1.msra.mxu0 0.0
    %2927 = vmatprep.subr.mxu0 0.0
    %2928 = vmatpush1.msra.mxu0 0.0
    %2929 = vmatprep.subr.mxu0 0.0
    %2930 = vmatpush1.msra.mxu0 0.0
    %2931 = vmatprep.subr.mxu0 0.0
    %2932 = vmatpush1.msra.mxu0 0.0
    %2933 = vmatprep.subr.mxu0 0.0
    %2934 = vmatpush1.msra.mxu0 0.0
    %2935 = vmatprep.subr.mxu0 0.0
    %2936 = vmatpush1.msra.mxu0 0.0
    %2937 = vmatprep.subr.mxu0 0.0
    %2938 = vmatpush1.msra.mxu0 0.0
    %2939 = vmatprep.subr.mxu0 0.0
    %2940 = vmatpush1.msra.mxu0 0.0
    %2941 = vmatprep.subr.mxu0 0.0
    %2942 = vmatpush1.msra.mxu0 0.0
    %2943 = vmatprep.subr.mxu0 0.0
    %2944 = vmatpush1.msra.mxu0 0.0
    %2945 = vmatprep.subr.mxu0 0.0
    %2946 = vmatpush1.msra.mxu0 0.0
    %2947 = vmatprep.subr.mxu0 0.0
    %2948 = vmatpush1.msra.mxu0 0.0
    %2949 = vmatprep.subr.mxu0 0.0
    %2950 = vmatpush1.msra.mxu0 0.0
    %2951 = vmatprep.subr.mxu0 0.0
    %2952 = vmatpush1.msra.mxu0 0.0
    %2953 = vmatprep.subr.mxu0 0.0
    %2954 = vmatpush1.msra.mxu0 0.0
    %2955 = vmatprep.subr.mxu0 0.0
    %2956 = vmatpush1.msra.mxu0 0.0
    %2957 = vmatprep.subr.mxu0 0.0
    %2958 = vmatpush1.msra.mxu0 0.0
    %2959 = vmatprep.subr.mxu0 0.0
    %2960 = vmatpush1.msra.mxu0 0.0
    %2961 = vmatprep.subr.mxu0 0.0
    %2962 = vmatpush1.msra.mxu0 0.0
    %2963 = vmatprep.subr.mxu0 0.0
    %2964 = vmatpush1.msra.mxu0 0.0
    %2965 = vmatprep.subr.mxu0 0.0
    %2966 = vmatpush1.msra.mxu0 0.0
    %2967 = vmatprep.subr.mxu0 0.0
    %2968 = vmatpush1.msra.mxu0 0.0
    %2969 = vmatprep.subr.mxu0 0.0
    %2970 = vmatpush1.msra.mxu0 0.0
    %2971 = vmatprep.subr.mxu0 0.0
    %2972 = vmatpush1.msra.mxu0 0.0
    %2973 = vmatprep.subr.mxu0 0.0
    %2974 = vmatpush1.msra.mxu0 0.0
    %2975 = vmatprep.subr.mxu0 0.0
    %2976 = vmatpush1.msra.mxu0 0.0
    %2977 = vmatprep.subr.mxu0 0.0
    %2978 = vmatpush1.msra.mxu0 0.0
    %2979 = vmatprep.subr.mxu0 0.0
    %2980 = vmatpush1.msra.mxu0 0.0
    %2981 = vmatprep.mubr.f32.mxu0 0.0
    %v2982 = vand.u32 %v1695, 4294901760
    %v2983 = vsub.f32 %v1695, %v2982
    %v2984 = vand.u32 %v2983, 4294901760
    %2985 = vmatmul.mubr.f32.gmra.mrb[0].mxu0 %v2984
    %v2986 = vpop.f32.mrb[0].mxu0
    %v2987 = vadd.f32 %v2865, %v2986
    %v2988 = vpop.f32.mrb[0].mxu0
    %2989 = vmatprep.mubr.f32.mxu0 0.0
    %v2990 = vand.u32 %v1698, 4294901760
    %v2991 = vsub.f32 %v1698, %v2990
    %v2992 = vand.u32 %v2991, 4294901760
    %2993 = vmatmul.mubr.f32.gmra.mrb[0].mxu0 %v2992
    %v2994 = vpop.f32.mrb[0].mxu0
    %v2995 = vadd.f32 %v2872, %v2994
    %v2996 = vpop.f32.mrb[0].mxu0
    %2997 = vmatprep.mubr.f32.mxu0 0.0
    %v2998 = vand.u32 %v1701, 4294901760
    %v2999 = vsub.f32 %v1701, %v2998
    %v3000 = vand.u32 %v2999, 4294901760
    %3001 = vmatmul.mubr.f32.gmra.mrb[0].mxu0 %v3000
    %v3002 = vpop.f32.mrb[0].mxu0
    %v3003 = vadd.f32 %v2879, %v3002
    %v3004 = vpop.f32.mrb[0].mxu0
    %3005 = vmatprep.mubr.f32.mxu0 0.0
    %v3006 = vand.u32 %v1704, 4294901760
    %v3007 = vsub.f32 %v1704, %v3006
    %v3008 = vand.u32 %v3007, 4294901760
    %3009 = vmatmul.mubr.f32.gmra.mrb[0].mxu0 %v3008
    %v3010 = vpop.f32.mrb[0].mxu0
    %v3011 = vadd.f32 %v2886, %v3010
    %v3012 = vpop.f32.mrb[0].mxu0
    %3013 = vmatprep.mubr.f32.mxu0 0.0
    %v3014 = vand.u32 %v1707, 4294901760
    %v3015 = vsub.f32 %v1707, %v3014
    %v3016 = vand.u32 %v3015, 4294901760
    %3017 = vmatmul.mubr.f32.gmra.mrb[0].mxu0 %v3016
    %v3018 = vpop.f32.mrb[0].mxu0
    %v3019 = vadd.f32 %v2893, %v3018
    %v3020 = vpop.f32.mrb[0].mxu0
    %3021 = vmatprep.mubr.f32.mxu0 0.0
    %v3022 = vand.u32 %v1710, 4294901760
    %v3023 = vsub.f32 %v1710, %v3022
    %v3024 = vand.u32 %v3023, 4294901760
    %3025 = vmatmul.mubr.f32.gmra.mrb[0].mxu0 %v3024
    %v3026 = vpop.f32.mrb[0].mxu0
    %v3027 = vadd.f32 %v2900, %v3026
    %v3028 = vpop.f32.mrb[0].mxu0
    %3029 = vmatprep.mubr.f32.mxu0 0.0
    %v3030 = vand.u32 %v1713, 4294901760
    %v3031 = vsub.f32 %v1713, %v3030
    %v3032 = vand.u32 %v3031, 4294901760
    %3033 = vmatmul.mubr.f32.gmra.mrb[0].mxu0 %v3032
    %v3034 = vpop.f32.mrb[0].mxu0
    %v3035 = vadd.f32 %v2907, %v3034
    %v3036 = vpop.f32.mrb[0].mxu0
    %3037 = vmatprep.mubr.f32.mxu0 0.0
    %v3038 = vand.u32 %v1716, 4294901760
    %v3039 = vsub.f32 %v1716, %v3038
    %v3040 = vand.u32 %v3039, 4294901760
    %3041 = vmatmul.mubr.f32.gmra.mrb[0].mxu0 %v3040
    %v3042 = vpop.f32.mrb[0].mxu0
    %v3043 = vadd.f32 %v2914, %v3042
    %v3044 = vpop.f32.mrb[0].mxu0
    %3045 = vdwg.mxu0
    %3046 = vmatprep.subr.mxu0 0.0
    %v3047 = vsub.f32 %v1682, %v1682
    %v3048 = vand.u32 %v3047, 4294901760
    %3049 = vmatpush1.msra.mxu0 %v3048
    %3050 = vmatprep.subr.mxu0 0.0
    %v3051 = vsub.f32 %v1685, %v1685
    %v3052 = vand.u32 %v3051, 4294901760
    %3053 = vmatpush1.msra.mxu0 %v3052
    %3054 = vmatprep.subr.mxu0 0.0
    %3055 = vmatpush1.msra.mxu0 0.0
    %3056 = vmatprep.subr.mxu0 0.0
    %3057 = vmatpush1.msra.mxu0 0.0
    %3058 = vmatprep.subr.mxu0 0.0
    %3059 = vmatpush1.msra.mxu0 0.0
    %3060 = vmatprep.subr.mxu0 0.0
    %3061 = vmatpush1.msra.mxu0 0.0
    %3062 = vmatprep.subr.mxu0 0.0
    %3063 = vmatpush1.msra.mxu0 0.0
    %3064 = vmatprep.subr.mxu0 0.0
    %3065 = vmatpush1.msra.mxu0 0.0
    %3066 = vmatprep.subr.mxu0 0.0
    %3067 = vmatpush1.msra.mxu0 0.0
    %3068 = vmatprep.subr.mxu0 0.0
    %3069 = vmatpush1.msra.mxu0 0.0
    %3070 = vmatprep.subr.mxu0 0.0
    %3071 = vmatpush1.msra.mxu0 0.0
    %3072 = vmatprep.subr.mxu0 0.0
    %3073 = vmatpush1.msra.mxu0 0.0
    %3074 = vmatprep.subr.mxu0 0.0
    %3075 = vmatpush1.msra.mxu0 0.0
    %3076 = vmatprep.subr.mxu0 0.0
    %3077 = vmatpush1.msra.mxu0 0.0
    %3078 = vmatprep.subr.mxu0 0.0
    %3079 = vmatpush1.msra.mxu0 0.0
    %3080 = vmatprep.subr.mxu0 0.0
    %3081 = vmatpush1.msra.mxu0 0.0
    %3082 = vmatprep.subr.mxu0 0.0
    %3083 = vmatpush1.msra.mxu0 0.0
    %3084 = vmatprep.subr.mxu0 0.0
    %3085 = vmatpush1.msra.mxu0 0.0
    %3086 = vmatprep.subr.mxu0 0.0
    %3087 = vmatpush1.msra.mxu0 0.0
    %3088 = vmatprep.subr.mxu0 0.0
    %3089 = vmatpush1.msra.mxu0 0.0
    %3090 = vmatprep.subr.mxu0 0.0
    %3091 = vmatpush1.msra.mxu0 0.0
    %3092 = vmatprep.subr.mxu0 0.0
    %3093 = vmatpush1.msra.mxu0 0.0
    %3094 = vmatprep.subr.mxu0 0.0
    %3095 = vmatpush1.msra.mxu0 0.0
    %3096 = vmatprep.subr.mxu0 0.0
    %3097 = vmatpush1.msra.mxu0 0.0
    %3098 = vmatprep.subr.mxu0 0.0
    %3099 = vmatpush1.msra.mxu0 0.0
    %3100 = vmatprep.subr.mxu0 0.0
    %3101 = vmatpush1.msra.mxu0 0.0
    %3102 = vmatprep.subr.mxu0 0.0
    %3103 = vmatpush1.msra.mxu0 0.0
    %3104 = vmatprep.subr.mxu0 0.0
    %3105 = vmatpush1.msra.mxu0 0.0
    %3106 = vmatprep.subr.mxu0 0.0
    %3107 = vmatpush1.msra.mxu0 0.0
    %3108 = vmatprep.subr.mxu0 0.0
    %3109 = vmatpush1.msra.mxu0 0.0
    %3110 = vmatprep.subr.mxu0 0.0
    %3111 = vmatpush1.msra.mxu0 0.0
    %3112 = vmatprep.subr.mxu0 0.0
    %3113 = vmatpush1.msra.mxu0 0.0
    %3114 = vmatprep.mubr.f32.mxu0 0.0
    %v3115 = vand.u32 %v1695, 4294901760
    %3116 = vmatmul.mubr.f32.gmra.mrb[0].mxu0 %v3115
    %v3117 = vpop.f32.mrb[0].mxu0
    %v3118 = vadd.f32 %v2987, %v3117
    %v3119 = vpop.f32.mrb[0].mxu0
    %3120 = vmatprep.mubr.f32.mxu0 0.0
    %v3121 = vand.u32 %v1698, 4294901760
    %3122 = vmatmul.mubr.f32.gmra.mrb[0].mxu0 %v3121
    %v3123 = vpop.f32.mrb[0].mxu0
    %v3124 = vadd.f32 %v2995, %v3123
    %v3125 = vpop.f32.mrb[0].mxu0
    %3126 = vmatprep.mubr.f32.mxu0 0.0
    %v3127 = vand.u32 %v1701, 4294901760
    %3128 = vmatmul.mubr.f32.gmra.mrb[0].mxu0 %v3127
    %v3129 = vpop.f32.mrb[0].mxu0
    %v3130 = vadd.f32 %v3003, %v3129
    %v3131 = vpop.f32.mrb[0].mxu0
    %3132 = vmatprep.mubr.f32.mxu0 0.0
    %v3133 = vand.u32 %v1704, 4294901760
    %3134 = vmatmul.mubr.f32.gmra.mrb[0].mxu0 %v3133
    %v3135 = vpop.f32.mrb[0].mxu0
    %v3136 = vadd.f32 %v3011, %v3135
    %v3137 = vpop.f32.mrb[0].mxu0
    %3138 = vmatprep.mubr.f32.mxu0 0.0
    %v3139 = vand.u32 %v1707, 4294901760
    %3140 = vmatmul.mubr.f32.gmra.mrb[0].mxu0 %v3139
    %v3141 = vpop.f32.mrb[0].mxu0
    %v3142 = vadd.f32 %v3019, %v3141
    %v3143 = vpop.f32.mrb[0].mxu0
    %3144 = vmatprep.mubr.f32.mxu0 0.0
    %v3145 = vand.u32 %v1710, 4294901760
    %3146 = vmatmul.mubr.f32.gmra.mrb[0].mxu0 %v3145
    %v3147 = vpop.f32.mrb[0].mxu0
    %v3148 = vadd.f32 %v3027, %v3147
    %v3149 = vpop.f32.mrb[0].mxu0
    %3150 = vmatprep.mubr.f32.mxu0 0.0
    %v3151 = vand.u32 %v1713, 4294901760
    %3152 = vmatmul.mubr.f32.gmra.mrb[0].mxu0 %v3151
    %v3153 = vpop.f32.mrb[0].mxu0
    %v3154 = vadd.f32 %v3035, %v3153
    %v3155 = vpop.f32.mrb[0].mxu0
    %3156 = vmatprep.mubr.f32.mxu0 0.0
    %v3157 = vand.u32 %v1716, 4294901760
    %3158 = vmatmul.mubr.f32.gmra.mrb[0].mxu0 %v3157
    %v3159 = vpop.f32.mrb[0].mxu0
    %v3160 = vadd.f32 %v3043, %v3159
    %v3161 = vpop.f32.mrb[0].mxu0
    %3162 = vdwg.mxu0
    %3163 = vmatprep.subr.mxu0 0.0
    %3164 = vmatpush1.msra.mxu0 %v1682
    %3165 = vmatprep.subr.mxu0 0.0
    %3166 = vmatpush1.msra.mxu0 %v1685
    %3167 = vmatprep.subr.mxu0 0.0
    %3168 = vmatpush1.msra.mxu0 0.0
    %3169 = vmatprep.subr.mxu0 0.0
    %3170 = vmatpush1.msra.mxu0 0.0
    %3171 = vmatprep.subr.mxu0 0.0
    %3172 = vmatpush1.msra.mxu0 0.0
    %3173 = vmatprep.subr.mxu0 0.0
    %3174 = vmatpush1.msra.mxu0 0.0
    %3175 = vmatprep.subr.mxu0 0.0
    %3176 = vmatpush1.msra.mxu0 0.0
    %3177 = vmatprep.subr.mxu0 0.0
    %3178 = vmatpush1.msra.mxu0 0.0
    %3179 = vmatprep.subr.mxu0 0.0
    %3180 = vmatpush1.msra.mxu0 0.0
    %3181 = vmatprep.subr.mxu0 0.0
    %3182 = vmatpush1.msra.mxu0 0.0
    %3183 = vmatprep.subr.mxu0 0.0
    %3184 = vmatpush1.msra.mxu0 0.0
    %3185 = vmatprep.subr.mxu0 0.0
    %3186 = vmatpush1.msra.mxu0 0.0
    %3187 = vmatprep.subr.mxu0 0.0
    %3188 = vmatpush1.msra.mxu0 0.0
    %3189 = vmatprep.subr.mxu0 0.0
    %3190 = vmatpush1.msra.mxu0 0.0
    %3191 = vmatprep.subr.mxu0 0.0
    %3192 = vmatpush1.msra.mxu0 0.0
    %3193 = vmatprep.subr.mxu0 0.0
    %3194 = vmatpush1.msra.mxu0 0.0
    %3195 = vmatprep.subr.mxu0 0.0
    %3196 = vmatpush1.msra.mxu0 0.0
    %3197 = vmatprep.subr.mxu0 0.0
    %3198 = vmatpush1.msra.mxu0 0.0
    %3199 = vmatprep.subr.mxu0 0.0
    %3200 = vmatpush1.msra.mxu0 0.0
    %3201 = vmatprep.subr.mxu0 0.0
    %3202 = vmatpush1.msra.mxu0 0.0
    %3203 = vmatprep.subr.mxu0 0.0
    %3204 = vmatpush1.msra.mxu0 0.0
    %3205 = vmatprep.subr.mxu0 0.0
    %3206 = vmatpush1.msra.mxu0 0.0
    %3207 = vmatprep.subr.mxu0 0.0
    %3208 = vmatpush1.msra.mxu0 0.0
    %3209 = vmatprep.subr.mxu0 0.0
    %3210 = vmatpush1.msra.mxu0 0.0
    %3211 = vmatprep.subr.mxu0 0.0
    %3212 = vmatpush1.msra.mxu0 0.0
    %3213 = vmatprep.subr.mxu0 0.0
    %3214 = vmatpush1.msra.mxu0 0.0
    %3215 = vmatprep.subr.mxu0 0.0
    %3216 = vmatpush1.msra.mxu0 0.0
    %3217 = vmatprep.subr.mxu0 0.0
    %3218 = vmatpush1.msra.mxu0 0.0
    %3219 = vmatprep.subr.mxu0 0.0
    %3220 = vmatpush1.msra.mxu0 0.0
    %3221 = vmatprep.subr.mxu0 0.0
    %3222 = vmatpush1.msra.mxu0 0.0
    %3223 = vmatprep.subr.mxu0 0.0
    %3224 = vmatpush1.msra.mxu0 0.0
    %3225 = vmatprep.subr.mxu0 0.0
    %3226 = vmatpush1.msra.mxu0 0.0
    %3227 = vmatprep.mubr.f32.mxu0 0.0
    %v3228 = vand.u32 %v1695, 4294901760
    %3229 = vmatmul.mubr.f32.gmra.mrb[0].mxu0 %v3228
    %v3230 = vpop.f32.mrb[0].mxu0
    %v3231 = vadd.f32 %v3118, %v3230
    %v3232 = vpop.f32.mrb[0].mxu0
    %3233 = vmatprep.mubr.f32.mxu0 0.0
    %v3234 = vand.u32 %v1698, 4294901760
    %3235 = vmatmul.mubr.f32.gmra.mrb[0].mxu0 %v3234
    %v3236 = vpop.f32.mrb[0].mxu0
    %v3237 = vadd.f32 %v3124, %v3236
    %v3238 = vpop.f32.mrb[0].mxu0
    %3239 = vmatprep.mubr.f32.mxu0 0.0
    %v3240 = vand.u32 %v1701, 4294901760
    %3241 = vmatmul.mubr.f32.gmra.mrb[0].mxu0 %v3240
    %v3242 = vpop.f32.mrb[0].mxu0
    %v3243 = vadd.f32 %v3130, %v3242
    %v3244 = vpop.f32.mrb[0].mxu0
    %3245 = vmatprep.mubr.f32.mxu0 0.0
    %v3246 = vand.u32 %v1704, 4294901760
    %3247 = vmatmul.mubr.f32.gmra.mrb[0].mxu0 %v3246
    %v3248 = vpop.f32.mrb[0].mxu0
    %v3249 = vadd.f32 %v3136, %v3248
    %v3250 = vpop.f32.mrb[0].mxu0
    %3251 = vmatprep.mubr.f32.mxu0 0.0
    %v3252 = vand.u32 %v1707, 4294901760
    %3253 = vmatmul.mubr.f32.gmra.mrb[0].mxu0 %v3252
    %v3254 = vpop.f32.mrb[0].mxu0
    %v3255 = vadd.f32 %v3142, %v3254
    %v3256 = vpop.f32.mrb[0].mxu0
    %3257 = vmatprep.mubr.f32.mxu0 0.0
    %v3258 = vand.u32 %v1710, 4294901760
    %3259 = vmatmul.mubr.f32.gmra.mrb[0].mxu0 %v3258
    %v3260 = vpop.f32.mrb[0].mxu0
    %v3261 = vadd.f32 %v3148, %v3260
    %v3262 = vpop.f32.mrb[0].mxu0
    %3263 = vmatprep.mubr.f32.mxu0 0.0
    %v3264 = vand.u32 %v1713, 4294901760
    %3265 = vmatmul.mubr.f32.gmra.mrb[0].mxu0 %v3264
    %v3266 = vpop.f32.mrb[0].mxu0
    %v3267 = vadd.f32 %v3154, %v3266
    %v3268 = vpop.f32.mrb[0].mxu0
    %3269 = vmatprep.mubr.f32.mxu0 0.0
    %v3270 = vand.u32 %v1716, 4294901760
    %3271 = vmatmul.mubr.f32.gmra.mrb[0].mxu0 %v3270
    %v3272 = vpop.f32.mrb[0].mxu0
    %v3273 = vadd.f32 %v3160, %v3272
    %v3274 = vpop.f32.mrb[0].mxu0
    %3275 = vdwg.mxu0
    %v3276 = vmul.f32 %v849, %v2475
    %v3277 = vmul.f32 %v851, %v2477
    %v3278 = vmul.f32 %v1605, %v3231
    %v3279 = vmul.f32 %v856, %v2482
    %v3280 = vmul.f32 %v858, %v2484
    %v3281 = vmul.f32 %v1611, %v3237
    %v3282 = vmul.f32 %v863, %v2489
    %v3283 = vmul.f32 %v865, %v2491
    %v3284 = vmul.f32 %v1617, %v3243
    %v3285 = vmul.f32 %v870, %v2496
    %v3286 = vmul.f32 %v872, %v2498
    %v3287 = vmul.f32 %v1623, %v3249
    %v3288 = vmul.f32 %v877, %v2503
    %v3289 = vmul.f32 %v879, %v2505
    %v3290 = vmul.f32 %v1629, %v3255
    %v3291 = vmul.f32 %v884, %v2510
    %v3292 = vmul.f32 %v886, %v2512
    %v3293 = vmul.f32 %v1635, %v3261
    %v3294 = vmul.f32 %v891, %v2517
    %v3295 = vmul.f32 %v893, %v2519
    %v3296 = vmul.f32 %v1641, %v3267
    %v3297 = vmul.f32 %v898, %v2524
    %v3298 = vmul.f32 %v900, %v2526
    %v3299 = vmul.f32 %v1647, %v3273
    %v3300 = vlaneseq
    %v3301 = vshrl.u32 %v3300, 7
    %v3302 = vsub.s32 2, %v3301
    %v3303 = vrot.slane %v18, %v3302
    %v3304 = vlaneseq
    %v3305 = vshrl.u32 %v3304, 7
    %v3306 = vsub.s32 6, %v3305
    %v3307 = vrot.slane %v18, %v3306
    %v3308 = vlaneseq
    %v3309 = vshrl.u32 %v3308, 7
    %v3310 = vsub.s32 2, %v3309
    %v3311 = vrot.slane %v19, %v3310
    %v3312 = vlaneseq
    %v3313 = vshrl.u32 %v3312, 7
    %v3314 = vsub.s32 2, %v3313
    %v3315 = vrot.slane %v3303, %v3314
    %v3316 = vlaneseq
    %v3317 = vshrl.u32 %v3316, 7
    %v3318 = vsub.s32 2, %v3317
    %v3319 = vrot.slane %v3307, %v3318
    %v3320 = vlaneseq
    %v3321 = vshrl.u32 %v3320, 7
    %v3322 = vsub.s32 2, %v3321
    %v3323 = vrot.slane %v3311, %v3322
    %vm3324 = vcmp.eq.s32.totalorder %v21, %v3315
    %vm3325 = vcmp.eq.s32.totalorder %v21, %v3319
    %vm3326 = vcmp.eq.s32.totalorder %v21, %v3323
    %vm3327 = vcmp.eq.s32.totalorder %v22, %v3315
    %vm3328 = vcmp.eq.s32.totalorder %v22, %v3319
    %vm3329 = vcmp.eq.s32.totalorder %v22, %v3323
    %v3330 = vsel %vm3324, 1.0, 0.0
    %v3331 = vsel %vm3325, 1.0, 0.0
    %v3332 = vsel %vm3326, 1.0, 0.0
    %v3333 = vsel %vm3327, 1.0, 0.0
    %v3334 = vsel %vm3328, 1.0, 0.0
    %v3335 = vsel %vm3329, 1.0, 0.0
    %v3336 = vld [vmem:[%s3] sm:$0xff]
    %v3337 = vld [vmem:[%s3 + $0x8] sm:$0xff]
    %v3338 = vld [vmem:[%s3 + $0x10] sm:$0xff]
    %v3339 = vld [vmem:[%s3 + $0x18] sm:$0xff]
    %v3340 = vld [vmem:[%s3 + $0x20] sm:$0xff]
    %v3341 = vld [vmem:[%s3 + $0x28] sm:$0xff]
    %v3342 = vld [vmem:[%s3 + $0x30] sm:$0xff]
    %v3343 = vld [vmem:[%s3 + $0x38] sm:$0xff]
    %v3345 = vsel %vm67, %v3336, 0
    %v3348 = vsel %vm67, %v3337, 0
    %v3351 = vsel %vm67, %v3338, 0
    %v3354 = vsel %vm67, %v3339, 0
    %v3357 = vsel %vm67, %v3340, 0
    %v3360 = vsel %vm67, %v3341, 0
    %v3363 = vsel %vm67, %v3342, 0
    %v3366 = vsel %vm67, %v3343, 0
    %3368 = vmatprep.subr.mxu0 %v3331
    %3369 = vmatpush1.msra.mxu0 %v3330
    %3370 = vmatprep.subr.mxu0 %v3334
    %3371 = vmatpush1.msra.mxu0 %v3333
    %3372 = vmatprep.subr.mxu0 0.0
    %3373 = vmatpush1.msra.mxu0 0.0
    %3374 = vmatprep.subr.mxu0 0.0
    %3375 = vmatpush1.msra.mxu0 0.0
    %3376 = vmatprep.subr.mxu0 0.0
    %3377 = vmatpush1.msra.mxu0 0.0
    %3378 = vmatprep.subr.mxu0 0.0
    %3379 = vmatpush1.msra.mxu0 0.0
    %3380 = vmatprep.subr.mxu0 0.0
    %3381 = vmatpush1.msra.mxu0 0.0
    %3382 = vmatprep.subr.mxu0 0.0
    %3383 = vmatpush1.msra.mxu0 0.0
    %3384 = vmatprep.subr.mxu0 0.0
    %3385 = vmatpush1.msra.mxu0 0.0
    %3386 = vmatprep.subr.mxu0 0.0
    %3387 = vmatpush1.msra.mxu0 0.0
    %3388 = vmatprep.subr.mxu0 0.0
    %3389 = vmatpush1.msra.mxu0 0.0
    %3390 = vmatprep.subr.mxu0 0.0
    %3391 = vmatpush1.msra.mxu0 0.0
    %3392 = vmatprep.subr.mxu0 0.0
    %3393 = vmatpush1.msra.mxu0 0.0
    %3394 = vmatprep.subr.mxu0 0.0
    %3395 = vmatpush1.msra.mxu0 0.0
    %3396 = vmatprep.subr.mxu0 0.0
    %3397 = vmatpush1.msra.mxu0 0.0
    %3398 = vmatprep.subr.mxu0 0.0
    %3399 = vmatpush1.msra.mxu0 0.0
    %3400 = vmatprep.subr.mxu0 0.0
    %3401 = vmatpush1.msra.mxu0 0.0
    %3402 = vmatprep.subr.mxu0 0.0
    %3403 = vmatpush1.msra.mxu0 0.0
    %3404 = vmatprep.subr.mxu0 0.0
    %3405 = vmatpush1.msra.mxu0 0.0
    %3406 = vmatprep.subr.mxu0 0.0
    %3407 = vmatpush1.msra.mxu0 0.0
    %3408 = vmatprep.subr.mxu0 0.0
    %3409 = vmatpush1.msra.mxu0 0.0
    %3410 = vmatprep.subr.mxu0 0.0
    %3411 = vmatpush1.msra.mxu0 0.0
    %3412 = vmatprep.subr.mxu0 0.0
    %3413 = vmatpush1.msra.mxu0 0.0
    %3414 = vmatprep.subr.mxu0 0.0
    %3415 = vmatpush1.msra.mxu0 0.0
    %3416 = vmatprep.subr.mxu0 0.0
    %3417 = vmatpush1.msra.mxu0 0.0
    %3418 = vmatprep.subr.mxu0 0.0
    %3419 = vmatpush1.msra.mxu0 0.0
    %3420 = vmatprep.subr.mxu0 0.0
    %3421 = vmatpush1.msra.mxu0 0.0
    %3422 = vmatprep.subr.mxu0 0.0
    %3423 = vmatpush1.msra.mxu0 0.0
    %3424 = vmatprep.subr.mxu0 0.0
    %3425 = vmatpush1.msra.mxu0 0.0
    %3426 = vmatprep.subr.mxu0 0.0
    %3427 = vmatpush1.msra.mxu0 0.0
    %3428 = vmatprep.subr.mxu0 0.0
    %3429 = vmatpush1.msra.mxu0 0.0
    %3430 = vmatprep.subr.mxu0 0.0
    %3431 = vmatpush1.msra.mxu0 0.0
    %3432 = vmatprep.mubr.f32.mxu0 0.0
    %v3433 = vand.u32 %v3345, 4294901760
    %v3434 = vsub.f32 %v3345, %v3433
    %v3435 = vand.u32 %v3434, 4294901760
    %v3436 = vsub.f32 %v3434, %v3435
    %v3437 = vand.u32 %v3436, 4294901760
    %3438 = vmatmul.mubr.f32.gmra.mrb[0].mxu0 %v3437
    %v3439 = vpop.f32.mrb[0].mxu0
    %v3440 = vadd.f32 0.0, %v3439
    %v3441 = vpop.f32.mrb[0].mxu0
    %v3442 = vadd.f32 0.0, %v3441
    %3443 = vmatprep.mubr.f32.mxu0 0.0
    %v3444 = vand.u32 %v3348, 4294901760
    %v3445 = vsub.f32 %v3348, %v3444
    %v3446 = vand.u32 %v3445, 4294901760
    %v3447 = vsub.f32 %v3445, %v3446
    %v3448 = vand.u32 %v3447, 4294901760
    %3449 = vmatmul.mubr.f32.gmra.mrb[0].mxu0 %v3448
    %v3450 = vpop.f32.mrb[0].mxu0
    %v3451 = vadd.f32 0.0, %v3450
    %v3452 = vpop.f32.mrb[0].mxu0
    %v3453 = vadd.f32 0.0, %v3452
    %3454 = vmatprep.mubr.f32.mxu0 0.0
    %v3455 = vand.u32 %v3351, 4294901760
    %v3456 = vsub.f32 %v3351, %v3455
    %v3457 = vand.u32 %v3456, 4294901760
    %v3458 = vsub.f32 %v3456, %v3457
    %v3459 = vand.u32 %v3458, 4294901760
    %3460 = vmatmul.mubr.f32.gmra.mrb[0].mxu0 %v3459
    %v3461 = vpop.f32.mrb[0].mxu0
    %v3462 = vadd.f32 0.0, %v3461
    %v3463 = vpop.f32.mrb[0].mxu0
    %v3464 = vadd.f32 0.0, %v3463
    %3465 = vmatprep.mubr.f32.mxu0 0.0
    %v3466 = vand.u32 %v3354, 4294901760
    %v3467 = vsub.f32 %v3354, %v3466
    %v3468 = vand.u32 %v3467, 4294901760
    %v3469 = vsub.f32 %v3467, %v3468
    %v3470 = vand.u32 %v3469, 4294901760
    %3471 = vmatmul.mubr.f32.gmra.mrb[0].mxu0 %v3470
    %v3472 = vpop.f32.mrb[0].mxu0
    %v3473 = vadd.f32 0.0, %v3472
    %v3474 = vpop.f32.mrb[0].mxu0
    %v3475 = vadd.f32 0.0, %v3474
    %3476 = vmatprep.mubr.f32.mxu0 0.0
    %v3477 = vand.u32 %v3357, 4294901760
    %v3478 = vsub.f32 %v3357, %v3477
    %v3479 = vand.u32 %v3478, 4294901760
    %v3480 = vsub.f32 %v3478, %v3479
    %v3481 = vand.u32 %v3480, 4294901760
    %3482 = vmatmul.mubr.f32.gmra.mrb[0].mxu0 %v3481
    %v3483 = vpop.f32.mrb[0].mxu0
    %v3484 = vadd.f32 0.0, %v3483
    %v3485 = vpop.f32.mrb[0].mxu0
    %v3486 = vadd.f32 0.0, %v3485
    %3487 = vmatprep.mubr.f32.mxu0 0.0
    %v3488 = vand.u32 %v3360, 4294901760
    %v3489 = vsub.f32 %v3360, %v3488
    %v3490 = vand.u32 %v3489, 4294901760
    %v3491 = vsub.f32 %v3489, %v3490
    %v3492 = vand.u32 %v3491, 4294901760
    %3493 = vmatmul.mubr.f32.gmra.mrb[0].mxu0 %v3492
    %v3494 = vpop.f32.mrb[0].mxu0
    %v3495 = vadd.f32 0.0, %v3494
    %v3496 = vpop.f32.mrb[0].mxu0
    %v3497 = vadd.f32 0.0, %v3496
    %3498 = vmatprep.mubr.f32.mxu0 0.0
    %v3499 = vand.u32 %v3363, 4294901760
    %v3500 = vsub.f32 %v3363, %v3499
    %v3501 = vand.u32 %v3500, 4294901760
    %v3502 = vsub.f32 %v3500, %v3501
    %v3503 = vand.u32 %v3502, 4294901760
    %3504 = vmatmul.mubr.f32.gmra.mrb[0].mxu0 %v3503
    %v3505 = vpop.f32.mrb[0].mxu0
    %v3506 = vadd.f32 0.0, %v3505
    %v3507 = vpop.f32.mrb[0].mxu0
    %v3508 = vadd.f32 0.0, %v3507
    %3509 = vmatprep.mubr.f32.mxu0 0.0
    %v3510 = vand.u32 %v3366, 4294901760
    %v3511 = vsub.f32 %v3366, %v3510
    %v3512 = vand.u32 %v3511, 4294901760
    %v3513 = vsub.f32 %v3511, %v3512
    %v3514 = vand.u32 %v3513, 4294901760
    %3515 = vmatmul.mubr.f32.gmra.mrb[0].mxu0 %v3514
    %v3516 = vpop.f32.mrb[0].mxu0
    %v3517 = vadd.f32 0.0, %v3516
    %v3518 = vpop.f32.mrb[0].mxu0
    %v3519 = vadd.f32 0.0, %v3518
    %3520 = vdwg.mxu0
    %v3521 = vsub.f32 %v3331, %v3331
    %v3522 = vand.u32 %v3521, 4294901760
    %v3523 = vsub.f32 %v3521, %v3522
    %v3524 = vand.u32 %v3523, 4294901760
    %3525 = vmatprep.subr.mxu0 %v3524
    %v3526 = vsub.f32 %v3330, %v3330
    %v3527 = vand.u32 %v3526, 4294901760
    %v3528 = vsub.f32 %v3526, %v3527
    %v3529 = vand.u32 %v3528, 4294901760
    %3530 = vmatpush1.msra.mxu0 %v3529
    %v3531 = vsub.f32 %v3334, %v3334
    %v3532 = vand.u32 %v3531, 4294901760
    %v3533 = vsub.f32 %v3531, %v3532
    %v3534 = vand.u32 %v3533, 4294901760
    %3535 = vmatprep.subr.mxu0 %v3534
    %v3536 = vsub.f32 %v3333, %v3333
    %v3537 = vand.u32 %v3536, 4294901760
    %v3538 = vsub.f32 %v3536, %v3537
    %v3539 = vand.u32 %v3538, 4294901760
    %3540 = vmatpush1.msra.mxu0 %v3539
    %3541 = vmatprep.subr.mxu0 0.0
    %3542 = vmatpush1.msra.mxu0 0.0
    %3543 = vmatprep.subr.mxu0 0.0
    %3544 = vmatpush1.msra.mxu0 0.0
    %3545 = vmatprep.subr.mxu0 0.0
    %3546 = vmatpush1.msra.mxu0 0.0
    %3547 = vmatprep.subr.mxu0 0.0
    %3548 = vmatpush1.msra.mxu0 0.0
    %3549 = vmatprep.subr.mxu0 0.0
    %3550 = vmatpush1.msra.mxu0 0.0
    %3551 = vmatprep.subr.mxu0 0.0
    %3552 = vmatpush1.msra.mxu0 0.0
    %3553 = vmatprep.subr.mxu0 0.0
    %3554 = vmatpush1.msra.mxu0 0.0
    %3555 = vmatprep.subr.mxu0 0.0
    %3556 = vmatpush1.msra.mxu0 0.0
    %3557 = vmatprep.subr.mxu0 0.0
    %3558 = vmatpush1.msra.mxu0 0.0
    %3559 = vmatprep.subr.mxu0 0.0
    %3560 = vmatpush1.msra.mxu0 0.0
    %3561 = vmatprep.subr.mxu0 0.0
    %3562 = vmatpush1.msra.mxu0 0.0
    %3563 = vmatprep.subr.mxu0 0.0
    %3564 = vmatpush1.msra.mxu0 0.0
    %3565 = vmatprep.subr.mxu0 0.0
    %3566 = vmatpush1.msra.mxu0 0.0
    %3567 = vmatprep.subr.mxu0 0.0
    %3568 = vmatpush1.msra.mxu0 0.0
    %3569 = vmatprep.subr.mxu0 0.0
    %3570 = vmatpush1.msra.mxu0 0.0
    %3571 = vmatprep.subr.mxu0 0.0
    %3572 = vmatpush1.msra.mxu0 0.0
    %3573 = vmatprep.subr.mxu0 0.0
    %3574 = vmatpush1.msra.mxu0 0.0
    %3575 = vmatprep.subr.mxu0 0.0
    %3576 = vmatpush1.msra.mxu0 0.0
    %3577 = vmatprep.subr.mxu0 0.0
    %3578 = vmatpush1.msra.mxu0 0.0
    %3579 = vmatprep.subr.mxu0 0.0
    %3580 = vmatpush1.msra.mxu0 0.0
    %3581 = vmatprep.subr.mxu0 0.0
    %3582 = vmatpush1.msra.mxu0 0.0
    %3583 = vmatprep.subr.mxu0 0.0
    %3584 = vmatpush1.msra.mxu0 0.0
    %3585 = vmatprep.subr.mxu0 0.0
    %3586 = vmatpush1.msra.mxu0 0.0
    %3587 = vmatprep.subr.mxu0 0.0
    %3588 = vmatpush1.msra.mxu0 0.0
    %3589 = vmatprep.subr.mxu0 0.0
    %3590 = vmatpush1.msra.mxu0 0.0
    %3591 = vmatprep.subr.mxu0 0.0
    %3592 = vmatpush1.msra.mxu0 0.0
    %3593 = vmatprep.subr.mxu0 0.0
    %3594 = vmatpush1.msra.mxu0 0.0
    %3595 = vmatprep.subr.mxu0 0.0
    %3596 = vmatpush1.msra.mxu0 0.0
    %3597 = vmatprep.subr.mxu0 0.0
    %3598 = vmatpush1.msra.mxu0 0.0
    %3599 = vmatprep.subr.mxu0 0.0
    %3600 = vmatpush1.msra.mxu0 0.0
    %3601 = vmatprep.mubr.f32.mxu0 0.0
    %v3602 = vand.u32 %v3345, 4294901760
    %3603 = vmatmul.mubr.f32.gmra.mrb[0].mxu0 %v3602
    %v3604 = vpop.f32.mrb[0].mxu0
    %v3605 = vadd.f32 %v3440, %v3604
    %v3606 = vpop.f32.mrb[0].mxu0
    %v3607 = vadd.f32 %v3442, %v3606
    %3608 = vmatprep.mubr.f32.mxu0 0.0
    %v3609 = vand.u32 %v3348, 4294901760
    %3610 = vmatmul.mubr.f32.gmra.mrb[0].mxu0 %v3609
    %v3611 = vpop.f32.mrb[0].mxu0
    %v3612 = vadd.f32 %v3451, %v3611
    %v3613 = vpop.f32.mrb[0].mxu0
    %v3614 = vadd.f32 %v3453, %v3613
    %3615 = vmatprep.mubr.f32.mxu0 0.0
    %v3616 = vand.u32 %v3351, 4294901760
    %3617 = vmatmul.mubr.f32.gmra.mrb[0].mxu0 %v3616
    %v3618 = vpop.f32.mrb[0].mxu0
    %v3619 = vadd.f32 %v3462, %v3618
    %v3620 = vpop.f32.mrb[0].mxu0
    %v3621 = vadd.f32 %v3464, %v3620
    %3622 = vmatprep.mubr.f32.mxu0 0.0
    %v3623 = vand.u32 %v3354, 4294901760
    %3624 = vmatmul.mubr.f32.gmra.mrb[0].mxu0 %v3623
    %v3625 = vpop.f32.mrb[0].mxu0
    %v3626 = vadd.f32 %v3473, %v3625
    %v3627 = vpop.f32.mrb[0].mxu0
    %v3628 = vadd.f32 %v3475, %v3627
    %3629 = vmatprep.mubr.f32.mxu0 0.0
    %v3630 = vand.u32 %v3357, 4294901760
    %3631 = vmatmul.mubr.f32.gmra.mrb[0].mxu0 %v3630
    %v3632 = vpop.f32.mrb[0].mxu0
    %v3633 = vadd.f32 %v3484, %v3632
    %v3634 = vpop.f32.mrb[0].mxu0
    %v3635 = vadd.f32 %v3486, %v3634
    %3636 = vmatprep.mubr.f32.mxu0 0.0
    %v3637 = vand.u32 %v3360, 4294901760
    %3638 = vmatmul.mubr.f32.gmra.mrb[0].mxu0 %v3637
    %v3639 = vpop.f32.mrb[0].mxu0
    %v3640 = vadd.f32 %v3495, %v3639
    %v3641 = vpop.f32.mrb[0].mxu0
    %v3642 = vadd.f32 %v3497, %v3641
    %3643 = vmatprep.mubr.f32.mxu0 0.0
    %v3644 = vand.u32 %v3363, 4294901760
    %3645 = vmatmul.mubr.f32.gmra.mrb[0].mxu0 %v3644
    %v3646 = vpop.f32.mrb[0].mxu0
    %v3647 = vadd.f32 %v3506, %v3646
    %v3648 = vpop.f32.mrb[0].mxu0
    %v3649 = vadd.f32 %v3508, %v3648
    %3650 = vmatprep.mubr.f32.mxu0 0.0
    %v3651 = vand.u32 %v3366, 4294901760
    %3652 = vmatmul.mubr.f32.gmra.mrb[0].mxu0 %v3651
    %v3653 = vpop.f32.mrb[0].mxu0
    %v3654 = vadd.f32 %v3517, %v3653
    %v3655 = vpop.f32.mrb[0].mxu0
    %v3656 = vadd.f32 %v3519, %v3655
    %3657 = vdwg.mxu0
    %v3658 = vsub.f32 %v3331, %v3331
    %3659 = vmatprep.subr.mxu0 %v3658
    %v3660 = vsub.f32 %v3330, %v3330
    %3661 = vmatpush1.msra.mxu0 %v3660
    %v3662 = vsub.f32 %v3334, %v3334
    %3663 = vmatprep.subr.mxu0 %v3662
    %v3664 = vsub.f32 %v3333, %v3333
    %3665 = vmatpush1.msra.mxu0 %v3664
    %3666 = vmatprep.subr.mxu0 0.0
    %3667 = vmatpush1.msra.mxu0 0.0
    %3668 = vmatprep.subr.mxu0 0.0
    %3669 = vmatpush1.msra.mxu0 0.0
    %3670 = vmatprep.subr.mxu0 0.0
    %3671 = vmatpush1.msra.mxu0 0.0
    %3672 = vmatprep.subr.mxu0 0.0
    %3673 = vmatpush1.msra.mxu0 0.0
    %3674 = vmatprep.subr.mxu0 0.0
    %3675 = vmatpush1.msra.mxu0 0.0
    %3676 = vmatprep.subr.mxu0 0.0
    %3677 = vmatpush1.msra.mxu0 0.0
    %3678 = vmatprep.subr.mxu0 0.0
    %3679 = vmatpush1.msra.mxu0 0.0
    %3680 = vmatprep.subr.mxu0 0.0
    %3681 = vmatpush1.msra.mxu0 0.0
    %3682 = vmatprep.subr.mxu0 0.0
    %3683 = vmatpush1.msra.mxu0 0.0
    %3684 = vmatprep.subr.mxu0 0.0
    %3685 = vmatpush1.msra.mxu0 0.0
    %3686 = vmatprep.subr.mxu0 0.0
    %3687 = vmatpush1.msra.mxu0 0.0
    %3688 = vmatprep.subr.mxu0 0.0
    %3689 = vmatpush1.msra.mxu0 0.0
    %3690 = vmatprep.subr.mxu0 0.0
    %3691 = vmatpush1.msra.mxu0 0.0
    %3692 = vmatprep.subr.mxu0 0.0
    %3693 = vmatpush1.msra.mxu0 0.0
    %3694 = vmatprep.subr.mxu0 0.0
    %3695 = vmatpush1.msra.mxu0 0.0
    %3696 = vmatprep.subr.mxu0 0.0
    %3697 = vmatpush1.msra.mxu0 0.0
    %3698 = vmatprep.subr.mxu0 0.0
    %3699 = vmatpush1.msra.mxu0 0.0
    %3700 = vmatprep.subr.mxu0 0.0
    %3701 = vmatpush1.msra.mxu0 0.0
    %3702 = vmatprep.subr.mxu0 0.0
    %3703 = vmatpush1.msra.mxu0 0.0
    %3704 = vmatprep.subr.mxu0 0.0
    %3705 = vmatpush1.msra.mxu0 0.0
    %3706 = vmatprep.subr.mxu0 0.0
    %3707 = vmatpush1.msra.mxu0 0.0
    %3708 = vmatprep.subr.mxu0 0.0
    %3709 = vmatpush1.msra.mxu0 0.0
    %3710 = vmatprep.subr.mxu0 0.0
    %3711 = vmatpush1.msra.mxu0 0.0
    %3712 = vmatprep.subr.mxu0 0.0
    %3713 = vmatpush1.msra.mxu0 0.0
    %3714 = vmatprep.subr.mxu0 0.0
    %3715 = vmatpush1.msra.mxu0 0.0
    %3716 = vmatprep.subr.mxu0 0.0
    %3717 = vmatpush1.msra.mxu0 0.0
    %3718 = vmatprep.subr.mxu0 0.0
    %3719 = vmatpush1.msra.mxu0 0.0
    %3720 = vmatprep.subr.mxu0 0.0
    %3721 = vmatpush1.msra.mxu0 0.0
    %3722 = vmatprep.subr.mxu0 0.0
    %3723 = vmatpush1.msra.mxu0 0.0
    %3724 = vmatprep.subr.mxu0 0.0
    %3725 = vmatpush1.msra.mxu0 0.0
    %3726 = vmatprep.mubr.f32.mxu0 0.0
    %v3727 = vand.u32 %v3345, 4294901760
    %v3728 = vsub.f32 %v3345, %v3727
    %3729 = vmatmul.mubr.f32.gmra.mrb[0].mxu0 %v3728
    %v3730 = vpop.f32.mrb[0].mxu0
    %v3731 = vadd.f32 %v3605, %v3730
    %v3732 = vpop.f32.mrb[0].mxu0
    %v3733 = vadd.f32 %v3607, %v3732
    %3734 = vmatprep.mubr.f32.mxu0 0.0
    %v3735 = vand.u32 %v3348, 4294901760
    %v3736 = vsub.f32 %v3348, %v3735
    %3737 = vmatmul.mubr.f32.gmra.mrb[0].mxu0 %v3736
    %v3738 = vpop.f32.mrb[0].mxu0
    %v3739 = vadd.f32 %v3612, %v3738
    %v3740 = vpop.f32.mrb[0].mxu0
    %v3741 = vadd.f32 %v3614, %v3740
    %3742 = vmatprep.mubr.f32.mxu0 0.0
    %v3743 = vand.u32 %v3351, 4294901760
    %v3744 = vsub.f32 %v3351, %v3743
    %3745 = vmatmul.mubr.f32.gmra.mrb[0].mxu0 %v3744
    %v3746 = vpop.f32.mrb[0].mxu0
    %v3747 = vadd.f32 %v3619, %v3746
    %v3748 = vpop.f32.mrb[0].mxu0
    %v3749 = vadd.f32 %v3621, %v3748
    %3750 = vmatprep.mubr.f32.mxu0 0.0
    %v3751 = vand.u32 %v3354, 4294901760
    %v3752 = vsub.f32 %v3354, %v3751
    %3753 = vmatmul.mubr.f32.gmra.mrb[0].mxu0 %v3752
    %v3754 = vpop.f32.mrb[0].mxu0
    %v3755 = vadd.f32 %v3626, %v3754
    %v3756 = vpop.f32.mrb[0].mxu0
    %v3757 = vadd.f32 %v3628, %v3756
    %3758 = vmatprep.mubr.f32.mxu0 0.0
    %v3759 = vand.u32 %v3357, 4294901760
    %v3760 = vsub.f32 %v3357, %v3759
    %3761 = vmatmul.mubr.f32.gmra.mrb[0].mxu0 %v3760
    %v3762 = vpop.f32.mrb[0].mxu0
    %v3763 = vadd.f32 %v3633, %v3762
    %v3764 = vpop.f32.mrb[0].mxu0
    %v3765 = vadd.f32 %v3635, %v3764
    %3766 = vmatprep.mubr.f32.mxu0 0.0
    %v3767 = vand.u32 %v3360, 4294901760
    %v3768 = vsub.f32 %v3360, %v3767
    %3769 = vmatmul.mubr.f32.gmra.mrb[0].mxu0 %v3768
    %v3770 = vpop.f32.mrb[0].mxu0
    %v3771 = vadd.f32 %v3640, %v3770
    %v3772 = vpop.f32.mrb[0].mxu0
    %v3773 = vadd.f32 %v3642, %v3772
    %3774 = vmatprep.mubr.f32.mxu0 0.0
    %v3775 = vand.u32 %v3363, 4294901760
    %v3776 = vsub.f32 %v3363, %v3775
    %3777 = vmatmul.mubr.f32.gmra.mrb[0].mxu0 %v3776
    %v3778 = vpop.f32.mrb[0].mxu0
    %v3779 = vadd.f32 %v3647, %v3778
    %v3780 = vpop.f32.mrb[0].mxu0
    %v3781 = vadd.f32 %v3649, %v3780
    %3782 = vmatprep.mubr.f32.mxu0 0.0
    %v3783 = vand.u32 %v3366, 4294901760
    %v3784 = vsub.f32 %v3366, %v3783
    %3785 = vmatmul.mubr.f32.gmra.mrb[0].mxu0 %v3784
    %v3786 = vpop.f32.mrb[0].mxu0
    %v3787 = vadd.f32 %v3654, %v3786
    %v3788 = vpop.f32.mrb[0].mxu0
    %v3789 = vadd.f32 %v3656, %v3788
    %3790 = vdwg.mxu0
    %3791 = vmatprep.subr.mxu0 %v3331
    %3792 = vmatpush1.msra.mxu0 %v3330
    %3793 = vmatprep.subr.mxu0 %v3334
    %3794 = vmatpush1.msra.mxu0 %v3333
    %3795 = vmatprep.subr.mxu0 0.0
    %3796 = vmatpush1.msra.mxu0 0.0
    %3797 = vmatprep.subr.mxu0 0.0
    %3798 = vmatpush1.msra.mxu0 0.0
    %3799 = vmatprep.subr.mxu0 0.0
    %3800 = vmatpush1.msra.mxu0 0.0
    %3801 = vmatprep.subr.mxu0 0.0
    %3802 = vmatpush1.msra.mxu0 0.0
    %3803 = vmatprep.subr.mxu0 0.0
    %3804 = vmatpush1.msra.mxu0 0.0
    %3805 = vmatprep.subr.mxu0 0.0
    %3806 = vmatpush1.msra.mxu0 0.0
    %3807 = vmatprep.subr.mxu0 0.0
    %3808 = vmatpush1.msra.mxu0 0.0
    %3809 = vmatprep.subr.mxu0 0.0
    %3810 = vmatpush1.msra.mxu0 0.0
    %3811 = vmatprep.subr.mxu0 0.0
    %3812 = vmatpush1.msra.mxu0 0.0
    %3813 = vmatprep.subr.mxu0 0.0
    %3814 = vmatpush1.msra.mxu0 0.0
    %3815 = vmatprep.subr.mxu0 0.0
    %3816 = vmatpush1.msra.mxu0 0.0
    %3817 = vmatprep.subr.mxu0 0.0
    %3818 = vmatpush1.msra.mxu0 0.0
    %3819 = vmatprep.subr.mxu0 0.0
    %3820 = vmatpush1.msra.mxu0 0.0
    %3821 = vmatprep.subr.mxu0 0.0
    %3822 = vmatpush1.msra.mxu0 0.0
    %3823 = vmatprep.subr.mxu0 0.0
    %3824 = vmatpush1.msra.mxu0 0.0
    %3825 = vmatprep.subr.mxu0 0.0
    %3826 = vmatpush1.msra.mxu0 0.0
    %3827 = vmatprep.subr.mxu0 0.0
    %3828 = vmatpush1.msra.mxu0 0.0
    %3829 = vmatprep.subr.mxu0 0.0
    %3830 = vmatpush1.msra.mxu0 0.0
    %3831 = vmatprep.subr.mxu0 0.0
    %3832 = vmatpush1.msra.mxu0 0.0
    %3833 = vmatprep.subr.mxu0 0.0
    %3834 = vmatpush1.msra.mxu0 0.0
    %3835 = vmatprep.subr.mxu0 0.0
    %3836 = vmatpush1.msra.mxu0 0.0
    %3837 = vmatprep.subr.mxu0 0.0
    %3838 = vmatpush1.msra.mxu0 0.0
    %3839 = vmatprep.subr.mxu0 0.0
    %3840 = vmatpush1.msra.mxu0 0.0
    %3841 = vmatprep.subr.mxu0 0.0
    %3842 = vmatpush1.msra.mxu0 0.0
    %3843 = vmatprep.subr.mxu0 0.0
    %3844 = vmatpush1.msra.mxu0 0.0
    %3845 = vmatprep.subr.mxu0 0.0
    %3846 = vmatpush1.msra.mxu0 0.0
    %3847 = vmatprep.subr.mxu0 0.0
    %3848 = vmatpush1.msra.mxu0 0.0
    %3849 = vmatprep.subr.mxu0 0.0
    %3850 = vmatpush1.msra.mxu0 0.0
    %3851 = vmatprep.subr.mxu0 0.0
    %3852 = vmatpush1.msra.mxu0 0.0
    %3853 = vmatprep.subr.mxu0 0.0
    %3854 = vmatpush1.msra.mxu0 0.0
    %3855 = vmatprep.mubr.f32.mxu0 0.0
    %v3856 = vand.u32 %v3345, 4294901760
    %v3857 = vsub.f32 %v3345, %v3856
    %v3858 = vand.u32 %v3857, 4294901760
    %3859 = vmatmul.mubr.f32.gmra.mrb[0].mxu0 %v3858
    %v3860 = vpop.f32.mrb[0].mxu0
    %v3861 = vadd.f32 %v3731, %v3860
    %v3862 = vpop.f32.mrb[0].mxu0
    %v3863 = vadd.f32 %v3733, %v3862
    %3864 = vmatprep.mubr.f32.mxu0 0.0
    %v3865 = vand.u32 %v3348, 4294901760
    %v3866 = vsub.f32 %v3348, %v3865
    %v3867 = vand.u32 %v3866, 4294901760
    %3868 = vmatmul.mubr.f32.gmra.mrb[0].mxu0 %v3867
    %v3869 = vpop.f32.mrb[0].mxu0
    %v3870 = vadd.f32 %v3739, %v3869
    %v3871 = vpop.f32.mrb[0].mxu0
    %v3872 = vadd.f32 %v3741, %v3871
    %3873 = vmatprep.mubr.f32.mxu0 0.0
    %v3874 = vand.u32 %v3351, 4294901760
    %v3875 = vsub.f32 %v3351, %v3874
    %v3876 = vand.u32 %v3875, 4294901760
    %3877 = vmatmul.mubr.f32.gmra.mrb[0].mxu0 %v3876
    %v3878 = vpop.f32.mrb[0].mxu0
    %v3879 = vadd.f32 %v3747, %v3878
    %v3880 = vpop.f32.mrb[0].mxu0
    %v3881 = vadd.f32 %v3749, %v3880
    %3882 = vmatprep.mubr.f32.mxu0 0.0
    %v3883 = vand.u32 %v3354, 4294901760
    %v3884 = vsub.f32 %v3354, %v3883
    %v3885 = vand.u32 %v3884, 4294901760
    %3886 = vmatmul.mubr.f32.gmra.mrb[0].mxu0 %v3885
    %v3887 = vpop.f32.mrb[0].mxu0
    %v3888 = vadd.f32 %v3755, %v3887
    %v3889 = vpop.f32.mrb[0].mxu0
    %v3890 = vadd.f32 %v3757, %v3889
    %3891 = vmatprep.mubr.f32.mxu0 0.0
    %v3892 = vand.u32 %v3357, 4294901760
    %v3893 = vsub.f32 %v3357, %v3892
    %v3894 = vand.u32 %v3893, 4294901760
    %3895 = vmatmul.mubr.f32.gmra.mrb[0].mxu0 %v3894
    %v3896 = vpop.f32.mrb[0].mxu0
    %v3897 = vadd.f32 %v3763, %v3896
    %v3898 = vpop.f32.mrb[0].mxu0
    %v3899 = vadd.f32 %v3765, %v3898
    %3900 = vmatprep.mubr.f32.mxu0 0.0
    %v3901 = vand.u32 %v3360, 4294901760
    %v3902 = vsub.f32 %v3360, %v3901
    %v3903 = vand.u32 %v3902, 4294901760
    %3904 = vmatmul.mubr.f32.gmra.mrb[0].mxu0 %v3903
    %v3905 = vpop.f32.mrb[0].mxu0
    %v3906 = vadd.f32 %v3771, %v3905
    %v3907 = vpop.f32.mrb[0].mxu0
    %v3908 = vadd.f32 %v3773, %v3907
    %3909 = vmatprep.mubr.f32.mxu0 0.0
    %v3910 = vand.u32 %v3363, 4294901760
    %v3911 = vsub.f32 %v3363, %v3910
    %v3912 = vand.u32 %v3911, 4294901760
    %3913 = vmatmul.mubr.f32.gmra.mrb[0].mxu0 %v3912
    %v3914 = vpop.f32.mrb[0].mxu0
    %v3915 = vadd.f32 %v3779, %v3914
    %v3916 = vpop.f32.mrb[0].mxu0
    %v3917 = vadd.f32 %v3781, %v3916
    %3918 = vmatprep.mubr.f32.mxu0 0.0
    %v3919 = vand.u32 %v3366, 4294901760
    %v3920 = vsub.f32 %v3366, %v3919
    %v3921 = vand.u32 %v3920, 4294901760
    %3922 = vmatmul.mubr.f32.gmra.mrb[0].mxu0 %v3921
    %v3923 = vpop.f32.mrb[0].mxu0
    %v3924 = vadd.f32 %v3787, %v3923
    %v3925 = vpop.f32.mrb[0].mxu0
    %v3926 = vadd.f32 %v3789, %v3925
    %3927 = vdwg.mxu0
    %v3928 = vsub.f32 %v3331, %v3331
    %v3929 = vand.u32 %v3928, 4294901760
    %3930 = vmatprep.subr.mxu0 %v3929
    %v3931 = vsub.f32 %v3330, %v3330
    %v3932 = vand.u32 %v3931, 4294901760
    %3933 = vmatpush1.msra.mxu0 %v3932
    %v3934 = vsub.f32 %v3334, %v3334
    %v3935 = vand.u32 %v3934, 4294901760
    %3936 = vmatprep.subr.mxu0 %v3935
    %v3937 = vsub.f32 %v3333, %v3333
    %v3938 = vand.u32 %v3937, 4294901760
    %3939 = vmatpush1.msra.mxu0 %v3938
    %3940 = vmatprep.subr.mxu0 0.0
    %3941 = vmatpush1.msra.mxu0 0.0
    %3942 = vmatprep.subr.mxu0 0.0
    %3943 = vmatpush1.msra.mxu0 0.0
    %3944 = vmatprep.subr.mxu0 0.0
    %3945 = vmatpush1.msra.mxu0 0.0
    %3946 = vmatprep.subr.mxu0 0.0
    %3947 = vmatpush1.msra.mxu0 0.0
    %3948 = vmatprep.subr.mxu0 0.0
    %3949 = vmatpush1.msra.mxu0 0.0
    %3950 = vmatprep.subr.mxu0 0.0
    %3951 = vmatpush1.msra.mxu0 0.0
    %3952 = vmatprep.subr.mxu0 0.0
    %3953 = vmatpush1.msra.mxu0 0.0
    %3954 = vmatprep.subr.mxu0 0.0
    %3955 = vmatpush1.msra.mxu0 0.0
    %3956 = vmatprep.subr.mxu0 0.0
    %3957 = vmatpush1.msra.mxu0 0.0
    %3958 = vmatprep.subr.mxu0 0.0
    %3959 = vmatpush1.msra.mxu0 0.0
    %3960 = vmatprep.subr.mxu0 0.0
    %3961 = vmatpush1.msra.mxu0 0.0
    %3962 = vmatprep.subr.mxu0 0.0
    %3963 = vmatpush1.msra.mxu0 0.0
    %3964 = vmatprep.subr.mxu0 0.0
    %3965 = vmatpush1.msra.mxu0 0.0
    %3966 = vmatprep.subr.mxu0 0.0
    %3967 = vmatpush1.msra.mxu0 0.0
    %3968 = vmatprep.subr.mxu0 0.0
    %3969 = vmatpush1.msra.mxu0 0.0
    %3970 = vmatprep.subr.mxu0 0.0
    %3971 = vmatpush1.msra.mxu0 0.0
    %3972 = vmatprep.subr.mxu0 0.0
    %3973 = vmatpush1.msra.mxu0 0.0
    %3974 = vmatprep.subr.mxu0 0.0
    %3975 = vmatpush1.msra.mxu0 0.0
    %3976 = vmatprep.subr.mxu0 0.0
    %3977 = vmatpush1.msra.mxu0 0.0
    %3978 = vmatprep.subr.mxu0 0.0
    %3979 = vmatpush1.msra.mxu0 0.0
    %3980 = vmatprep.subr.mxu0 0.0
    %3981 = vmatpush1.msra.mxu0 0.0
    %3982 = vmatprep.subr.mxu0 0.0
    %3983 = vmatpush1.msra.mxu0 0.0
    %3984 = vmatprep.subr.mxu0 0.0
    %3985 = vmatpush1.msra.mxu0 0.0
    %3986 = vmatprep.subr.mxu0 0.0
    %3987 = vmatpush1.msra.mxu0 0.0
    %3988 = vmatprep.subr.mxu0 0.0
    %3989 = vmatpush1.msra.mxu0 0.0
    %3990 = vmatprep.subr.mxu0 0.0
    %3991 = vmatpush1.msra.mxu0 0.0
    %3992 = vmatprep.subr.mxu0 0.0
    %3993 = vmatpush1.msra.mxu0 0.0
    %3994 = vmatprep.subr.mxu0 0.0
    %3995 = vmatpush1.msra.mxu0 0.0
    %3996 = vmatprep.subr.mxu0 0.0
    %3997 = vmatpush1.msra.mxu0 0.0
    %3998 = vmatprep.subr.mxu0 0.0
    %3999 = vmatpush1.msra.mxu0 0.0
    %4000 = vmatprep.mubr.f32.mxu0 0.0
    %v4001 = vand.u32 %v3345, 4294901760
    %4002 = vmatmul.mubr.f32.gmra.mrb[0].mxu0 %v4001
    %v4003 = vpop.f32.mrb[0].mxu0
    %v4004 = vadd.f32 %v3861, %v4003
    %v4005 = vpop.f32.mrb[0].mxu0
    %v4006 = vadd.f32 %v3863, %v4005
    %4007 = vmatprep.mubr.f32.mxu0 0.0
    %v4008 = vand.u32 %v3348, 4294901760
    %4009 = vmatmul.mubr.f32.gmra.mrb[0].mxu0 %v4008
    %v4010 = vpop.f32.mrb[0].mxu0
    %v4011 = vadd.f32 %v3870, %v4010
    %v4012 = vpop.f32.mrb[0].mxu0
    %v4013 = vadd.f32 %v3872, %v4012
    %4014 = vmatprep.mubr.f32.mxu0 0.0
    %v4015 = vand.u32 %v3351, 4294901760
    %4016 = vmatmul.mubr.f32.gmra.mrb[0].mxu0 %v4015
    %v4017 = vpop.f32.mrb[0].mxu0
    %v4018 = vadd.f32 %v3879, %v4017
    %v4019 = vpop.f32.mrb[0].mxu0
    %v4020 = vadd.f32 %v3881, %v4019
    %4021 = vmatprep.mubr.f32.mxu0 0.0
    %v4022 = vand.u32 %v3354, 4294901760
    %4023 = vmatmul.mubr.f32.gmra.mrb[0].mxu0 %v4022
    %v4024 = vpop.f32.mrb[0].mxu0
    %v4025 = vadd.f32 %v3888, %v4024
    %v4026 = vpop.f32.mrb[0].mxu0
    %v4027 = vadd.f32 %v3890, %v4026
    %4028 = vmatprep.mubr.f32.mxu0 0.0
    %v4029 = vand.u32 %v3357, 4294901760
    %4030 = vmatmul.mubr.f32.gmra.mrb[0].mxu0 %v4029
    %v4031 = vpop.f32.mrb[0].mxu0
    %v4032 = vadd.f32 %v3897, %v4031
    %v4033 = vpop.f32.mrb[0].mxu0
    %v4034 = vadd.f32 %v3899, %v4033
    %4035 = vmatprep.mubr.f32.mxu0 0.0
    %v4036 = vand.u32 %v3360, 4294901760
    %4037 = vmatmul.mubr.f32.gmra.mrb[0].mxu0 %v4036
    %v4038 = vpop.f32.mrb[0].mxu0
    %v4039 = vadd.f32 %v3906, %v4038
    %v4040 = vpop.f32.mrb[0].mxu0
    %v4041 = vadd.f32 %v3908, %v4040
    %4042 = vmatprep.mubr.f32.mxu0 0.0
    %v4043 = vand.u32 %v3363, 4294901760
    %4044 = vmatmul.mubr.f32.gmra.mrb[0].mxu0 %v4043
    %v4045 = vpop.f32.mrb[0].mxu0
    %v4046 = vadd.f32 %v3915, %v4045
    %v4047 = vpop.f32.mrb[0].mxu0
    %v4048 = vadd.f32 %v3917, %v4047
    %4049 = vmatprep.mubr.f32.mxu0 0.0
    %v4050 = vand.u32 %v3366, 4294901760
    %4051 = vmatmul.mubr.f32.gmra.mrb[0].mxu0 %v4050
    %v4052 = vpop.f32.mrb[0].mxu0
    %v4053 = vadd.f32 %v3924, %v4052
    %v4054 = vpop.f32.mrb[0].mxu0
    %v4055 = vadd.f32 %v3926, %v4054
    %4056 = vdwg.mxu0
    %4057 = vmatprep.subr.mxu0 %v3331
    %4058 = vmatpush1.msra.mxu0 %v3330
    %4059 = vmatprep.subr.mxu0 %v3334
    %4060 = vmatpush1.msra.mxu0 %v3333
    %4061 = vmatprep.subr.mxu0 0.0
    %4062 = vmatpush1.msra.mxu0 0.0
    %4063 = vmatprep.subr.mxu0 0.0
    %4064 = vmatpush1.msra.mxu0 0.0
    %4065 = vmatprep.subr.mxu0 0.0
    %4066 = vmatpush1.msra.mxu0 0.0
    %4067 = vmatprep.subr.mxu0 0.0
    %4068 = vmatpush1.msra.mxu0 0.0
    %4069 = vmatprep.subr.mxu0 0.0
    %4070 = vmatpush1.msra.mxu0 0.0
    %4071 = vmatprep.subr.mxu0 0.0
    %4072 = vmatpush1.msra.mxu0 0.0
    %4073 = vmatprep.subr.mxu0 0.0
    %4074 = vmatpush1.msra.mxu0 0.0
    %4075 = vmatprep.subr.mxu0 0.0
    %4076 = vmatpush1.msra.mxu0 0.0
    %4077 = vmatprep.subr.mxu0 0.0
    %4078 = vmatpush1.msra.mxu0 0.0
    %4079 = vmatprep.subr.mxu0 0.0
    %4080 = vmatpush1.msra.mxu0 0.0
    %4081 = vmatprep.subr.mxu0 0.0
    %4082 = vmatpush1.msra.mxu0 0.0
    %4083 = vmatprep.subr.mxu0 0.0
    %4084 = vmatpush1.msra.mxu0 0.0
    %4085 = vmatprep.subr.mxu0 0.0
    %4086 = vmatpush1.msra.mxu0 0.0
    %4087 = vmatprep.subr.mxu0 0.0
    %4088 = vmatpush1.msra.mxu0 0.0
    %4089 = vmatprep.subr.mxu0 0.0
    %4090 = vmatpush1.msra.mxu0 0.0
    %4091 = vmatprep.subr.mxu0 0.0
    %4092 = vmatpush1.msra.mxu0 0.0
    %4093 = vmatprep.subr.mxu0 0.0
    %4094 = vmatpush1.msra.mxu0 0.0
    %4095 = vmatprep.subr.mxu0 0.0
    %4096 = vmatpush1.msra.mxu0 0.0
    %4097 = vmatprep.subr.mxu0 0.0
    %4098 = vmatpush1.msra.mxu0 0.0
    %4099 = vmatprep.subr.mxu0 0.0
    %4100 = vmatpush1.msra.mxu0 0.0
    %4101 = vmatprep.subr.mxu0 0.0
    %4102 = vmatpush1.msra.mxu0 0.0
    %4103 = vmatprep.subr.mxu0 0.0
    %4104 = vmatpush1.msra.mxu0 0.0
    %4105 = vmatprep.subr.mxu0 0.0
    %4106 = vmatpush1.msra.mxu0 0.0
    %4107 = vmatprep.subr.mxu0 0.0
    %4108 = vmatpush1.msra.mxu0 0.0
    %4109 = vmatprep.subr.mxu0 0.0
    %4110 = vmatpush1.msra.mxu0 0.0
    %4111 = vmatprep.subr.mxu0 0.0
    %4112 = vmatpush1.msra.mxu0 0.0
    %4113 = vmatprep.subr.mxu0 0.0
    %4114 = vmatpush1.msra.mxu0 0.0
    %4115 = vmatprep.subr.mxu0 0.0
    %4116 = vmatpush1.msra.mxu0 0.0
    %4117 = vmatprep.subr.mxu0 0.0
    %4118 = vmatpush1.msra.mxu0 0.0
    %4119 = vmatprep.subr.mxu0 0.0
    %4120 = vmatpush1.msra.mxu0 0.0
    %4121 = vmatprep.mubr.f32.mxu0 0.0
    %v4122 = vand.u32 %v3345, 4294901760
    %4123 = vmatmul.mubr.f32.gmra.mrb[0].mxu0 %v4122
    %v4124 = vpop.f32.mrb[0].mxu0
    %v4125 = vadd.f32 %v4004, %v4124
    %v4126 = vpop.f32.mrb[0].mxu0
    %v4127 = vadd.f32 %v4006, %v4126
    %4128 = vmatprep.mubr.f32.mxu0 0.0
    %v4129 = vand.u32 %v3348, 4294901760
    %4130 = vmatmul.mubr.f32.gmra.mrb[0].mxu0 %v4129
    %v4131 = vpop.f32.mrb[0].mxu0
    %v4132 = vadd.f32 %v4011, %v4131
    %v4133 = vpop.f32.mrb[0].mxu0
    %v4134 = vadd.f32 %v4013, %v4133
    %4135 = vmatprep.mubr.f32.mxu0 0.0
    %v4136 = vand.u32 %v3351, 4294901760
    %4137 = vmatmul.mubr.f32.gmra.mrb[0].mxu0 %v4136
    %v4138 = vpop.f32.mrb[0].mxu0
    %v4139 = vadd.f32 %v4018, %v4138
    %v4140 = vpop.f32.mrb[0].mxu0
    %v4141 = vadd.f32 %v4020, %v4140
    %4142 = vmatprep.mubr.f32.mxu0 0.0
    %v4143 = vand.u32 %v3354, 4294901760
    %4144 = vmatmul.mubr.f32.gmra.mrb[0].mxu0 %v4143
    %v4145 = vpop.f32.mrb[0].mxu0
    %v4146 = vadd.f32 %v4025, %v4145
    %v4147 = vpop.f32.mrb[0].mxu0
    %v4148 = vadd.f32 %v4027, %v4147
    %4149 = vmatprep.mubr.f32.mxu0 0.0
    %v4150 = vand.u32 %v3357, 4294901760
    %4151 = vmatmul.mubr.f32.gmra.mrb[0].mxu0 %v4150
    %v4152 = vpop.f32.mrb[0].mxu0
    %v4153 = vadd.f32 %v4032, %v4152
    %v4154 = vpop.f32.mrb[0].mxu0
    %v4155 = vadd.f32 %v4034, %v4154
    %4156 = vmatprep.mubr.f32.mxu0 0.0
    %v4157 = vand.u32 %v3360, 4294901760
    %4158 = vmatmul.mubr.f32.gmra.mrb[0].mxu0 %v4157
    %v4159 = vpop.f32.mrb[0].mxu0
    %v4160 = vadd.f32 %v4039, %v4159
    %v4161 = vpop.f32.mrb[0].mxu0
    %v4162 = vadd.f32 %v4041, %v4161
    %4163 = vmatprep.mubr.f32.mxu0 0.0
    %v4164 = vand.u32 %v3363, 4294901760
    %4165 = vmatmul.mubr.f32.gmra.mrb[0].mxu0 %v4164
    %v4166 = vpop.f32.mrb[0].mxu0
    %v4167 = vadd.f32 %v4046, %v4166
    %v4168 = vpop.f32.mrb[0].mxu0
    %v4169 = vadd.f32 %v4048, %v4168
    %4170 = vmatprep.mubr.f32.mxu0 0.0
    %v4171 = vand.u32 %v3366, 4294901760
    %4172 = vmatmul.mubr.f32.gmra.mrb[0].mxu0 %v4171
    %v4173 = vpop.f32.mrb[0].mxu0
    %v4174 = vadd.f32 %v4053, %v4173
    %v4175 = vpop.f32.mrb[0].mxu0
    %v4176 = vadd.f32 %v4055, %v4175
    %4177 = vdwg.mxu0
    %4178 = vmatprep.subr.mxu0 0.0
    %4179 = vmatpush1.msra.mxu0 %v3332
    %4180 = vmatprep.subr.mxu0 0.0
    %4181 = vmatpush1.msra.mxu0 %v3335
    %4182 = vmatprep.subr.mxu0 0.0
    %4183 = vmatpush1.msra.mxu0 0.0
    %4184 = vmatprep.subr.mxu0 0.0
    %4185 = vmatpush1.msra.mxu0 0.0
    %4186 = vmatprep.subr.mxu0 0.0
    %4187 = vmatpush1.msra.mxu0 0.0
    %4188 = vmatprep.subr.mxu0 0.0
    %4189 = vmatpush1.msra.mxu0 0.0
    %4190 = vmatprep.subr.mxu0 0.0
    %4191 = vmatpush1.msra.mxu0 0.0
    %4192 = vmatprep.subr.mxu0 0.0
    %4193 = vmatpush1.msra.mxu0 0.0
    %4194 = vmatprep.subr.mxu0 0.0
    %4195 = vmatpush1.msra.mxu0 0.0
    %4196 = vmatprep.subr.mxu0 0.0
    %4197 = vmatpush1.msra.mxu0 0.0
    %4198 = vmatprep.subr.mxu0 0.0
    %4199 = vmatpush1.msra.mxu0 0.0
    %4200 = vmatprep.subr.mxu0 0.0
    %4201 = vmatpush1.msra.mxu0 0.0
    %4202 = vmatprep.subr.mxu0 0.0
    %4203 = vmatpush1.msra.mxu0 0.0
    %4204 = vmatprep.subr.mxu0 0.0
    %4205 = vmatpush1.msra.mxu0 0.0
    %4206 = vmatprep.subr.mxu0 0.0
    %4207 = vmatpush1.msra.mxu0 0.0
    %4208 = vmatprep.subr.mxu0 0.0
    %4209 = vmatpush1.msra.mxu0 0.0
    %4210 = vmatprep.subr.mxu0 0.0
    %4211 = vmatpush1.msra.mxu0 0.0
    %4212 = vmatprep.subr.mxu0 0.0
    %4213 = vmatpush1.msra.mxu0 0.0
    %4214 = vmatprep.subr.mxu0 0.0
    %4215 = vmatpush1.msra.mxu0 0.0
    %4216 = vmatprep.subr.mxu0 0.0
    %4217 = vmatpush1.msra.mxu0 0.0
    %4218 = vmatprep.subr.mxu0 0.0
    %4219 = vmatpush1.msra.mxu0 0.0
    %4220 = vmatprep.subr.mxu0 0.0
    %4221 = vmatpush1.msra.mxu0 0.0
    %4222 = vmatprep.subr.mxu0 0.0
    %4223 = vmatpush1.msra.mxu0 0.0
    %4224 = vmatprep.subr.mxu0 0.0
    %4225 = vmatpush1.msra.mxu0 0.0
    %4226 = vmatprep.subr.mxu0 0.0
    %4227 = vmatpush1.msra.mxu0 0.0
    %4228 = vmatprep.subr.mxu0 0.0
    %4229 = vmatpush1.msra.mxu0 0.0
    %4230 = vmatprep.subr.mxu0 0.0
    %4231 = vmatpush1.msra.mxu0 0.0
    %4232 = vmatprep.subr.mxu0 0.0
    %4233 = vmatpush1.msra.mxu0 0.0
    %4234 = vmatprep.subr.mxu0 0.0
    %4235 = vmatpush1.msra.mxu0 0.0
    %4236 = vmatprep.subr.mxu0 0.0
    %4237 = vmatpush1.msra.mxu0 0.0
    %4238 = vmatprep.subr.mxu0 0.0
    %4239 = vmatpush1.msra.mxu0 0.0
    %4240 = vmatprep.subr.mxu0 0.0
    %4241 = vmatpush1.msra.mxu0 0.0
    %4242 = vmatprep.mubr.f32.mxu0 0.0
    %v4243 = vand.u32 %v3345, 4294901760
    %v4244 = vsub.f32 %v3345, %v4243
    %v4245 = vand.u32 %v4244, 4294901760
    %v4246 = vsub.f32 %v4244, %v4245
    %v4247 = vand.u32 %v4246, 4294901760
    %4248 = vmatmul.mubr.f32.gmra.mrb[0].mxu0 %v4247
    %v4249 = vpop.f32.mrb[0].mxu0
    %v4250 = vadd.f32 0.0, %v4249
    %v4251 = vpop.f32.mrb[0].mxu0
    %4252 = vmatprep.mubr.f32.mxu0 0.0
    %v4253 = vand.u32 %v3348, 4294901760
    %v4254 = vsub.f32 %v3348, %v4253
    %v4255 = vand.u32 %v4254, 4294901760
    %v4256 = vsub.f32 %v4254, %v4255
    %v4257 = vand.u32 %v4256, 4294901760
    %4258 = vmatmul.mubr.f32.gmra.mrb[0].mxu0 %v4257
    %v4259 = vpop.f32.mrb[0].mxu0
    %v4260 = vadd.f32 0.0, %v4259
    %v4261 = vpop.f32.mrb[0].mxu0
    %4262 = vmatprep.mubr.f32.mxu0 0.0
    %v4263 = vand.u32 %v3351, 4294901760
    %v4264 = vsub.f32 %v3351, %v4263
    %v4265 = vand.u32 %v4264, 4294901760
    %v4266 = vsub.f32 %v4264, %v4265
    %v4267 = vand.u32 %v4266, 4294901760
    %4268 = vmatmul.mubr.f32.gmra.mrb[0].mxu0 %v4267
    %v4269 = vpop.f32.mrb[0].mxu0
    %v4270 = vadd.f32 0.0, %v4269
    %v4271 = vpop.f32.mrb[0].mxu0
    %4272 = vmatprep.mubr.f32.mxu0 0.0
    %v4273 = vand.u32 %v3354, 4294901760
    %v4274 = vsub.f32 %v3354, %v4273
    %v4275 = vand.u32 %v4274, 4294901760
    %v4276 = vsub.f32 %v4274, %v4275
    %v4277 = vand.u32 %v4276, 4294901760
    %4278 = vmatmul.mubr.f32.gmra.mrb[0].mxu0 %v4277
    %v4279 = vpop.f32.mrb[0].mxu0
    %v4280 = vadd.f32 0.0, %v4279
    %v4281 = vpop.f32.mrb[0].mxu0
    %4282 = vmatprep.mubr.f32.mxu0 0.0
    %v4283 = vand.u32 %v3357, 4294901760
    %v4284 = vsub.f32 %v3357, %v4283
    %v4285 = vand.u32 %v4284, 4294901760
    %v4286 = vsub.f32 %v4284, %v4285
    %v4287 = vand.u32 %v4286, 4294901760
    %4288 = vmatmul.mubr.f32.gmra.mrb[0].mxu0 %v4287
    %v4289 = vpop.f32.mrb[0].mxu0
    %v4290 = vadd.f32 0.0, %v4289
    %v4291 = vpop.f32.mrb[0].mxu0
    %4292 = vmatprep.mubr.f32.mxu0 0.0
    %v4293 = vand.u32 %v3360, 4294901760
    %v4294 = vsub.f32 %v3360, %v4293
    %v4295 = vand.u32 %v4294, 4294901760
    %v4296 = vsub.f32 %v4294, %v4295
    %v4297 = vand.u32 %v4296, 4294901760
    %4298 = vmatmul.mubr.f32.gmra.mrb[0].mxu0 %v4297
    %v4299 = vpop.f32.mrb[0].mxu0
    %v4300 = vadd.f32 0.0, %v4299
    %v4301 = vpop.f32.mrb[0].mxu0
    %4302 = vmatprep.mubr.f32.mxu0 0.0
    %v4303 = vand.u32 %v3363, 4294901760
    %v4304 = vsub.f32 %v3363, %v4303
    %v4305 = vand.u32 %v4304, 4294901760
    %v4306 = vsub.f32 %v4304, %v4305
    %v4307 = vand.u32 %v4306, 4294901760
    %4308 = vmatmul.mubr.f32.gmra.mrb[0].mxu0 %v4307
    %v4309 = vpop.f32.mrb[0].mxu0
    %v4310 = vadd.f32 0.0, %v4309
    %v4311 = vpop.f32.mrb[0].mxu0
    %4312 = vmatprep.mubr.f32.mxu0 0.0
    %v4313 = vand.u32 %v3366, 4294901760
    %v4314 = vsub.f32 %v3366, %v4313
    %v4315 = vand.u32 %v4314, 4294901760
    %v4316 = vsub.f32 %v4314, %v4315
    %v4317 = vand.u32 %v4316, 4294901760
    %4318 = vmatmul.mubr.f32.gmra.mrb[0].mxu0 %v4317
    %v4319 = vpop.f32.mrb[0].mxu0
    %v4320 = vadd.f32 0.0, %v4319
    %v4321 = vpop.f32.mrb[0].mxu0
    %4322 = vdwg.mxu0
    %4323 = vmatprep.subr.mxu0 0.0
    %v4324 = vsub.f32 %v3332, %v3332
    %v4325 = vand.u32 %v4324, 4294901760
    %v4326 = vsub.f32 %v4324, %v4325
    %v4327 = vand.u32 %v4326, 4294901760
    %4328 = vmatpush1.msra.mxu0 %v4327
    %4329 = vmatprep.subr.mxu0 0.0
    %v4330 = vsub.f32 %v3335, %v3335
    %v4331 = vand.u32 %v4330, 4294901760
    %v4332 = vsub.f32 %v4330, %v4331
    %v4333 = vand.u32 %v4332, 4294901760
    %4334 = vmatpush1.msra.mxu0 %v4333
    %4335 = vmatprep.subr.mxu0 0.0
    %4336 = vmatpush1.msra.mxu0 0.0
    %4337 = vmatprep.subr.mxu0 0.0
    %4338 = vmatpush1.msra.mxu0 0.0
    %4339 = vmatprep.subr.mxu0 0.0
    %4340 = vmatpush1.msra.mxu0 0.0
    %4341 = vmatprep.subr.mxu0 0.0
    %4342 = vmatpush1.msra.mxu0 0.0
    %4343 = vmatprep.subr.mxu0 0.0
    %4344 = vmatpush1.msra.mxu0 0.0
    %4345 = vmatprep.subr.mxu0 0.0
    %4346 = vmatpush1.msra.mxu0 0.0
    %4347 = vmatprep.subr.mxu0 0.0
    %4348 = vmatpush1.msra.mxu0 0.0
    %4349 = vmatprep.subr.mxu0 0.0
    %4350 = vmatpush1.msra.mxu0 0.0
    %4351 = vmatprep.subr.mxu0 0.0
    %4352 = vmatpush1.msra.mxu0 0.0
    %4353 = vmatprep.subr.mxu0 0.0
    %4354 = vmatpush1.msra.mxu0 0.0
    %4355 = vmatprep.subr.mxu0 0.0
    %4356 = vmatpush1.msra.mxu0 0.0
    %4357 = vmatprep.subr.mxu0 0.0
    %4358 = vmatpush1.msra.mxu0 0.0
    %4359 = vmatprep.subr.mxu0 0.0
    %4360 = vmatpush1.msra.mxu0 0.0
    %4361 = vmatprep.subr.mxu0 0.0
    %4362 = vmatpush1.msra.mxu0 0.0
    %4363 = vmatprep.subr.mxu0 0.0
    %4364 = vmatpush1.msra.mxu0 0.0
    %4365 = vmatprep.subr.mxu0 0.0
    %4366 = vmatpush1.msra.mxu0 0.0
    %4367 = vmatprep.subr.mxu0 0.0
    %4368 = vmatpush1.msra.mxu0 0.0
    %4369 = vmatprep.subr.mxu0 0.0
    %4370 = vmatpush1.msra.mxu0 0.0
    %4371 = vmatprep.subr.mxu0 0.0
    %4372 = vmatpush1.msra.mxu0 0.0
    %4373 = vmatprep.subr.mxu0 0.0
    %4374 = vmatpush1.msra.mxu0 0.0
    %4375 = vmatprep.subr.mxu0 0.0
    %4376 = vmatpush1.msra.mxu0 0.0
    %4377 = vmatprep.subr.mxu0 0.0
    %4378 = vmatpush1.msra.mxu0 0.0
    %4379 = vmatprep.subr.mxu0 0.0
    %4380 = vmatpush1.msra.mxu0 0.0
    %4381 = vmatprep.subr.mxu0 0.0
    %4382 = vmatpush1.msra.mxu0 0.0
    %4383 = vmatprep.subr.mxu0 0.0
    %4384 = vmatpush1.msra.mxu0 0.0
    %4385 = vmatprep.subr.mxu0 0.0
    %4386 = vmatpush1.msra.mxu0 0.0
    %4387 = vmatprep.subr.mxu0 0.0
    %4388 = vmatpush1.msra.mxu0 0.0
    %4389 = vmatprep.subr.mxu0 0.0
    %4390 = vmatpush1.msra.mxu0 0.0
    %4391 = vmatprep.subr.mxu0 0.0
    %4392 = vmatpush1.msra.mxu0 0.0
    %4393 = vmatprep.subr.mxu0 0.0
    %4394 = vmatpush1.msra.mxu0 0.0
    %4395 = vmatprep.mubr.f32.mxu0 0.0
    %v4396 = vand.u32 %v3345, 4294901760
    %4397 = vmatmul.mubr.f32.gmra.mrb[0].mxu0 %v4396
    %v4398 = vpop.f32.mrb[0].mxu0
    %v4399 = vadd.f32 %v4250, %v4398
    %v4400 = vpop.f32.mrb[0].mxu0
    %4401 = vmatprep.mubr.f32.mxu0 0.0
    %v4402 = vand.u32 %v3348, 4294901760
    %4403 = vmatmul.mubr.f32.gmra.mrb[0].mxu0 %v4402
    %v4404 = vpop.f32.mrb[0].mxu0
    %v4405 = vadd.f32 %v4260, %v4404
    %v4406 = vpop.f32.mrb[0].mxu0
    %4407 = vmatprep.mubr.f32.mxu0 0.0
    %v4408 = vand.u32 %v3351, 4294901760
    %4409 = vmatmul.mubr.f32.gmra.mrb[0].mxu0 %v4408
    %v4410 = vpop.f32.mrb[0].mxu0
    %v4411 = vadd.f32 %v4270, %v4410
    %v4412 = vpop.f32.mrb[0].mxu0
    %4413 = vmatprep.mubr.f32.mxu0 0.0
    %v4414 = vand.u32 %v3354, 4294901760
    %4415 = vmatmul.mubr.f32.gmra.mrb[0].mxu0 %v4414
    %v4416 = vpop.f32.mrb[0].mxu0
    %v4417 = vadd.f32 %v4280, %v4416
    %v4418 = vpop.f32.mrb[0].mxu0
    %4419 = vmatprep.mubr.f32.mxu0 0.0
    %v4420 = vand.u32 %v3357, 4294901760
    %4421 = vmatmul.mubr.f32.gmra.mrb[0].mxu0 %v4420
    %v4422 = vpop.f32.mrb[0].mxu0
    %v4423 = vadd.f32 %v4290, %v4422
    %v4424 = vpop.f32.mrb[0].mxu0
    %4425 = vmatprep.mubr.f32.mxu0 0.0
    %v4426 = vand.u32 %v3360, 4294901760
    %4427 = vmatmul.mubr.f32.gmra.mrb[0].mxu0 %v4426
    %v4428 = vpop.f32.mrb[0].mxu0
    %v4429 = vadd.f32 %v4300, %v4428
    %v4430 = vpop.f32.mrb[0].mxu0
    %4431 = vmatprep.mubr.f32.mxu0 0.0
    %v4432 = vand.u32 %v3363, 4294901760
    %4433 = vmatmul.mubr.f32.gmra.mrb[0].mxu0 %v4432
    %v4434 = vpop.f32.mrb[0].mxu0
    %v4435 = vadd.f32 %v4310, %v4434
    %v4436 = vpop.f32.mrb[0].mxu0
    %4437 = vmatprep.mubr.f32.mxu0 0.0
    %v4438 = vand.u32 %v3366, 4294901760
    %4439 = vmatmul.mubr.f32.gmra.mrb[0].mxu0 %v4438
    %v4440 = vpop.f32.mrb[0].mxu0
    %v4441 = vadd.f32 %v4320, %v4440
    %v4442 = vpop.f32.mrb[0].mxu0
    %4443 = vdwg.mxu0
    %4444 = vmatprep.subr.mxu0 0.0
    %v4445 = vsub.f32 %v3332, %v3332
    %4446 = vmatpush1.msra.mxu0 %v4445
    %4447 = vmatprep.subr.mxu0 0.0
    %v4448 = vsub.f32 %v3335, %v3335
    %4449 = vmatpush1.msra.mxu0 %v4448
    %4450 = vmatprep.subr.mxu0 0.0
    %4451 = vmatpush1.msra.mxu0 0.0
    %4452 = vmatprep.subr.mxu0 0.0
    %4453 = vmatpush1.msra.mxu0 0.0
    %4454 = vmatprep.subr.mxu0 0.0
    %4455 = vmatpush1.msra.mxu0 0.0
    %4456 = vmatprep.subr.mxu0 0.0
    %4457 = vmatpush1.msra.mxu0 0.0
    %4458 = vmatprep.subr.mxu0 0.0
    %4459 = vmatpush1.msra.mxu0 0.0
    %4460 = vmatprep.subr.mxu0 0.0
    %4461 = vmatpush1.msra.mxu0 0.0
    %4462 = vmatprep.subr.mxu0 0.0
    %4463 = vmatpush1.msra.mxu0 0.0
    %4464 = vmatprep.subr.mxu0 0.0
    %4465 = vmatpush1.msra.mxu0 0.0
    %4466 = vmatprep.subr.mxu0 0.0
    %4467 = vmatpush1.msra.mxu0 0.0
    %4468 = vmatprep.subr.mxu0 0.0
    %4469 = vmatpush1.msra.mxu0 0.0
    %4470 = vmatprep.subr.mxu0 0.0
    %4471 = vmatpush1.msra.mxu0 0.0
    %4472 = vmatprep.subr.mxu0 0.0
    %4473 = vmatpush1.msra.mxu0 0.0
    %4474 = vmatprep.subr.mxu0 0.0
    %4475 = vmatpush1.msra.mxu0 0.0
    %4476 = vmatprep.subr.mxu0 0.0
    %4477 = vmatpush1.msra.mxu0 0.0
    %4478 = vmatprep.subr.mxu0 0.0
    %4479 = vmatpush1.msra.mxu0 0.0
    %4480 = vmatprep.subr.mxu0 0.0
    %4481 = vmatpush1.msra.mxu0 0.0
    %4482 = vmatprep.subr.mxu0 0.0
    %4483 = vmatpush1.msra.mxu0 0.0
    %4484 = vmatprep.subr.mxu0 0.0
    %4485 = vmatpush1.msra.mxu0 0.0
    %4486 = vmatprep.subr.mxu0 0.0
    %4487 = vmatpush1.msra.mxu0 0.0
    %4488 = vmatprep.subr.mxu0 0.0
    %4489 = vmatpush1.msra.mxu0 0.0
    %4490 = vmatprep.subr.mxu0 0.0
    %4491 = vmatpush1.msra.mxu0 0.0
    %4492 = vmatprep.subr.mxu0 0.0
    %4493 = vmatpush1.msra.mxu0 0.0
    %4494 = vmatprep.subr.mxu0 0.0
    %4495 = vmatpush1.msra.mxu0 0.0
    %4496 = vmatprep.subr.mxu0 0.0
    %4497 = vmatpush1.msra.mxu0 0.0
    %4498 = vmatprep.subr.mxu0 0.0
    %4499 = vmatpush1.msra.mxu0 0.0
    %4500 = vmatprep.subr.mxu0 0.0
    %4501 = vmatpush1.msra.mxu0 0.0
    %4502 = vmatprep.subr.mxu0 0.0
    %4503 = vmatpush1.msra.mxu0 0.0
    %4504 = vmatprep.subr.mxu0 0.0
    %4505 = vmatpush1.msra.mxu0 0.0
    %4506 = vmatprep.subr.mxu0 0.0
    %4507 = vmatpush1.msra.mxu0 0.0
    %4508 = vmatprep.subr.mxu0 0.0
    %4509 = vmatpush1.msra.mxu0 0.0
    %4510 = vmatprep.mubr.f32.mxu0 0.0
    %v4511 = vand.u32 %v3345, 4294901760
    %v4512 = vsub.f32 %v3345, %v4511
    %4513 = vmatmul.mubr.f32.gmra.mrb[0].mxu0 %v4512
    %v4514 = vpop.f32.mrb[0].mxu0
    %v4515 = vadd.f32 %v4399, %v4514
    %v4516 = vpop.f32.mrb[0].mxu0
    %4517 = vmatprep.mubr.f32.mxu0 0.0
    %v4518 = vand.u32 %v3348, 4294901760
    %v4519 = vsub.f32 %v3348, %v4518
    %4520 = vmatmul.mubr.f32.gmra.mrb[0].mxu0 %v4519
    %v4521 = vpop.f32.mrb[0].mxu0
    %v4522 = vadd.f32 %v4405, %v4521
    %v4523 = vpop.f32.mrb[0].mxu0
    %4524 = vmatprep.mubr.f32.mxu0 0.0
    %v4525 = vand.u32 %v3351, 4294901760
    %v4526 = vsub.f32 %v3351, %v4525
    %4527 = vmatmul.mubr.f32.gmra.mrb[0].mxu0 %v4526
    %v4528 = vpop.f32.mrb[0].mxu0
    %v4529 = vadd.f32 %v4411, %v4528
    %v4530 = vpop.f32.mrb[0].mxu0
    %4531 = vmatprep.mubr.f32.mxu0 0.0
    %v4532 = vand.u32 %v3354, 4294901760
    %v4533 = vsub.f32 %v3354, %v4532
    %4534 = vmatmul.mubr.f32.gmra.mrb[0].mxu0 %v4533
    %v4535 = vpop.f32.mrb[0].mxu0
    %v4536 = vadd.f32 %v4417, %v4535
    %v4537 = vpop.f32.mrb[0].mxu0
    %4538 = vmatprep.mubr.f32.mxu0 0.0
    %v4539 = vand.u32 %v3357, 4294901760
    %v4540 = vsub.f32 %v3357, %v4539
    %4541 = vmatmul.mubr.f32.gmra.mrb[0].mxu0 %v4540
    %v4542 = vpop.f32.mrb[0].mxu0
    %v4543 = vadd.f32 %v4423, %v4542
    %v4544 = vpop.f32.mrb[0].mxu0
    %4545 = vmatprep.mubr.f32.mxu0 0.0
    %v4546 = vand.u32 %v3360, 4294901760
    %v4547 = vsub.f32 %v3360, %v4546
    %4548 = vmatmul.mubr.f32.gmra.mrb[0].mxu0 %v4547
    %v4549 = vpop.f32.mrb[0].mxu0
    %v4550 = vadd.f32 %v4429, %v4549
    %v4551 = vpop.f32.mrb[0].mxu0
    %4552 = vmatprep.mubr.f32.mxu0 0.0
    %v4553 = vand.u32 %v3363, 4294901760
    %v4554 = vsub.f32 %v3363, %v4553
    %4555 = vmatmul.mubr.f32.gmra.mrb[0].mxu0 %v4554
    %v4556 = vpop.f32.mrb[0].mxu0
    %v4557 = vadd.f32 %v4435, %v4556
    %v4558 = vpop.f32.mrb[0].mxu0
    %4559 = vmatprep.mubr.f32.mxu0 0.0
    %v4560 = vand.u32 %v3366, 4294901760
    %v4561 = vsub.f32 %v3366, %v4560
    %4562 = vmatmul.mubr.f32.gmra.mrb[0].mxu0 %v4561
    %v4563 = vpop.f32.mrb[0].mxu0
    %v4564 = vadd.f32 %v4441, %v4563
    %v4565 = vpop.f32.mrb[0].mxu0
    %4566 = vdwg.mxu0
    %4567 = vmatprep.subr.mxu0 0.0
    %4568 = vmatpush1.msra.mxu0 %v3332
    %4569 = vmatprep.subr.mxu0 0.0
    %4570 = vmatpush1.msra.mxu0 %v3335
    %4571 = vmatprep.subr.mxu0 0.0
    %4572 = vmatpush1.msra.mxu0 0.0
    %4573 = vmatprep.subr.mxu0 0.0
    %4574 = vmatpush1.msra.mxu0 0.0
    %4575 = vmatprep.subr.mxu0 0.0
    %4576 = vmatpush1.msra.mxu0 0.0
    %4577 = vmatprep.subr.mxu0 0.0
    %4578 = vmatpush1.msra.mxu0 0.0
    %4579 = vmatprep.subr.mxu0 0.0
    %4580 = vmatpush1.msra.mxu0 0.0
    %4581 = vmatprep.subr.mxu0 0.0
    %4582 = vmatpush1.msra.mxu0 0.0
    %4583 = vmatprep.subr.mxu0 0.0
    %4584 = vmatpush1.msra.mxu0 0.0
    %4585 = vmatprep.subr.mxu0 0.0
    %4586 = vmatpush1.msra.mxu0 0.0
    %4587 = vmatprep.subr.mxu0 0.0
    %4588 = vmatpush1.msra.mxu0 0.0
    %4589 = vmatprep.subr.mxu0 0.0
    %4590 = vmatpush1.msra.mxu0 0.0
    %4591 = vmatprep.subr.mxu0 0.0
    %4592 = vmatpush1.msra.mxu0 0.0
    %4593 = vmatprep.subr.mxu0 0.0
    %4594 = vmatpush1.msra.mxu0 0.0
    %4595 = vmatprep.subr.mxu0 0.0
    %4596 = vmatpush1.msra.mxu0 0.0
    %4597 = vmatprep.subr.mxu0 0.0
    %4598 = vmatpush1.msra.mxu0 0.0
    %4599 = vmatprep.subr.mxu0 0.0
    %4600 = vmatpush1.msra.mxu0 0.0
    %4601 = vmatprep.subr.mxu0 0.0
    %4602 = vmatpush1.msra.mxu0 0.0
    %4603 = vmatprep.subr.mxu0 0.0
    %4604 = vmatpush1.msra.mxu0 0.0
    %4605 = vmatprep.subr.mxu0 0.0
    %4606 = vmatpush1.msra.mxu0 0.0
    %4607 = vmatprep.subr.mxu0 0.0
    %4608 = vmatpush1.msra.mxu0 0.0
    %4609 = vmatprep.subr.mxu0 0.0
    %4610 = vmatpush1.msra.mxu0 0.0
    %4611 = vmatprep.subr.mxu0 0.0
    %4612 = vmatpush1.msra.mxu0 0.0
    %4613 = vmatprep.subr.mxu0 0.0
    %4614 = vmatpush1.msra.mxu0 0.0
    %4615 = vmatprep.subr.mxu0 0.0
    %4616 = vmatpush1.msra.mxu0 0.0
    %4617 = vmatprep.subr.mxu0 0.0
    %4618 = vmatpush1.msra.mxu0 0.0
    %4619 = vmatprep.subr.mxu0 0.0
    %4620 = vmatpush1.msra.mxu0 0.0
    %4621 = vmatprep.subr.mxu0 0.0
    %4622 = vmatpush1.msra.mxu0 0.0
    %4623 = vmatprep.subr.mxu0 0.0
    %4624 = vmatpush1.msra.mxu0 0.0
    %4625 = vmatprep.subr.mxu0 0.0
    %4626 = vmatpush1.msra.mxu0 0.0
    %4627 = vmatprep.subr.mxu0 0.0
    %4628 = vmatpush1.msra.mxu0 0.0
    %4629 = vmatprep.subr.mxu0 0.0
    %4630 = vmatpush1.msra.mxu0 0.0
    %4631 = vmatprep.mubr.f32.mxu0 0.0
    %v4632 = vand.u32 %v3345, 4294901760
    %v4633 = vsub.f32 %v3345, %v4632
    %v4634 = vand.u32 %v4633, 4294901760
    %4635 = vmatmul.mubr.f32.gmra.mrb[0].mxu0 %v4634
    %v4636 = vpop.f32.mrb[0].mxu0
    %v4637 = vadd.f32 %v4515, %v4636
    %v4638 = vpop.f32.mrb[0].mxu0
    %4639 = vmatprep.mubr.f32.mxu0 0.0
    %v4640 = vand.u32 %v3348, 4294901760
    %v4641 = vsub.f32 %v3348, %v4640
    %v4642 = vand.u32 %v4641, 4294901760
    %4643 = vmatmul.mubr.f32.gmra.mrb[0].mxu0 %v4642
    %v4644 = vpop.f32.mrb[0].mxu0
    %v4645 = vadd.f32 %v4522, %v4644
    %v4646 = vpop.f32.mrb[0].mxu0
    %4647 = vmatprep.mubr.f32.mxu0 0.0
    %v4648 = vand.u32 %v3351, 4294901760
    %v4649 = vsub.f32 %v3351, %v4648
    %v4650 = vand.u32 %v4649, 4294901760
    %4651 = vmatmul.mubr.f32.gmra.mrb[0].mxu0 %v4650
    %v4652 = vpop.f32.mrb[0].mxu0
    %v4653 = vadd.f32 %v4529, %v4652
    %v4654 = vpop.f32.mrb[0].mxu0
    %4655 = vmatprep.mubr.f32.mxu0 0.0
    %v4656 = vand.u32 %v3354, 4294901760
    %v4657 = vsub.f32 %v3354, %v4656
    %v4658 = vand.u32 %v4657, 4294901760
    %4659 = vmatmul.mubr.f32.gmra.mrb[0].mxu0 %v4658
    %v4660 = vpop.f32.mrb[0].mxu0
    %v4661 = vadd.f32 %v4536, %v4660
    %v4662 = vpop.f32.mrb[0].mxu0
    %4663 = vmatprep.mubr.f32.mxu0 0.0
    %v4664 = vand.u32 %v3357, 4294901760
    %v4665 = vsub.f32 %v3357, %v4664
    %v4666 = vand.u32 %v4665, 4294901760
    %4667 = vmatmul.mubr.f32.gmra.mrb[0].mxu0 %v4666
    %v4668 = vpop.f32.mrb[0].mxu0
    %v4669 = vadd.f32 %v4543, %v4668
    %v4670 = vpop.f32.mrb[0].mxu0
    %4671 = vmatprep.mubr.f32.mxu0 0.0
    %v4672 = vand.u32 %v3360, 4294901760
    %v4673 = vsub.f32 %v3360, %v4672
    %v4674 = vand.u32 %v4673, 4294901760
    %4675 = vmatmul.mubr.f32.gmra.mrb[0].mxu0 %v4674
    %v4676 = vpop.f32.mrb[0].mxu0
    %v4677 = vadd.f32 %v4550, %v4676
    %v4678 = vpop.f32.mrb[0].mxu0
    %4679 = vmatprep.mubr.f32.mxu0 0.0
    %v4680 = vand.u32 %v3363, 4294901760
    %v4681 = vsub.f32 %v3363, %v4680
    %v4682 = vand.u32 %v4681, 4294901760
    %4683 = vmatmul.mubr.f32.gmra.mrb[0].mxu0 %v4682
    %v4684 = vpop.f32.mrb[0].mxu0
    %v4685 = vadd.f32 %v4557, %v4684
    %v4686 = vpop.f32.mrb[0].mxu0
    %4687 = vmatprep.mubr.f32.mxu0 0.0
    %v4688 = vand.u32 %v3366, 4294901760
    %v4689 = vsub.f32 %v3366, %v4688
    %v4690 = vand.u32 %v4689, 4294901760
    %4691 = vmatmul.mubr.f32.gmra.mrb[0].mxu0 %v4690
    %v4692 = vpop.f32.mrb[0].mxu0
    %v4693 = vadd.f32 %v4564, %v4692
    %v4694 = vpop.f32.mrb[0].mxu0
    %4695 = vdwg.mxu0
    %4696 = vmatprep.subr.mxu0 0.0
    %v4697 = vsub.f32 %v3332, %v3332
    %v4698 = vand.u32 %v4697, 4294901760
    %4699 = vmatpush1.msra.mxu0 %v4698
    %4700 = vmatprep.subr.mxu0 0.0
    %v4701 = vsub.f32 %v3335, %v3335
    %v4702 = vand.u32 %v4701, 4294901760
    %4703 = vmatpush1.msra.mxu0 %v4702
    %4704 = vmatprep.subr.mxu0 0.0
    %4705 = vmatpush1.msra.mxu0 0.0
    %4706 = vmatprep.subr.mxu0 0.0
    %4707 = vmatpush1.msra.mxu0 0.0
    %4708 = vmatprep.subr.mxu0 0.0
    %4709 = vmatpush1.msra.mxu0 0.0
    %4710 = vmatprep.subr.mxu0 0.0
    %4711 = vmatpush1.msra.mxu0 0.0
    %4712 = vmatprep.subr.mxu0 0.0
    %4713 = vmatpush1.msra.mxu0 0.0
    %4714 = vmatprep.subr.mxu0 0.0
    %4715 = vmatpush1.msra.mxu0 0.0
    %4716 = vmatprep.subr.mxu0 0.0
    %4717 = vmatpush1.msra.mxu0 0.0
    %4718 = vmatprep.subr.mxu0 0.0
    %4719 = vmatpush1.msra.mxu0 0.0
    %4720 = vmatprep.subr.mxu0 0.0
    %4721 = vmatpush1.msra.mxu0 0.0
    %4722 = vmatprep.subr.mxu0 0.0
    %4723 = vmatpush1.msra.mxu0 0.0
    %4724 = vmatprep.subr.mxu0 0.0
    %4725 = vmatpush1.msra.mxu0 0.0
    %4726 = vmatprep.subr.mxu0 0.0
    %4727 = vmatpush1.msra.mxu0 0.0
    %4728 = vmatprep.subr.mxu0 0.0
    %4729 = vmatpush1.msra.mxu0 0.0
    %4730 = vmatprep.subr.mxu0 0.0
    %4731 = vmatpush1.msra.mxu0 0.0
    %4732 = vmatprep.subr.mxu0 0.0
    %4733 = vmatpush1.msra.mxu0 0.0
    %4734 = vmatprep.subr.mxu0 0.0
    %4735 = vmatpush1.msra.mxu0 0.0
    %4736 = vmatprep.subr.mxu0 0.0
    %4737 = vmatpush1.msra.mxu0 0.0
    %4738 = vmatprep.subr.mxu0 0.0
    %4739 = vmatpush1.msra.mxu0 0.0
    %4740 = vmatprep.subr.mxu0 0.0
    %4741 = vmatpush1.msra.mxu0 0.0
    %4742 = vmatprep.subr.mxu0 0.0
    %4743 = vmatpush1.msra.mxu0 0.0
    %4744 = vmatprep.subr.mxu0 0.0
    %4745 = vmatpush1.msra.mxu0 0.0
    %4746 = vmatprep.subr.mxu0 0.0
    %4747 = vmatpush1.msra.mxu0 0.0
    %4748 = vmatprep.subr.mxu0 0.0
    %4749 = vmatpush1.msra.mxu0 0.0
    %4750 = vmatprep.subr.mxu0 0.0
    %4751 = vmatpush1.msra.mxu0 0.0
    %4752 = vmatprep.subr.mxu0 0.0
    %4753 = vmatpush1.msra.mxu0 0.0
    %4754 = vmatprep.subr.mxu0 0.0
    %4755 = vmatpush1.msra.mxu0 0.0
    %4756 = vmatprep.subr.mxu0 0.0
    %4757 = vmatpush1.msra.mxu0 0.0
    %4758 = vmatprep.subr.mxu0 0.0
    %4759 = vmatpush1.msra.mxu0 0.0
    %4760 = vmatprep.subr.mxu0 0.0
    %4761 = vmatpush1.msra.mxu0 0.0
    %4762 = vmatprep.subr.mxu0 0.0
    %4763 = vmatpush1.msra.mxu0 0.0
    %4764 = vmatprep.mubr.f32.mxu0 0.0
    %v4765 = vand.u32 %v3345, 4294901760
    %4766 = vmatmul.mubr.f32.gmra.mrb[0].mxu0 %v4765
    %v4767 = vpop.f32.mrb[0].mxu0
    %v4768 = vadd.f32 %v4637, %v4767
    %v4769 = vpop.f32.mrb[0].mxu0
    %4770 = vmatprep.mubr.f32.mxu0 0.0
    %v4771 = vand.u32 %v3348, 4294901760
    %4772 = vmatmul.mubr.f32.gmra.mrb[0].mxu0 %v4771
    %v4773 = vpop.f32.mrb[0].mxu0
    %v4774 = vadd.f32 %v4645, %v4773
    %v4775 = vpop.f32.mrb[0].mxu0
    %4776 = vmatprep.mubr.f32.mxu0 0.0
    %v4777 = vand.u32 %v3351, 4294901760
    %4778 = vmatmul.mubr.f32.gmra.mrb[0].mxu0 %v4777
    %v4779 = vpop.f32.mrb[0].mxu0
    %v4780 = vadd.f32 %v4653, %v4779
    %v4781 = vpop.f32.mrb[0].mxu0
    %4782 = vmatprep.mubr.f32.mxu0 0.0
    %v4783 = vand.u32 %v3354, 4294901760
    %4784 = vmatmul.mubr.f32.gmra.mrb[0].mxu0 %v4783
    %v4785 = vpop.f32.mrb[0].mxu0
    %v4786 = vadd.f32 %v4661, %v4785
    %v4787 = vpop.f32.mrb[0].mxu0
    %4788 = vmatprep.mubr.f32.mxu0 0.0
    %v4789 = vand.u32 %v3357, 4294901760
    %4790 = vmatmul.mubr.f32.gmra.mrb[0].mxu0 %v4789
    %v4791 = vpop.f32.mrb[0].mxu0
    %v4792 = vadd.f32 %v4669, %v4791
    %v4793 = vpop.f32.mrb[0].mxu0
    %4794 = vmatprep.mubr.f32.mxu0 0.0
    %v4795 = vand.u32 %v3360, 4294901760
    %4796 = vmatmul.mubr.f32.gmra.mrb[0].mxu0 %v4795
    %v4797 = vpop.f32.mrb[0].mxu0
    %v4798 = vadd.f32 %v4677, %v4797
    %v4799 = vpop.f32.mrb[0].mxu0
    %4800 = vmatprep.mubr.f32.mxu0 0.0
    %v4801 = vand.u32 %v3363, 4294901760
    %4802 = vmatmul.mubr.f32.gmra.mrb[0].mxu0 %v4801
    %v4803 = vpop.f32.mrb[0].mxu0
    %v4804 = vadd.f32 %v4685, %v4803
    %v4805 = vpop.f32.mrb[0].mxu0
    %4806 = vmatprep.mubr.f32.mxu0 0.0
    %v4807 = vand.u32 %v3366, 4294901760
    %4808 = vmatmul.mubr.f32.gmra.mrb[0].mxu0 %v4807
    %v4809 = vpop.f32.mrb[0].mxu0
    %v4810 = vadd.f32 %v4693, %v4809
    %v4811 = vpop.f32.mrb[0].mxu0
    %4812 = vdwg.mxu0
    %4813 = vmatprep.subr.mxu0 0.0
    %4814 = vmatpush1.msra.mxu0 %v3332
    %4815 = vmatprep.subr.mxu0 0.0
    %4816 = vmatpush1.msra.mxu0 %v3335
    %4817 = vmatprep.subr.mxu0 0.0
    %4818 = vmatpush1.msra.mxu0 0.0
    %4819 = vmatprep.subr.mxu0 0.0
    %4820 = vmatpush1.msra.mxu0 0.0
    %4821 = vmatprep.subr.mxu0 0.0
    %4822 = vmatpush1.msra.mxu0 0.0
    %4823 = vmatprep.subr.mxu0 0.0
    %4824 = vmatpush1.msra.mxu0 0.0
    %4825 = vmatprep.subr.mxu0 0.0
    %4826 = vmatpush1.msra.mxu0 0.0
    %4827 = vmatprep.subr.mxu0 0.0
    %4828 = vmatpush1.msra.mxu0 0.0
    %4829 = vmatprep.subr.mxu0 0.0
    %4830 = vmatpush1.msra.mxu0 0.0
    %4831 = vmatprep.subr.mxu0 0.0
    %4832 = vmatpush1.msra.mxu0 0.0
    %4833 = vmatprep.subr.mxu0 0.0
    %4834 = vmatpush1.msra.mxu0 0.0
    %4835 = vmatprep.subr.mxu0 0.0
    %4836 = vmatpush1.msra.mxu0 0.0
    %4837 = vmatprep.subr.mxu0 0.0
    %4838 = vmatpush1.msra.mxu0 0.0
    %4839 = vmatprep.subr.mxu0 0.0
    %4840 = vmatpush1.msra.mxu0 0.0
    %4841 = vmatprep.subr.mxu0 0.0
    %4842 = vmatpush1.msra.mxu0 0.0
    %4843 = vmatprep.subr.mxu0 0.0
    %4844 = vmatpush1.msra.mxu0 0.0
    %4845 = vmatprep.subr.mxu0 0.0
    %4846 = vmatpush1.msra.mxu0 0.0
    %4847 = vmatprep.subr.mxu0 0.0
    %4848 = vmatpush1.msra.mxu0 0.0
    %4849 = vmatprep.subr.mxu0 0.0
    %4850 = vmatpush1.msra.mxu0 0.0
    %4851 = vmatprep.subr.mxu0 0.0
    %4852 = vmatpush1.msra.mxu0 0.0
    %4853 = vmatprep.subr.mxu0 0.0
    %4854 = vmatpush1.msra.mxu0 0.0
    %4855 = vmatprep.subr.mxu0 0.0
    %4856 = vmatpush1.msra.mxu0 0.0
    %4857 = vmatprep.subr.mxu0 0.0
    %4858 = vmatpush1.msra.mxu0 0.0
    %4859 = vmatprep.subr.mxu0 0.0
    %4860 = vmatpush1.msra.mxu0 0.0
    %4861 = vmatprep.subr.mxu0 0.0
    %4862 = vmatpush1.msra.mxu0 0.0
    %4863 = vmatprep.subr.mxu0 0.0
    %4864 = vmatpush1.msra.mxu0 0.0
    %4865 = vmatprep.subr.mxu0 0.0
    %4866 = vmatpush1.msra.mxu0 0.0
    %4867 = vmatprep.subr.mxu0 0.0
    %4868 = vmatpush1.msra.mxu0 0.0
    %4869 = vmatprep.subr.mxu0 0.0
    %4870 = vmatpush1.msra.mxu0 0.0
    %4871 = vmatprep.subr.mxu0 0.0
    %4872 = vmatpush1.msra.mxu0 0.0
    %4873 = vmatprep.subr.mxu0 0.0
    %4874 = vmatpush1.msra.mxu0 0.0
    %4875 = vmatprep.subr.mxu0 0.0
    %4876 = vmatpush1.msra.mxu0 0.0
    %4877 = vmatprep.mubr.f32.mxu0 0.0
    %v4878 = vand.u32 %v3345, 4294901760
    %4879 = vmatmul.mubr.f32.gmra.mrb[0].mxu0 %v4878
    %v4880 = vpop.f32.mrb[0].mxu0
    %v4881 = vadd.f32 %v4768, %v4880
    %v4882 = vpop.f32.mrb[0].mxu0
    %4883 = vmatprep.mubr.f32.mxu0 0.0
    %v4884 = vand.u32 %v3348, 4294901760
    %4885 = vmatmul.mubr.f32.gmra.mrb[0].mxu0 %v4884
    %v4886 = vpop.f32.mrb[0].mxu0
    %v4887 = vadd.f32 %v4774, %v4886
    %v4888 = vpop.f32.mrb[0].mxu0
    %4889 = vmatprep.mubr.f32.mxu0 0.0
    %v4890 = vand.u32 %v3351, 4294901760
    %4891 = vmatmul.mubr.f32.gmra.mrb[0].mxu0 %v4890
    %v4892 = vpop.f32.mrb[0].mxu0
    %v4893 = vadd.f32 %v4780, %v4892
    %v4894 = vpop.f32.mrb[0].mxu0
    %4895 = vmatprep.mubr.f32.mxu0 0.0
    %v4896 = vand.u32 %v3354, 4294901760
    %4897 = vmatmul.mubr.f32.gmra.mrb[0].mxu0 %v4896
    %v4898 = vpop.f32.mrb[0].mxu0
    %v4899 = vadd.f32 %v4786, %v4898
    %v4900 = vpop.f32.mrb[0].mxu0
    %4901 = vmatprep.mubr.f32.mxu0 0.0
    %v4902 = vand.u32 %v3357, 4294901760
    %4903 = vmatmul.mubr.f32.gmra.mrb[0].mxu0 %v4902
    %v4904 = vpop.f32.mrb[0].mxu0
    %v4905 = vadd.f32 %v4792, %v4904
    %v4906 = vpop.f32.mrb[0].mxu0
    %4907 = vmatprep.mubr.f32.mxu0 0.0
    %v4908 = vand.u32 %v3360, 4294901760
    %4909 = vmatmul.mubr.f32.gmra.mrb[0].mxu0 %v4908
    %v4910 = vpop.f32.mrb[0].mxu0
    %v4911 = vadd.f32 %v4798, %v4910
    %v4912 = vpop.f32.mrb[0].mxu0
    %4913 = vmatprep.mubr.f32.mxu0 0.0
    %v4914 = vand.u32 %v3363, 4294901760
    %4915 = vmatmul.mubr.f32.gmra.mrb[0].mxu0 %v4914
    %v4916 = vpop.f32.mrb[0].mxu0
    %v4917 = vadd.f32 %v4804, %v4916
    %v4918 = vpop.f32.mrb[0].mxu0
    %4919 = vmatprep.mubr.f32.mxu0 0.0
    %v4920 = vand.u32 %v3366, 4294901760
    %4921 = vmatmul.mubr.f32.gmra.mrb[0].mxu0 %v4920
    %v4922 = vpop.f32.mrb[0].mxu0
    %v4923 = vadd.f32 %v4810, %v4922
    %v4924 = vpop.f32.mrb[0].mxu0
    %4925 = vdwg.mxu0
    %v4926 = vmul.f32 %v3276, %v4125
    %v4927 = vmul.f32 %v3277, %v4127
    %v4928 = vmul.f32 %v3278, %v4881
    %v4929 = vmul.f32 %v3279, %v4132
    %v4930 = vmul.f32 %v3280, %v4134
    %v4931 = vmul.f32 %v3281, %v4887
    %v4932 = vmul.f32 %v3282, %v4139
    %v4933 = vmul.f32 %v3283, %v4141
    %v4934 = vmul.f32 %v3284, %v4893
    %v4935 = vmul.f32 %v3285, %v4146
    %v4936 = vmul.f32 %v3286, %v4148
    %v4937 = vmul.f32 %v3287, %v4899
    %v4938 = vmul.f32 %v3288, %v4153
    %v4939 = vmul.f32 %v3289, %v4155
    %v4940 = vmul.f32 %v3290, %v4905
    %v4941 = vmul.f32 %v3291, %v4160
    %v4942 = vmul.f32 %v3292, %v4162
    %v4943 = vmul.f32 %v3293, %v4911
    %v4944 = vmul.f32 %v3294, %v4167
    %v4945 = vmul.f32 %v3295, %v4169
    %v4946 = vmul.f32 %v3296, %v4917
    %v4947 = vmul.f32 %v3297, %v4174
    %v4948 = vmul.f32 %v3298, %v4176
    %v4949 = vmul.f32 %v3299, %v4923
    %v4950 = vadd.f32 %v4926, %v4929
    %v4951 = vrot.slane %v4950, 4
    %v4952 = vadd.f32 %v4950, %v4951
    %v4953 = vrot.slane %v4952, 2
    %v4954 = vadd.f32 %v4952, %v4953
    %v4955 = vrot.slane %v4954, 1
    %v4956 = vadd.f32 %v4954, %v4955
    %v4957 = vadd.f32 %v4927, %v4930
    %v4958 = vrot.slane %v4957, 4
    %v4959 = vadd.f32 %v4957, %v4958
    %v4960 = vrot.slane %v4959, 2
    %v4961 = vadd.f32 %v4959, %v4960
    %v4962 = vrot.slane %v4961, 1
    %v4963 = vadd.f32 %v4961, %v4962
    %v4964 = vadd.f32 %v4928, %v4931
    %v4965 = vrot.slane %v4964, 4
    %v4966 = vadd.f32 %v4964, %v4965
    %v4967 = vrot.slane %v4966, 2
    %v4968 = vadd.f32 %v4966, %v4967
    %v4969 = vrot.slane %v4968, 1
    %v4970 = vadd.f32 %v4968, %v4969
    %v4971 = vadd.f32 %v4932, %v4935
    %v4972 = vrot.slane %v4971, 4
    %v4973 = vadd.f32 %v4971, %v4972
    %v4974 = vrot.slane %v4973, 2
    %v4975 = vadd.f32 %v4973, %v4974
    %v4976 = vrot.slane %v4975, 1
    %v4977 = vadd.f32 %v4975, %v4976
    %v4978 = vadd.f32 %v4933, %v4936
    %v4979 = vrot.slane %v4978, 4
    %v4980 = vadd.f32 %v4978, %v4979
    %v4981 = vrot.slane %v4980, 2
    %v4982 = vadd.f32 %v4980, %v4981
    %v4983 = vrot.slane %v4982, 1
    %v4984 = vadd.f32 %v4982, %v4983
    %v4985 = vadd.f32 %v4934, %v4937
    %v4986 = vrot.slane %v4985, 4
    %v4987 = vadd.f32 %v4985, %v4986
    %v4988 = vrot.slane %v4987, 2
    %v4989 = vadd.f32 %v4987, %v4988
    %v4990 = vrot.slane %v4989, 1
    %v4991 = vadd.f32 %v4989, %v4990
    %v4992 = vadd.f32 %v4938, %v4941
    %v4993 = vrot.slane %v4992, 4
    %v4994 = vadd.f32 %v4992, %v4993
    %v4995 = vrot.slane %v4994, 2
    %v4996 = vadd.f32 %v4994, %v4995
    %v4997 = vrot.slane %v4996, 1
    %v4998 = vadd.f32 %v4996, %v4997
    %v4999 = vadd.f32 %v4939, %v4942
    %v5000 = vrot.slane %v4999, 4
    %v5001 = vadd.f32 %v4999, %v5000
    %v5002 = vrot.slane %v5001, 2
    %v5003 = vadd.f32 %v5001, %v5002
    %v5004 = vrot.slane %v5003, 1
    %v5005 = vadd.f32 %v5003, %v5004
    %v5006 = vadd.f32 %v4940, %v4943
    %v5007 = vrot.slane %v5006, 4
    %v5008 = vadd.f32 %v5006, %v5007
    %v5009 = vrot.slane %v5008, 2
    %v5010 = vadd.f32 %v5008, %v5009
    %v5011 = vrot.slane %v5010, 1
    %v5012 = vadd.f32 %v5010, %v5011
    %v5013 = vadd.f32 %v4944, %v4947
    %v5014 = vrot.slane %v5013, 4
    %v5015 = vadd.f32 %v5013, %v5014
    %v5016 = vrot.slane %v5015, 2
    %v5017 = vadd.f32 %v5015, %v5016
    %v5018 = vrot.slane %v5017, 1
    %v5019 = vadd.f32 %v5017, %v5018
    %v5020 = vadd.f32 %v4945, %v4948
    %v5021 = vrot.slane %v5020, 4
    %v5022 = vadd.f32 %v5020, %v5021
    %v5023 = vrot.slane %v5022, 2
    %v5024 = vadd.f32 %v5022, %v5023
    %v5025 = vrot.slane %v5024, 1
    %v5026 = vadd.f32 %v5024, %v5025
    %v5027 = vadd.f32 %v4946, %v4949
    %v5028 = vrot.slane %v5027, 4
    %v5029 = vadd.f32 %v5027, %v5028
    %v5030 = vrot.slane %v5029, 2
    %v5031 = vadd.f32 %v5029, %v5030
    %v5032 = vrot.slane %v5031, 1
    %v5033 = vadd.f32 %v5031, %v5032
    %v5034 = vadd.f32 %v4956, %v4977
    %v5035 = vadd.f32 %v4963, %v4984
    %v5036 = vadd.f32 %v4970, %v4991
    %v5037 = vadd.f32 %v5034, %v4998
    %v5038 = vadd.f32 %v5035, %v5005
    %v5039 = vadd.f32 %v5036, %v5012
    %v5040 = vadd.f32 %v5037, %v5019
    %v5041 = vadd.f32 %v5038, %v5026
    %v5042 = vadd.f32 %v5039, %v5033
    %v5043 = vmul.f32 %v5040, 0.25
    %v5044 = vmul.f32 %v5041, 0.25
    %v5045 = vmul.f32 %v5042, 0.25
    %v5049 = vcombine.low %v5043, %v5044
    %v5051 = vunpack.c.l.s4 1966171168
    %v5052 = vunpack.c.0.s8 %v5051
    %v5053 = vlaneseq
    %v5054 = vshrl.u32 %v5053, 7
    %v5055 = vsub.s32 %v5052, %v5054
    %v5056 = vrot.slane %v5049, %v5055
    %v5058 = vunpack.c.l.s4 1966171168
    %v5059 = vunpack.c.0.s8 %v5058
    %v5060 = vlaneseq
    %v5061 = vshrl.u32 %v5060, 7
    %v5062 = vsub.s32 %v5059, %v5061
    %v5063 = vrot.slane %v5045, %v5062
    %v5064 = vcombine.low %v5056, %v5063
    %v5066 = vunpack.c.l.s4 1966171168
    %v5067 = vunpack.c.0.s8 %v5066
    %v5068 = vlaneseq
    %v5069 = vshrl.u32 %v5068, 7
    %v5070 = vsub.s32 %v5067, %v5069
    %v5071 = vrot.slane %v5064, %v5070
    %v5073 = vlaneseq
    %vm5074 = vcmp.ge.s32.totalorder %v5073, 0
    %vm5075 = vcmp.lt.s32.totalorder %v5073, 384
    %vm5076 = vmand %vm5074, %vm5075
    %5077 = vst.msk [vmem:[#allocation2] sm:$0x7] %vm5076, %v5071
    // Predicated region
    $region18: #{tpu_custom_call.1} parent=1 // pred_check
      _
    $region19: #{tpu_custom_call.1} parent=1 // pred_check_branch
      %5079 = sbr.rel (0) target = $region21
    $region20: #{tpu_custom_call.1} parent=1 // pred_region
      %s5081 = ssub.s32 48, 48
      %5082 = vsyncadd [#allocation3], %s5081
      %s5084 = sshll.u32 [#allocation2], 4
      %s5085 = int_to_ptr.vmem [resolvable:$true] %s5084
      %5087 = dma.vmem_to_hbm [thread:$0]  %s5085, 48, %s4, [#allocation3]
    $region21: #{tpu_custom_call.1} parent=1 // pred_fallthru
      _
    // Predicated region
    $region22: #{tpu_custom_call.1} parent=1 // pred_check
      _
    $region23: #{tpu_custom_call.1} parent=1 // pred_check_branch
      %5089 = sbr.rel (0) target = $region25
    $region24: #{tpu_custom_call.1} parent=1 // pred_region
      %5090 = dma.done [#allocation3], 48
    $region25: #{tpu_custom_call.1} parent=1 // pred_fallthru
      _
    %5091 = vsyncpa [#allocation3], 1

</llo_original>
